<compile_context>
chip_gen: v7x
topology: tpu7x:2x2x1
jax: 0.10.0
libtpu: 0.0.40
codegen_flags: <defaults>
</compile_context>

<pallas_src>
import functools

import jax
import jax.numpy as jnp
import numpy as np
from jax.experimental import pallas as pl
from jax.experimental.pallas import tpu as pltpu


def _round_up(x, m):
    return ((x + m - 1) // m) * m


def _grid_pool_kernel(cid_ref, feat_ref, out_ref, *, tg, tn_strip):
    # cid_ref : (1, tn, 1)  int32  global cell id per point (-1 = invalid / padding)
    # feat_ref: (1, tn, C)  f32
    # out_ref : (1, C, tg)  f32    resident across the point-chunk (last) grid axis
    @pl.when(pl.program_id(2) == 0)
    def _init():
        out_ref[...] = jnp.zeros_like(out_ref)

    _, tn, C = feat_ref.shape
    n_strips = tn // tn_strip

    # Base-free comparison: shift point cell-ids into tile-local space (cheap column
    # op) and compare against a loop-invariant lane iota.
    base = pl.program_id(1) * tg
    lane_iota = jax.lax.broadcasted_iota(jnp.int32, (tn_strip, tg), 1)

    # Strip-mine the point axis so (tn_strip, tg) intermediates stay bounded.
    for s in range(n_strips):                         # static, small trip count
        lo = s * tn_strip
        local = cid_ref[0, lo:lo + tn_strip, :] - base      # (tn_strip, 1)
        mask = lane_iota == local                           # (tn_strip, tg); cid=-1 never matches
        feat_s = feat_ref[0, lo:lo + tn_strip, :]           # (tn_strip, C)
        for c in range(C):                                  # C is small; static channel loop
            contrib = jnp.where(mask, feat_s[:, c:c + 1], 0.0)   # (tn_strip, tg)
            pooled = jnp.max(contrib, axis=0)                    # (tg,)
            # zero-init + running max == CUDA "only overwrite if larger", from 0.
            # Per-channel in-place row update (no (C, tg) concat / sublane repack).
            out_ref[0, c, :] = jnp.maximum(out_ref[0, c, :], pooled)


def grid_pooling(feat_points, points, W, H, D, *, tg=None, tn=None, tn_strip=256):
    """feat_points: (B, N, C) f32, points: (B, N, 3) f32 -> (B, C, W, H, D) f32."""
    assert feat_points.shape[0] == points.shape[0]
    assert feat_points.shape[1] == points.shape[1]
    B, N, C = feat_points.shape
    G = W * H * D

    points = points.astype(jnp.float32)
    feat = feat_points.astype(jnp.float32)

    # --- hoisted cell-id computation (once per point, in XLA) -------------------
    ix = jnp.floor(points[..., 0]).astype(jnp.int32)
    iy = jnp.floor(points[..., 1]).astype(jnp.int32)
    iz = jnp.floor(points[..., 2]).astype(jnp.int32)
    valid = (ix >= 0) & (ix < W) & (iy >= 0) & (iy < H) & (iz >= 0) & (iz < D)
    cid = jnp.where(valid, ix * (H * D) + iy * D + iz, -1).astype(jnp.int32)  # (B, N)

    # --- tile selection ----------------------------------------------------------
    # Cell tile (lane axis): large, lane-dense, multiple of 128 -> few grid steps,
    # unmasked vst. Output block is only C*tg*4 bytes.
    if tg is None:
        tg = min(_round_up(G, 128), 4096)
    G_pad = _round_up(G, tg)
    # Point chunk (sublane axis): whole cloud VMEM-resident when it fits; the input
    # block index is then constant across g, so Pallas DMAs the points once per batch.
    # (cap keeps the unrolled in-kernel strip loop small; raise for bigger N.)
    if tn is None:
        tn = min(_round_up(N, 8), 2048)
    tn_strip = min(tn_strip, tn)
    tn = _round_up(tn, tn_strip)            # whole strips; extra rows padded cid=-1
    N_pad = _round_up(N, tn)

    if N_pad != N:
        cid = jnp.pad(cid, ((0, 0), (0, N_pad - N)), constant_values=-1)
        feat = jnp.pad(feat, ((0, 0), (0, N_pad - N), (0, 0)))
    cid3 = cid[:, :, None]                  # (B, N_pad, 1) int32
    # NOTE: the (1, tn, 1) cid block is 1/128 lane-occupied, but with the resident
    # point cloud it is only DMA'd once per batch, so fusing it into feat is moot.

    kernel = functools.partial(_grid_pool_kernel, tg=tg, tn_strip=tn_strip)

    feat_cell = pl.pallas_call(
        kernel,
        out_shape=jax.ShapeDtypeStruct((B, C, G_pad), jnp.float32),
        grid_spec=pltpu.PrefetchScalarGridSpec(
            num_scalar_prefetch=0,
            grid=(B, G_pad // tg, N_pad // tn),
            in_specs=[
                pl.BlockSpec((1, tn, 1), lambda b, g, n: (b, n, 0)),
                pl.BlockSpec((1, tn, C), lambda b, g, n: (b, n, 0)),
            ],
            out_specs=pl.BlockSpec((1, C, tg), lambda b, g, n: (b, 0, g)),
        ),
        compiler_params=pltpu.CompilerParams(
            dimension_semantics=("parallel", "parallel", "arbitrary"),
            # Footprint is a few MiB; 32 MiB scoped limit is safe on v5e/v6e and on
            # v7x's smaller 64 MiB physical VMEM.
            vmem_limit_bytes=32 * 1024 * 1024),
    )(cid3, feat)

    if G_pad != G:
        feat_cell = feat_cell[:, :, :G]
    # cid = x*H*D + y*D + z is row-major over (W, H, D), so (B, C, G) reshapes directly
    # to torch.transpose(feat_cell, 1, 2).contiguous().view(-1, C, W, H, D).
    return feat_cell.reshape(B, C, W, H, D)


def _reference(feat_points, points, W, H, D):
    feat_points = np.asarray(feat_points)
    points = np.asarray(points)
    B, N, C = feat_points.shape
    out = np.zeros((B, W * H * D, C), np.float32)
    for b in range(B):
        for p in range(N):
            x, y, z = points[b, p]
            i, j, k = int(np.floor(x)), int(np.floor(y)), int(np.floor(z))
            if 0 <= i < W and 0 <= j < H and 0 <= k < D:
                ind = i * H * D + j * D + k
                out[b, ind] = np.maximum(out[b, ind], feat_points[b, p])
    return out.transpose(0, 2, 1).reshape(B, C, W, H, D)


if __name__ == "__main__":
    key = jax.random.PRNGKey(0)
    B, N, C = 2, 512, 4
    W = H = D = 8          # 512 grid cells

    k1, k2 = jax.random.split(key)
    # Coordinates mostly span the grid; some fall outside and must be ignored.
    points = jax.random.uniform(k1, (B, N, 3), jnp.float32,
                                minval=-1.0, maxval=float(W) + 1.0)
    feat_points = jax.random.normal(k2, (B, N, C), jnp.float32)

    out = grid_pooling(feat_points, points, W, H, D)
    out = jax.block_until_ready(out)

    ref = _reference(feat_points, points, W, H, D)
    np.testing.assert_allclose(np.asarray(out), ref, atol=1e-6, rtol=1e-6)
    print("KERNEL_OK")
</pallas_src>

<mosaic_0001>
module attributes {stable_mosaic.version = 11 : i64} {
  func.func @_grid_pool_kernel(%arg0: i32, %arg1: i32, %arg2: i32, %arg3: memref<1x512x1xi32, #tpu.memory_space<vmem>>, %arg4: memref<1x512x4xf32, #tpu.memory_space<vmem>>, %arg5: memref<1x4x512xf32, #tpu.memory_space<vmem>>) attributes {dimension_semantics = [#tpu.dimension_semantics<parallel>, #tpu.dimension_semantics<parallel>, #tpu.dimension_semantics<arbitrary>], iteration_bounds = array<i64: 2, 1, 1>, scalar_prefetch = 0 : i64, scratch_operands = 0 : i64, tpu.core_type = #tpu.core_type<tc>, window_params = [{transform_indices = @transform_0, window_bounds = array<i64: 1, 512, 1>}, {transform_indices = @transform_1, window_bounds = array<i64: 1, 512, 4>}, {transform_indices = @transform_2, window_bounds = array<i64: 1, 4, 512>}]} {
    %c0_i32 = arith.constant 0 : i32
    %0 = arith.cmpi eq, %arg2, %c0_i32 : i32
    %1 = arith.extui %0 : i1 to i32
    %c0_i32_0 = arith.constant 0 : i32
    %2 = arith.cmpi ne, %1, %c0_i32_0 : i32
    scf.if %2 {
      %cst_71 = arith.constant 0.000000e+00 : f32
      %117 = vector.broadcast %cst_71 : f32 to vector<1x4x512xf32>
      %c0_72 = arith.constant 0 : index
      %c0_73 = arith.constant 0 : index
      %c0_74 = arith.constant 0 : index
      %118 = vector.load %arg5[%c0_72, %c0_73, %c0_74] : memref<1x4x512xf32, #tpu.memory_space<vmem>>, vector<1x4x512xf32>
      tpu.vector_store %arg5[%c0_72, %c0_73, %c0_74], %117 {strides = array<i32>} : memref<1x4x512xf32, #tpu.memory_space<vmem>>, vector<1x4x512xf32>,
    } else {
    }
    %c512_i32 = arith.constant 512 : i32
    %3 = arith.muli %arg1, %c512_i32 : i32
    %4 = tpu.iota {dimensions = array<i32: 1>} : vector<256x512xi32>
    %c0 = arith.constant 0 : index
    %c0_1 = arith.constant 0 : index
    %c0_2 = arith.constant 0 : index
    %5 = vector.load %arg3[%c0, %c0_1, %c0_2] : memref<1x512x1xi32, #tpu.memory_space<vmem>>, vector<1x256x1xi32>
    %6 = vector.shape_cast %5 : vector<1x256x1xi32> to vector<256x1xi32>
    %7 = vector.broadcast %3 : i32 to vector<256x1xi32>
    %8 = arith.subi %6, %7 : vector<256x1xi32>
    %9 = vector.broadcast %8 : vector<256x1xi32> to vector<256x512xi32>
    %10 = arith.cmpi eq, %4, %9 : vector<256x512xi32>
    %c0_3 = arith.constant 0 : index
    %c0_4 = arith.constant 0 : index
    %c0_5 = arith.constant 0 : index
    %11 = vector.load %arg4[%c0_3, %c0_4, %c0_5] : memref<1x512x4xf32, #tpu.memory_space<vmem>>, vector<1x256x4xf32>
    %12 = vector.shape_cast %11 : vector<1x256x4xf32> to vector<256x4xf32>
    %13 = vector.extract_strided_slice %12 {offsets = [0, 0], sizes = [256, 1], strides = [1, 1]} : vector<256x4xf32> to vector<256x1xf32>
    %cst = arith.constant 0.000000e+00 : f32
    %14 = vector.shape_cast %13 : vector<256x1xf32> to vector<256x1xf32>
    %15 = vector.broadcast %14 : vector<256x1xf32> to vector<256x512xf32>
    %16 = vector.broadcast %cst : f32 to vector<256x512xf32>
    %17 = arith.select %10, %15, %16 : vector<256x512xi1>, vector<256x512xf32>
    %cst_6 = arith.constant dense<0xFF800000> : vector<512xf32>
    %18 = vector.multi_reduction <maximumf>, %17, %cst_6 [0] : vector<256x512xf32> to vector<512xf32>
    %c0_7 = arith.constant 0 : index
    %c0_8 = arith.constant 0 : index
    %c0_9 = arith.constant 0 : index
    %19 = vector.load %arg5[%c0_7, %c0_8, %c0_9] : memref<1x4x512xf32, #tpu.memory_space<vmem>>, vector<1x1x512xf32>
    %20 = vector.shape_cast %19 : vector<1x1x512xf32> to vector<512xf32>
    %21 = arith.maximumf %20, %18 : vector<512xf32>
    %c0_10 = arith.constant 0 : index
    %c0_11 = arith.constant 0 : index
    %c0_12 = arith.constant 0 : index
    %22 = vector.load %arg5[%c0_10, %c0_11, %c0_12] : memref<1x4x512xf32, #tpu.memory_space<vmem>>, vector<1x1x512xf32>
    %23 = vector.shape_cast %22 : vector<1x1x512xf32> to vector<512xf32>
    %24 = vector.shape_cast %21 : vector<512xf32> to vector<1x1x512xf32>
    tpu.vector_store %arg5[%c0_10, %c0_11, %c0_12], %24 {strides = array<i32>} : memref<1x4x512xf32, #tpu.memory_space<vmem>>, vector<1x1x512xf32>,
    %25 = vector.extract_strided_slice %12 {offsets = [0, 1], sizes = [256, 1], strides = [1, 1]} : vector<256x4xf32> to vector<256x1xf32>
    %cst_13 = arith.constant 0.000000e+00 : f32
    %26 = vector.shape_cast %25 : vector<256x1xf32> to vector<256x1xf32>
    %27 = vector.broadcast %26 : vector<256x1xf32> to vector<256x512xf32>
    %28 = vector.broadcast %cst_13 : f32 to vector<256x512xf32>
    %29 = arith.select %10, %27, %28 : vector<256x512xi1>, vector<256x512xf32>
    %cst_14 = arith.constant dense<0xFF800000> : vector<512xf32>
    %30 = vector.multi_reduction <maximumf>, %29, %cst_14 [0] : vector<256x512xf32> to vector<512xf32>
    %c0_15 = arith.constant 0 : index
    %c1 = arith.constant 1 : index
    %c0_16 = arith.constant 0 : index
    %31 = vector.load %arg5[%c0_15, %c1, %c0_16] : memref<1x4x512xf32, #tpu.memory_space<vmem>>, vector<1x1x512xf32>
    %32 = vector.shape_cast %31 : vector<1x1x512xf32> to vector<512xf32>
    %33 = arith.maximumf %32, %30 : vector<512xf32>
    %c0_17 = arith.constant 0 : index
    %c1_18 = arith.constant 1 : index
    %c0_19 = arith.constant 0 : index
    %34 = vector.load %arg5[%c0_17, %c1_18, %c0_19] : memref<1x4x512xf32, #tpu.memory_space<vmem>>, vector<1x1x512xf32>
    %35 = vector.shape_cast %34 : vector<1x1x512xf32> to vector<512xf32>
    %36 = vector.shape_cast %33 : vector<512xf32> to vector<1x1x512xf32>
    tpu.vector_store %arg5[%c0_17, %c1_18, %c0_19], %36 {strides = array<i32>} : memref<1x4x512xf32, #tpu.memory_space<vmem>>, vector<1x1x512xf32>,
    %37 = vector.extract_strided_slice %12 {offsets = [0, 2], sizes = [256, 1], strides = [1, 1]} : vector<256x4xf32> to vector<256x1xf32>
    %cst_20 = arith.constant 0.000000e+00 : f32
    %38 = vector.shape_cast %37 : vector<256x1xf32> to vector<256x1xf32>
    %39 = vector.broadcast %38 : vector<256x1xf32> to vector<256x512xf32>
    %40 = vector.broadcast %cst_20 : f32 to vector<256x512xf32>
    %41 = arith.select %10, %39, %40 : vector<256x512xi1>, vector<256x512xf32>
    %cst_21 = arith.constant dense<0xFF800000> : vector<512xf32>
    %42 = vector.multi_reduction <maximumf>, %41, %cst_21 [0] : vector<256x512xf32> to vector<512xf32>
    %c0_22 = arith.constant 0 : index
    %c2 = arith.constant 2 : index
    %c0_23 = arith.constant 0 : index
    %43 = vector.load %arg5[%c0_22, %c2, %c0_23] : memref<1x4x512xf32, #tpu.memory_space<vmem>>, vector<1x1x512xf32>
    %44 = vector.shape_cast %43 : vector<1x1x512xf32> to vector<512xf32>
    %45 = arith.maximumf %44, %42 : vector<512xf32>
    %c0_24 = arith.constant 0 : index
    %c2_25 = arith.constant 2 : index
    %c0_26 = arith.constant 0 : index
    %46 = vector.load %arg5[%c0_24, %c2_25, %c0_26] : memref<1x4x512xf32, #tpu.memory_space<vmem>>, vector<1x1x512xf32>
    %47 = vector.shape_cast %46 : vector<1x1x512xf32> to vector<512xf32>
    %48 = vector.shape_cast %45 : vector<512xf32> to vector<1x1x512xf32>
    tpu.vector_store %arg5[%c0_24, %c2_25, %c0_26], %48 {strides = array<i32>} : memref<1x4x512xf32, #tpu.memory_space<vmem>>, vector<1x1x512xf32>,
    %49 = vector.extract_strided_slice %12 {offsets = [0, 3], sizes = [256, 1], strides = [1, 1]} : vector<256x4xf32> to vector<256x1xf32>
    %cst_27 = arith.constant 0.000000e+00 : f32
    %50 = vector.shape_cast %49 : vector<256x1xf32> to vector<256x1xf32>
    %51 = vector.broadcast %50 : vector<256x1xf32> to vector<256x512xf32>
    %52 = vector.broadcast %cst_27 : f32 to vector<256x512xf32>
    %53 = arith.select %10, %51, %52 : vector<256x512xi1>, vector<256x512xf32>
    %cst_28 = arith.constant dense<0xFF800000> : vector<512xf32>
    %54 = vector.multi_reduction <maximumf>, %53, %cst_28 [0] : vector<256x512xf32> to vector<512xf32>
    %c0_29 = arith.constant 0 : index
    %c3 = arith.constant 3 : index
    %c0_30 = arith.constant 0 : index
    %55 = vector.load %arg5[%c0_29, %c3, %c0_30] : memref<1x4x512xf32, #tpu.memory_space<vmem>>, vector<1x1x512xf32>
    %56 = vector.shape_cast %55 : vector<1x1x512xf32> to vector<512xf32>
    %57 = arith.maximumf %56, %54 : vector<512xf32>
    %c0_31 = arith.constant 0 : index
    %c3_32 = arith.constant 3 : index
    %c0_33 = arith.constant 0 : index
    %58 = vector.load %arg5[%c0_31, %c3_32, %c0_33] : memref<1x4x512xf32, #tpu.memory_space<vmem>>, vector<1x1x512xf32>
    %59 = vector.shape_cast %58 : vector<1x1x512xf32> to vector<512xf32>
    %60 = vector.shape_cast %57 : vector<512xf32> to vector<1x1x512xf32>
    tpu.vector_store %arg5[%c0_31, %c3_32, %c0_33], %60 {strides = array<i32>} : memref<1x4x512xf32, #tpu.memory_space<vmem>>, vector<1x1x512xf32>,
    %c0_34 = arith.constant 0 : index
    %c256 = arith.constant 256 : index
    %c0_35 = arith.constant 0 : index
    %61 = vector.load %arg3[%c0_34, %c256, %c0_35] : memref<1x512x1xi32, #tpu.memory_space<vmem>>, vector<1x256x1xi32>
    %62 = vector.shape_cast %61 : vector<1x256x1xi32> to vector<256x1xi32>
    %63 = vector.broadcast %3 : i32 to vector<256x1xi32>
    %64 = arith.subi %62, %63 : vector<256x1xi32>
    %65 = vector.broadcast %64 : vector<256x1xi32> to vector<256x512xi32>
    %66 = arith.cmpi eq, %4, %65 : vector<256x512xi32>
    %c0_36 = arith.constant 0 : index
    %c256_37 = arith.constant 256 : index
    %c0_38 = arith.constant 0 : index
    %67 = vector.load %arg4[%c0_36, %c256_37, %c0_38] : memref<1x512x4xf32, #tpu.memory_space<vmem>>, vector<1x256x4xf32>
    %68 = vector.shape_cast %67 : vector<1x256x4xf32> to vector<256x4xf32>
    %69 = vector.extract_strided_slice %68 {offsets = [0, 0], sizes = [256, 1], strides = [1, 1]} : vector<256x4xf32> to vector<256x1xf32>
    %cst_39 = arith.constant 0.000000e+00 : f32
    %70 = vector.shape_cast %69 : vector<256x1xf32> to vector<256x1xf32>
    %71 = vector.broadcast %70 : vector<256x1xf32> to vector<256x512xf32>
    %72 = vector.broadcast %cst_39 : f32 to vector<256x512xf32>
    %73 = arith.select %66, %71, %72 : vector<256x512xi1>, vector<256x512xf32>
    %cst_40 = arith.constant dense<0xFF800000> : vector<512xf32>
    %74 = vector.multi_reduction <maximumf>, %73, %cst_40 [0] : vector<256x512xf32> to vector<512xf32>
    %c0_41 = arith.constant 0 : index
    %c0_42 = arith.constant 0 : index
    %c0_43 = arith.constant 0 : index
    %75 = vector.load %arg5[%c0_41, %c0_42, %c0_43] : memref<1x4x512xf32, #tpu.memory_space<vmem>>, vector<1x1x512xf32>
    %76 = vector.shape_cast %75 : vector<1x1x512xf32> to vector<512xf32>
    %77 = arith.maximumf %76, %74 : vector<512xf32>
    %c0_44 = arith.constant 0 : index
    %c0_45 = arith.constant 0 : index
    %c0_46 = arith.constant 0 : index
    %78 = vector.load %arg5[%c0_44, %c0_45, %c0_46] : memref<1x4x512xf32, #tpu.memory_space<vmem>>, vector<1x1x512xf32>
    %79 = vector.shape_cast %78 : vector<1x1x512xf32> to vector<512xf32>
    %80 = vector.shape_cast %77 : vector<512xf32> to vector<1x1x512xf32>
    tpu.vector_store %arg5[%c0_44, %c0_45, %c0_46], %80 {strides = array<i32>} : memref<1x4x512xf32, #tpu.memory_space<vmem>>, vector<1x1x512xf32>,
    %81 = vector.extract_strided_slice %68 {offsets = [0, 1], sizes = [256, 1], strides = [1, 1]} : vector<256x4xf32> to vector<256x1xf32>
    %cst_47 = arith.constant 0.000000e+00 : f32
    %82 = vector.shape_cast %81 : vector<256x1xf32> to vector<256x1xf32>
    %83 = vector.broadcast %82 : vector<256x1xf32> to vector<256x512xf32>
    %84 = vector.broadcast %cst_47 : f32 to vector<256x512xf32>
    %85 = arith.select %66, %83, %84 : vector<256x512xi1>, vector<256x512xf32>
    %cst_48 = arith.constant dense<0xFF800000> : vector<512xf32>
    %86 = vector.multi_reduction <maximumf>, %85, %cst_48 [0] : vector<256x512xf32> to vector<512xf32>
    %c0_49 = arith.constant 0 : index
    %c1_50 = arith.constant 1 : index
    %c0_51 = arith.constant 0 : index
    %87 = vector.load %arg5[%c0_49, %c1_50, %c0_51] : memref<1x4x512xf32, #tpu.memory_space<vmem>>, vector<1x1x512xf32>
    %88 = vector.shape_cast %87 : vector<1x1x512xf32> to vector<512xf32>
    %89 = arith.maximumf %88, %86 : vector<512xf32>
    %c0_52 = arith.constant 0 : index
    %c1_53 = arith.constant 1 : index
    %c0_54 = arith.constant 0 : index
    %90 = vector.load %arg5[%c0_52, %c1_53, %c0_54] : memref<1x4x512xf32, #tpu.memory_space<vmem>>, vector<1x1x512xf32>
    %91 = vector.shape_cast %90 : vector<1x1x512xf32> to vector<512xf32>
    %92 = vector.shape_cast %89 : vector<512xf32> to vector<1x1x512xf32>
    tpu.vector_store %arg5[%c0_52, %c1_53, %c0_54], %92 {strides = array<i32>} : memref<1x4x512xf32, #tpu.memory_space<vmem>>, vector<1x1x512xf32>,
    %93 = vector.extract_strided_slice %68 {offsets = [0, 2], sizes = [256, 1], strides = [1, 1]} : vector<256x4xf32> to vector<256x1xf32>
    %cst_55 = arith.constant 0.000000e+00 : f32
    %94 = vector.shape_cast %93 : vector<256x1xf32> to vector<256x1xf32>
    %95 = vector.broadcast %94 : vector<256x1xf32> to vector<256x512xf32>
    %96 = vector.broadcast %cst_55 : f32 to vector<256x512xf32>
    %97 = arith.select %66, %95, %96 : vector<256x512xi1>, vector<256x512xf32>
    %cst_56 = arith.constant dense<0xFF800000> : vector<512xf32>
    %98 = vector.multi_reduction <maximumf>, %97, %cst_56 [0] : vector<256x512xf32> to vector<512xf32>
    %c0_57 = arith.constant 0 : index
    %c2_58 = arith.constant 2 : index
    %c0_59 = arith.constant 0 : index
    %99 = vector.load %arg5[%c0_57, %c2_58, %c0_59] : memref<1x4x512xf32, #tpu.memory_space<vmem>>, vector<1x1x512xf32>
    %100 = vector.shape_cast %99 : vector<1x1x512xf32> to vector<512xf32>
    %101 = arith.maximumf %100, %98 : vector<512xf32>
    %c0_60 = arith.constant 0 : index
    %c2_61 = arith.constant 2 : index
    %c0_62 = arith.constant 0 : index
    %102 = vector.load %arg5[%c0_60, %c2_61, %c0_62] : memref<1x4x512xf32, #tpu.memory_space<vmem>>, vector<1x1x512xf32>
    %103 = vector.shape_cast %102 : vector<1x1x512xf32> to vector<512xf32>
    %104 = vector.shape_cast %101 : vector<512xf32> to vector<1x1x512xf32>
    tpu.vector_store %arg5[%c0_60, %c2_61, %c0_62], %104 {strides = array<i32>} : memref<1x4x512xf32, #tpu.memory_space<vmem>>, vector<1x1x512xf32>,
    %105 = vector.extract_strided_slice %68 {offsets = [0, 3], sizes = [256, 1], strides = [1, 1]} : vector<256x4xf32> to vector<256x1xf32>
    %cst_63 = arith.constant 0.000000e+00 : f32
    %106 = vector.shape_cast %105 : vector<256x1xf32> to vector<256x1xf32>
    %107 = vector.broadcast %106 : vector<256x1xf32> to vector<256x512xf32>
    %108 = vector.broadcast %cst_63 : f32 to vector<256x512xf32>
    %109 = arith.select %66, %107, %108 : vector<256x512xi1>, vector<256x512xf32>
    %cst_64 = arith.constant dense<0xFF800000> : vector<512xf32>
    %110 = vector.multi_reduction <maximumf>, %109, %cst_64 [0] : vector<256x512xf32> to vector<512xf32>
    %c0_65 = arith.constant 0 : index
    %c3_66 = arith.constant 3 : index
    %c0_67 = arith.constant 0 : index
    %111 = vector.load %arg5[%c0_65, %c3_66, %c0_67] : memref<1x4x512xf32, #tpu.memory_space<vmem>>, vector<1x1x512xf32>
    %112 = vector.shape_cast %111 : vector<1x1x512xf32> to vector<512xf32>
    %113 = arith.maximumf %112, %110 : vector<512xf32>
    %c0_68 = arith.constant 0 : index
    %c3_69 = arith.constant 3 : index
    %c0_70 = arith.constant 0 : index
    %114 = vector.load %arg5[%c0_68, %c3_69, %c0_70] : memref<1x4x512xf32, #tpu.memory_space<vmem>>, vector<1x1x512xf32>
    %115 = vector.shape_cast %114 : vector<1x1x512xf32> to vector<512xf32>
    %116 = vector.shape_cast %113 : vector<512xf32> to vector<1x1x512xf32>
    tpu.vector_store %arg5[%c0_68, %c3_69, %c0_70], %116 {strides = array<i32>} : memref<1x4x512xf32, #tpu.memory_space<vmem>>, vector<1x1x512xf32>,
    return
  }
  func.func @transform_0(%arg0: i32, %arg1: i32, %arg2: i32) -> (i32, i32, i32) {
    %c0_i32 = arith.constant 0 : i32
    %c0_i32_0 = arith.constant 0 : i32
    return %arg0, %arg2, %c0_i32 : i32, i32, i32
  }
  func.func @transform_1(%arg0: i32, %arg1: i32, %arg2: i32) -> (i32, i32, i32) {
    %c0_i32 = arith.constant 0 : i32
    %c0_i32_0 = arith.constant 0 : i32
    return %arg0, %arg2, %c0_i32 : i32, i32, i32
  }
  func.func @transform_2(%arg0: i32, %arg1: i32, %arg2: i32) -> (i32, i32, i32) {
    %c0_i32 = arith.constant 0 : i32
    %c0_i32_0 = arith.constant 0 : i32
    return %arg0, %c0_i32, %arg1 : i32, i32, i32
  }
}

</mosaic_0001>

<llo_original>
// kernel: tpu_custom_call.1
$region0: #{tpu_custom_call.1}
  #allocation0 [shape = 'u32[]', space=smem, size = 0x4, offset = 0x4, fixed_abs, tag = 'smem constant byte address 0x4 - core index']
  #allocation1 [shape = 'u32[144,128]{1,0:T(1,128)}', space=vmem, size = 0x12000, scoped, tag = 'internal scratch']
  %s0 = inlined_call_operand.vmem [shape: s32[2,512,1], index: 0, kind: input, shape index: {}]
  %s1 = inlined_call_operand.vmem [shape: f32[2,512,4], index: 1, kind: input, shape index: {}]
  %s2 = inlined_call_operand.hbm [shape: f32[2,4,512], index: 2, kind: output, shape index: {}]
  %s3 = sld [smem:[#allocation0]]
  $region45: #{tpu_custom_call.1} parent=0
    _
  %s5 = ssub.s32 1, %s3
  %s6 = scalar_select 0, %s5, %s3
  $region1: #{tpu_custom_call.1} parent=0
    #allocation2 [shape = 'u8[16384]{0}', space=vmem, size = 0x4000, scoped, tag = 'output window, operand 0']
    #allocation3 [shape = 's32[2]{0}', space=sflag, size = 0x8, scoped, tag = 'scoped memory for tpu_custom_call.1']
    %7 = vsyncpa [#allocation3], 0
    %s8 = scalar_lea.sflag [#allocation3], 1
    %9 = vsyncpa %s8, 0
    loop: start=0, step=1, limit=4
    $region2: #{tpu_custom_call.1} parent=1 // loop_pre_header
      _
    $region3: #{tpu_custom_call.1} parent=1 // loop_header
      %s11 = sphi 0, %s15
      %p12 = scmp.ge.s32.totalorder %s11, 4
      %s18 = sphi 0, %s37
      %s19 = sphi 0, %s33
      %s20 = sphi 0, %s29
      %s21 = sphi 0, %s18
      %s22 = sphi 0, %s19
      %s23 = sphi 0, %s20
      %s24 = sphi 0, %s21
      %s25 = sphi 0, %s22
      %s26 = sphi 0, %s23
      %s42 = sphi 0, %s44
      %s45 = sphi 0, %s42
      %s46 = sphi 0, %s45
      %s62 = sphi 0, %s46
      %s70 = sphi 0, %s72
      %s73 = sphi 0, %s70
      %s74 = sphi 0, %s73
      %s90 = sphi 0, %s74
      %s98 = sphi 0, %s100
      %s101 = sphi 0, %s98
      %s102 = sphi 0, %s101
      %s118 = sphi 0, %s102
    $region4: #{tpu_custom_call.1} parent=1 // loop_header_branch
      %14 = sbr.rel (%p12) target = $region8
    $region5: #{tpu_custom_call.1} parent=1 // loop_body
      %s16 = ssub.s32 %s11, 1
      %s17 = ssub.s32 %s11, 2
      %s27 = sadd.s32 1, %s20
      %p28 = scmp.ge.s32.totalorder %s27, 1
      %s29 = scalar_select %p28, 0, %s27
      %s30 = sadd.s32 1, %s19
      %s31 = scalar_select %p28, %s30, %s19
      %p32 = scmp.ge.s32.totalorder %s31, 1
      %s33 = scalar_select %p32, 0, %s31
      %s34 = sadd.s32 1, %s18
      %s35 = scalar_select %p32, %s34, %s18
      %p36 = scmp.ge.s32.totalorder %s35, 2
      %s37 = scalar_select %p36, 0, %s35
      %s38 = ssub.s32 %s18, %s37
      %s39 = ssub.s32 %s20, %s29
      %s40 = sor.u32 %s38, %s39
      %p41 = scmp.eq.s32.totalorder %s40, 0
      %s43 = sadd.s32 %s42, 1
      %s44 = scalar_select %p41, %s42, %s43
      %p47 = pneg %p41
      %p48 = scmp.eq.s32.totalorder %s11, 1
      %p49 = por %p47, %p48
      %p50 = scmp.ne.s32.totalorder %s42, %s45
      %p51 = scmp.eq.s32.totalorder %s11, 0
      %p52 = por %p50, %p51
      %p53 = scmp.ne.s32.totalorder %s42, %s45
      %p54 = scmp.eq.s32.totalorder %s16, 1
      %p55 = por %p53, %p54
      %p56 = scmp.ne.s32.totalorder %s45, %s46
      %p57 = scmp.eq.s32.totalorder %s16, 0
      %p58 = por %p56, %p57
      %p59 = scmp.ne.s32.totalorder %s45, %s46
      %p60 = scmp.eq.s32.totalorder %s17, 1
      %p61 = por %p59, %p60
      %p63 = scmp.ne.s32.totalorder %s46, %s62
      %p64 = scmp.eq.s32.totalorder %s17, 0
      %p65 = por %p63, %p64
      %s66 = ssub.s32 %s18, %s37
      %s67 = ssub.s32 %s20, %s29
      %s68 = sor.u32 %s66, %s67
      %p69 = scmp.eq.s32.totalorder %s68, 0
      %s71 = sadd.s32 %s70, 1
      %s72 = scalar_select %p69, %s70, %s71
      %p75 = pneg %p69
      %p76 = scmp.eq.s32.totalorder %s11, 1
      %p77 = por %p75, %p76
      %p78 = scmp.ne.s32.totalorder %s70, %s73
      %p79 = scmp.eq.s32.totalorder %s11, 0
      %p80 = por %p78, %p79
      %p81 = scmp.ne.s32.totalorder %s70, %s73
      %p82 = scmp.eq.s32.totalorder %s16, 1
      %p83 = por %p81, %p82
      %p84 = scmp.ne.s32.totalorder %s73, %s74
      %p85 = scmp.eq.s32.totalorder %s16, 0
      %p86 = por %p84, %p85
      %p87 = scmp.ne.s32.totalorder %s73, %s74
      %p88 = scmp.eq.s32.totalorder %s17, 1
      %p89 = por %p87, %p88
      %p91 = scmp.ne.s32.totalorder %s74, %s90
      %p92 = scmp.eq.s32.totalorder %s17, 0
      %p93 = por %p91, %p92
      %s94 = ssub.s32 %s18, %s37
      %s95 = ssub.s32 %s19, %s33
      %s96 = sor.u32 %s94, %s95
      %p97 = scmp.eq.s32.totalorder %s96, 0
      %s99 = sadd.s32 %s98, 1
      %s100 = scalar_select %p97, %s98, %s99
      %p103 = pneg %p97
      %p104 = scmp.eq.s32.totalorder %s11, 1
      %p105 = por %p103, %p104
      %p106 = scmp.ne.s32.totalorder %s98, %s101
      %p107 = scmp.eq.s32.totalorder %s11, 0
      %p108 = por %p106, %p107
      %p109 = scmp.ne.s32.totalorder %s98, %s101
      %p110 = scmp.eq.s32.totalorder %s16, 1
      %p111 = por %p109, %p110
      %p112 = scmp.ne.s32.totalorder %s101, %s102
      %p113 = scmp.eq.s32.totalorder %s16, 0
      %p114 = por %p112, %p113
      %p115 = scmp.ne.s32.totalorder %s101, %s102
      %p116 = scmp.eq.s32.totalorder %s17, 1
      %p117 = por %p115, %p116
      %p119 = scmp.ne.s32.totalorder %s102, %s118
      %p120 = scmp.eq.s32.totalorder %s17, 0
      %p121 = por %p119, %p120
      %p122 = scmp.le.s32.totalorder 1, %s11
      %p123 = scmp.lt.s32.totalorder %s11, 3
      %p124 = pnand %p122, %p123
      %p125 = pneg %p124
      // Predicated region
      $region9: #{tpu_custom_call.1} parent=5 // pred_check
        _
      $region10: #{tpu_custom_call.1} parent=5 // pred_check_branch
        %127 = sbr.rel (%p124) target = $region12
      $region11: #{tpu_custom_call.1} parent=5 // pred_region
        %s128 = ssub.s32 %s11, 1
      $region12: #{tpu_custom_call.1} parent=5 // pred_fallthru
        _
      %p129 = scmp.lt.s32.totalorder %s11, 2
      // Predicated region
      $region13: #{tpu_custom_call.1} parent=5 // pred_check
        %p130 = pneg %p129
      $region14: #{tpu_custom_call.1} parent=5 // pred_check_branch
        %132 = sbr.rel (%p130) target = $region16
      $region15: #{tpu_custom_call.1} parent=5 // pred_region
        // Predicated region
        $region17: #{tpu_custom_call.1} parent=15 // pred_check
          %p133 = pneg %p52
        $region18: #{tpu_custom_call.1} parent=15 // pred_check_branch
          %135 = sbr.rel (%p133) target = $region20
        $region19: #{tpu_custom_call.1} parent=15 // pred_region
          %s136 = smul.u32 64, %s20
          %p137 = scmp.lt.s32.totalorder %s18, 1
          %s138 = scalar_select %p137, %s18, 1
          %p139 = scmp.lt.s32.totalorder %s136, 63
          %s140 = scalar_select %p139, %s136, 63
          %s141 = smul.addr %s138, 64
          %s142 = sadd.s32 %s140, %s141
          %s143 = smul.addr %s142, 8
          %s144 = scalar_lea.vmem %s0, %s143
          %s145 = smul.u32 64, %s20
        $region20: #{tpu_custom_call.1} parent=15 // pred_fallthru
          _
        // Predicated region
        $region21: #{tpu_custom_call.1} parent=15 // pred_check
          %p146 = pneg %p80
        $region22: #{tpu_custom_call.1} parent=15 // pred_check_branch
          %148 = sbr.rel (%p146) target = $region24
        $region23: #{tpu_custom_call.1} parent=15 // pred_region
          %s149 = smul.u32 64, %s20
          %p150 = scmp.lt.s32.totalorder %s18, 1
          %s151 = scalar_select %p150, %s18, 1
          %p152 = scmp.lt.s32.totalorder %s149, 63
          %s153 = scalar_select %p152, %s149, 63
          %s154 = smul.addr %s151, 64
          %s155 = sadd.s32 %s153, %s154
          %s156 = smul.addr %s155, 8
          %s157 = scalar_lea.vmem %s1, %s156
          %s158 = smul.u32 64, %s20
        $region24: #{tpu_custom_call.1} parent=15 // pred_fallthru
          _
      $region16: #{tpu_custom_call.1} parent=5 // pred_fallthru
        _
      %p159 = scmp.le.s32.totalorder 1, %s11
      %p160 = scmp.lt.s32.totalorder %s11, 3
      %p161 = pnand %p159, %p160
      %p162 = pneg %p161
      // Predicated region
      $region25: #{tpu_custom_call.1} parent=5 // pred_check
        _
      $region26: #{tpu_custom_call.1} parent=5 // pred_check_branch
        %164 = sbr.rel (%p161) target = $region28
      $region27: #{tpu_custom_call.1} parent=5 // pred_region
        %s165 = ssub.s32 %s11, 1
        %s166 = smul.u32 64, %s23
        %p167 = scmp.lt.s32.totalorder %s21, 1
        %s168 = scalar_select %p167, %s21, 1
        %p169 = scmp.lt.s32.totalorder %s166, 63
        %s170 = scalar_select %p169, %s166, 63
        %s171 = smul.addr %s168, 64
        %s172 = sadd.s32 %s170, %s171
        %s173 = smul.addr %s172, 8
        %s174 = scalar_lea.vmem %s0, %s173
        %p175 = pneg %p58
        %p176 = pneg %p55
        %s177 = smul.u32 64, %s23
        %p178 = scmp.lt.s32.totalorder %s21, 1
        %s179 = scalar_select %p178, %s21, 1
        %p180 = scmp.lt.s32.totalorder %s177, 63
        %s181 = scalar_select %p180, %s177, 63
        %s182 = smul.addr %s179, 64
        %s183 = sadd.s32 %s181, %s182
        %s184 = smul.addr %s183, 8
        %s185 = scalar_lea.vmem %s1, %s184
        %p186 = pneg %p86
        %p187 = pneg %p83
        %p188 = pneg %p114
        %p189 = pneg %p111
        %s190 = sand.u32 %s101, 1
        %s191 = scalar_lea.sflag [#allocation3], %s190
        %s192 = sand.u32 %s101, 1
        %s193 = smul.addr %s192, 16
        %s194 = scalar_lea.vmem [#allocation2], %s193
        %s195 = smul.u32 64, %s23
        %p196 = scmp.lt.s32.totalorder %s21, 1
        %s197 = scalar_select %p196, %s21, 1
        %p198 = scmp.lt.s32.totalorder %s195, 63
        %s199 = scalar_select %p198, %s195, 63
        %s200 = smul.addr %s197, 64
        %s201 = sadd.s32 %s199, %s200
        %s202 = smul.addr %s201, 8
        %s203 = scalar_lea.vmem %s0, %s202
        %s204 = smul.u32 64, %s23
        %s205 = smul.u32 64, %s23
        %p206 = scmp.lt.s32.totalorder %s21, 1
        %s207 = scalar_select %p206, %s21, 1
        %p208 = scmp.lt.s32.totalorder %s205, 63
        %s209 = scalar_select %p208, %s205, 63
        %s210 = smul.addr %s207, 64
        %s211 = sadd.s32 %s209, %s210
        %s212 = smul.addr %s211, 8
        %s213 = scalar_lea.vmem %s1, %s212
        %s214 = smul.u32 64, %s23
        %s215 = smul.u32 4, %s22
        %p216 = scmp.eq.s32.totalorder %s23, 0
        // Predicated region
        $region29: #{tpu_custom_call.1} parent=27 // pred_check
          %p217 = pneg %p216
        $region30: #{tpu_custom_call.1} parent=27 // pred_check_branch
          %219 = sbr.rel (%p217) target = $region32
        $region31: #{tpu_custom_call.1} parent=27 // pred_region
          %220 = vst [vmem:[%s194] sm:$0xff] 0.0
          %221 = vst [vmem:[%s194 + $0x8] sm:$0xff] 0.0
        $region32: #{tpu_custom_call.1} parent=27 // pred_fallthru
          _
        %s222 = smul.u32 %s22, 512
        %v223 = vlaneseq
        %v224 = vand.u32 %v223, 127
        %v225 = vadd.s32 %v224, 128
        %v226 = vadd.s32 %v224, 256
        %v227 = vadd.s32 %v224, 384
        %v228 = vld [vmem:[%s203] sm:$0xff]
        %v229 = vld [vmem:[%s203 + $0x8] sm:$0xff]
        %v230 = vld [vmem:[%s203 + $0x10] sm:$0xff]
        %v231 = vld [vmem:[%s203 + $0x18] sm:$0xff]
        %v232 = vld [vmem:[%s203 + $0x20] sm:$0xff]
        %v233 = vld [vmem:[%s203 + $0x28] sm:$0xff]
        %v234 = vld [vmem:[%s203 + $0x30] sm:$0xff]
        %v235 = vld [vmem:[%s203 + $0x38] sm:$0xff]
        %v236 = vld [vmem:[%s203 + $0x40] sm:$0xff]
        %v237 = vld [vmem:[%s203 + $0x48] sm:$0xff]
        %v238 = vld [vmem:[%s203 + $0x50] sm:$0xff]
        %v239 = vld [vmem:[%s203 + $0x58] sm:$0xff]
        %v240 = vld [vmem:[%s203 + $0x60] sm:$0xff]
        %v241 = vld [vmem:[%s203 + $0x68] sm:$0xff]
        %v242 = vld [vmem:[%s203 + $0x70] sm:$0xff]
        %v243 = vld [vmem:[%s203 + $0x78] sm:$0xff]
        %v244 = vld [vmem:[%s203 + $0x80] sm:$0xff]
        %v245 = vld [vmem:[%s203 + $0x88] sm:$0xff]
        %v246 = vld [vmem:[%s203 + $0x90] sm:$0xff]
        %v247 = vld [vmem:[%s203 + $0x98] sm:$0xff]
        %v248 = vld [vmem:[%s203 + $0xa0] sm:$0xff]
        %v249 = vld [vmem:[%s203 + $0xa8] sm:$0xff]
        %v250 = vld [vmem:[%s203 + $0xb0] sm:$0xff]
        %v251 = vld [vmem:[%s203 + $0xb8] sm:$0xff]
        %v252 = vld [vmem:[%s203 + $0xc0] sm:$0xff]
        %v253 = vld [vmem:[%s203 + $0xc8] sm:$0xff]
        %v254 = vld [vmem:[%s203 + $0xd0] sm:$0xff]
        %v255 = vld [vmem:[%s203 + $0xd8] sm:$0xff]
        %v256 = vld [vmem:[%s203 + $0xe0] sm:$0xff]
        %v257 = vld [vmem:[%s203 + $0xe8] sm:$0xff]
        %v258 = vld [vmem:[%s203 + $0xf0] sm:$0xff]
        %v259 = vld [vmem:[%s203 + $0xf8] sm:$0xff]
        %v260 = vstv %s222
        %v261 = vsub.s32 %v228, %v260
        %v262 = vsub.s32 %v229, %v260
        %v263 = vsub.s32 %v230, %v260
        %v264 = vsub.s32 %v231, %v260
        %v265 = vsub.s32 %v232, %v260
        %v266 = vsub.s32 %v233, %v260
        %v267 = vsub.s32 %v234, %v260
        %v268 = vsub.s32 %v235, %v260
        %v269 = vsub.s32 %v236, %v260
        %v270 = vsub.s32 %v237, %v260
        %v271 = vsub.s32 %v238, %v260
        %v272 = vsub.s32 %v239, %v260
        %v273 = vsub.s32 %v240, %v260
        %v274 = vsub.s32 %v241, %v260
        %v275 = vsub.s32 %v242, %v260
        %v276 = vsub.s32 %v243, %v260
        %v277 = vsub.s32 %v244, %v260
        %v278 = vsub.s32 %v245, %v260
        %v279 = vsub.s32 %v246, %v260
        %v280 = vsub.s32 %v247, %v260
        %v281 = vsub.s32 %v248, %v260
        %v282 = vsub.s32 %v249, %v260
        %v283 = vsub.s32 %v250, %v260
        %v284 = vsub.s32 %v251, %v260
        %v285 = vsub.s32 %v252, %v260
        %v286 = vsub.s32 %v253, %v260
        %v287 = vsub.s32 %v254, %v260
        %v288 = vsub.s32 %v255, %v260
        %v289 = vsub.s32 %v256, %v260
        %v290 = vsub.s32 %v257, %v260
        %v291 = vsub.s32 %v258, %v260
        %v292 = vsub.s32 %v259, %v260
        %293 = vset.pattern.permute.xlu0 0
        %294 = vperm.xlu0 %293, %v261
        %v295 = vpop.permute.xlu0 %294
        %296 = vset.pattern.permute.xlu0 0
        %297 = vperm.xlu0 %296, %v262
        %v298 = vpop.permute.xlu0 %297
        %299 = vset.pattern.permute.xlu0 0
        %300 = vperm.xlu0 %299, %v263
        %v301 = vpop.permute.xlu0 %300
        %302 = vset.pattern.permute.xlu0 0
        %303 = vperm.xlu0 %302, %v264
        %v304 = vpop.permute.xlu0 %303
        %305 = vset.pattern.permute.xlu0 0
        %306 = vperm.xlu0 %305, %v265
        %v307 = vpop.permute.xlu0 %306
        %308 = vset.pattern.permute.xlu0 0
        %309 = vperm.xlu0 %308, %v266
        %v310 = vpop.permute.xlu0 %309
        %311 = vset.pattern.permute.xlu0 0
        %312 = vperm.xlu0 %311, %v267
        %v313 = vpop.permute.xlu0 %312
        %314 = vset.pattern.permute.xlu0 0
        %315 = vperm.xlu0 %314, %v268
        %v316 = vpop.permute.xlu0 %315
        %317 = vset.pattern.permute.xlu0 0
        %318 = vperm.xlu0 %317, %v269
        %v319 = vpop.permute.xlu0 %318
        %320 = vset.pattern.permute.xlu0 0
        %321 = vperm.xlu0 %320, %v270
        %v322 = vpop.permute.xlu0 %321
        %323 = vset.pattern.permute.xlu0 0
        %324 = vperm.xlu0 %323, %v271
        %v325 = vpop.permute.xlu0 %324
        %326 = vset.pattern.permute.xlu0 0
        %327 = vperm.xlu0 %326, %v272
        %v328 = vpop.permute.xlu0 %327
        %329 = vset.pattern.permute.xlu0 0
        %330 = vperm.xlu0 %329, %v273
        %v331 = vpop.permute.xlu0 %330
        %332 = vset.pattern.permute.xlu0 0
        %333 = vperm.xlu0 %332, %v274
        %v334 = vpop.permute.xlu0 %333
        %335 = vset.pattern.permute.xlu0 0
        %336 = vperm.xlu0 %335, %v275
        %v337 = vpop.permute.xlu0 %336
        %338 = vset.pattern.permute.xlu0 0
        %339 = vperm.xlu0 %338, %v276
        %v340 = vpop.permute.xlu0 %339
        %341 = vset.pattern.permute.xlu0 0
        %342 = vperm.xlu0 %341, %v277
        %v343 = vpop.permute.xlu0 %342
        %344 = vset.pattern.permute.xlu0 0
        %345 = vperm.xlu0 %344, %v278
        %v346 = vpop.permute.xlu0 %345
        %347 = vset.pattern.permute.xlu0 0
        %348 = vperm.xlu0 %347, %v279
        %v349 = vpop.permute.xlu0 %348
        %350 = vset.pattern.permute.xlu0 0
        %351 = vperm.xlu0 %350, %v280
        %v352 = vpop.permute.xlu0 %351
        %353 = vset.pattern.permute.xlu0 0
        %354 = vperm.xlu0 %353, %v281
        %v355 = vpop.permute.xlu0 %354
        %356 = vset.pattern.permute.xlu0 0
        %357 = vperm.xlu0 %356, %v282
        %v358 = vpop.permute.xlu0 %357
        %359 = vset.pattern.permute.xlu0 0
        %360 = vperm.xlu0 %359, %v283
        %v361 = vpop.permute.xlu0 %360
        %362 = vset.pattern.permute.xlu0 0
        %363 = vperm.xlu0 %362, %v284
        %v364 = vpop.permute.xlu0 %363
        %365 = vset.pattern.permute.xlu0 0
        %366 = vperm.xlu0 %365, %v285
        %v367 = vpop.permute.xlu0 %366
        %368 = vset.pattern.permute.xlu0 0
        %369 = vperm.xlu0 %368, %v286
        %v370 = vpop.permute.xlu0 %369
        %371 = vset.pattern.permute.xlu0 0
        %372 = vperm.xlu0 %371, %v287
        %v373 = vpop.permute.xlu0 %372
        %374 = vset.pattern.permute.xlu0 0
        %375 = vperm.xlu0 %374, %v288
        %v376 = vpop.permute.xlu0 %375
        %377 = vset.pattern.permute.xlu0 0
        %378 = vperm.xlu0 %377, %v289
        %v379 = vpop.permute.xlu0 %378
        %380 = vset.pattern.permute.xlu0 0
        %381 = vperm.xlu0 %380, %v290
        %v382 = vpop.permute.xlu0 %381
        %383 = vset.pattern.permute.xlu0 0
        %384 = vperm.xlu0 %383, %v291
        %v385 = vpop.permute.xlu0 %384
        %386 = vset.pattern.permute.xlu0 0
        %387 = vperm.xlu0 %386, %v292
        %v388 = vpop.permute.xlu0 %387
        %vm389 = vcmp.eq.s32.totalorder %v224, %v295
        %vm390 = vcmp.eq.s32.totalorder %v225, %v295
        %vm391 = vcmp.eq.s32.totalorder %v226, %v295
        %vm392 = vcmp.eq.s32.totalorder %v227, %v295
        %vm393 = vcmp.eq.s32.totalorder %v224, %v298
        %vm394 = vcmp.eq.s32.totalorder %v225, %v298
        %vm395 = vcmp.eq.s32.totalorder %v226, %v298
        %vm396 = vcmp.eq.s32.totalorder %v227, %v298
        %vm397 = vcmp.eq.s32.totalorder %v224, %v301
        %vm398 = vcmp.eq.s32.totalorder %v225, %v301
        %vm399 = vcmp.eq.s32.totalorder %v226, %v301
        %vm400 = vcmp.eq.s32.totalorder %v227, %v301
        %vm401 = vcmp.eq.s32.totalorder %v224, %v304
        %vm402 = vcmp.eq.s32.totalorder %v225, %v304
        %vm403 = vcmp.eq.s32.totalorder %v226, %v304
        %vm404 = vcmp.eq.s32.totalorder %v227, %v304
        %vm405 = vcmp.eq.s32.totalorder %v224, %v307
        %vm406 = vcmp.eq.s32.totalorder %v225, %v307
        %vm407 = vcmp.eq.s32.totalorder %v226, %v307
        %vm408 = vcmp.eq.s32.totalorder %v227, %v307
        %vm409 = vcmp.eq.s32.totalorder %v224, %v310
        %vm410 = vcmp.eq.s32.totalorder %v225, %v310
        %vm411 = vcmp.eq.s32.totalorder %v226, %v310
        %vm412 = vcmp.eq.s32.totalorder %v227, %v310
        %vm413 = vcmp.eq.s32.totalorder %v224, %v313
        %vm414 = vcmp.eq.s32.totalorder %v225, %v313
        %vm415 = vcmp.eq.s32.totalorder %v226, %v313
        %vm416 = vcmp.eq.s32.totalorder %v227, %v313
        %vm417 = vcmp.eq.s32.totalorder %v224, %v316
        %vm418 = vcmp.eq.s32.totalorder %v225, %v316
        %vm419 = vcmp.eq.s32.totalorder %v226, %v316
        %vm420 = vcmp.eq.s32.totalorder %v227, %v316
        %vm421 = vcmp.eq.s32.totalorder %v224, %v319
        %vm422 = vcmp.eq.s32.totalorder %v225, %v319
        %vm423 = vcmp.eq.s32.totalorder %v226, %v319
        %vm424 = vcmp.eq.s32.totalorder %v227, %v319
        %vm425 = vcmp.eq.s32.totalorder %v224, %v322
        %vm426 = vcmp.eq.s32.totalorder %v225, %v322
        %vm427 = vcmp.eq.s32.totalorder %v226, %v322
        %vm428 = vcmp.eq.s32.totalorder %v227, %v322
        %vm429 = vcmp.eq.s32.totalorder %v224, %v325
        %vm430 = vcmp.eq.s32.totalorder %v225, %v325
        %vm431 = vcmp.eq.s32.totalorder %v226, %v325
        %vm432 = vcmp.eq.s32.totalorder %v227, %v325
        %vm433 = vcmp.eq.s32.totalorder %v224, %v328
        %vm434 = vcmp.eq.s32.totalorder %v225, %v328
        %vm435 = vcmp.eq.s32.totalorder %v226, %v328
        %vm436 = vcmp.eq.s32.totalorder %v227, %v328
        %vm437 = vcmp.eq.s32.totalorder %v224, %v331
        %vm438 = vcmp.eq.s32.totalorder %v225, %v331
        %vm439 = vcmp.eq.s32.totalorder %v226, %v331
        %vm440 = vcmp.eq.s32.totalorder %v227, %v331
        %vm441 = vcmp.eq.s32.totalorder %v224, %v334
        %vm442 = vcmp.eq.s32.totalorder %v225, %v334
        %vm443 = vcmp.eq.s32.totalorder %v226, %v334
        %vm444 = vcmp.eq.s32.totalorder %v227, %v334
        %vm445 = vcmp.eq.s32.totalorder %v224, %v337
        %vm446 = vcmp.eq.s32.totalorder %v225, %v337
        %vm447 = vcmp.eq.s32.totalorder %v226, %v337
        %vm448 = vcmp.eq.s32.totalorder %v227, %v337
        %vm449 = vcmp.eq.s32.totalorder %v224, %v340
        %vm450 = vcmp.eq.s32.totalorder %v225, %v340
        %vm451 = vcmp.eq.s32.totalorder %v226, %v340
        %vm452 = vcmp.eq.s32.totalorder %v227, %v340
        %vm453 = vcmp.eq.s32.totalorder %v224, %v343
        %vm454 = vcmp.eq.s32.totalorder %v225, %v343
        %vm455 = vcmp.eq.s32.totalorder %v226, %v343
        %vm456 = vcmp.eq.s32.totalorder %v227, %v343
        %vm457 = vcmp.eq.s32.totalorder %v224, %v346
        %vm458 = vcmp.eq.s32.totalorder %v225, %v346
        %vm459 = vcmp.eq.s32.totalorder %v226, %v346
        %vm460 = vcmp.eq.s32.totalorder %v227, %v346
        %vm461 = vcmp.eq.s32.totalorder %v224, %v349
        %vm462 = vcmp.eq.s32.totalorder %v225, %v349
        %vm463 = vcmp.eq.s32.totalorder %v226, %v349
        %vm464 = vcmp.eq.s32.totalorder %v227, %v349
        %vm465 = vcmp.eq.s32.totalorder %v224, %v352
        %vm466 = vcmp.eq.s32.totalorder %v225, %v352
        %vm467 = vcmp.eq.s32.totalorder %v226, %v352
        %vm468 = vcmp.eq.s32.totalorder %v227, %v352
        %vm469 = vcmp.eq.s32.totalorder %v224, %v355
        %vm470 = vcmp.eq.s32.totalorder %v225, %v355
        %vm471 = vcmp.eq.s32.totalorder %v226, %v355
        %vm472 = vcmp.eq.s32.totalorder %v227, %v355
        %vm473 = vcmp.eq.s32.totalorder %v224, %v358
        %vm474 = vcmp.eq.s32.totalorder %v225, %v358
        %vm475 = vcmp.eq.s32.totalorder %v226, %v358
        %vm476 = vcmp.eq.s32.totalorder %v227, %v358
        %vm477 = vcmp.eq.s32.totalorder %v224, %v361
        %vm478 = vcmp.eq.s32.totalorder %v225, %v361
        %vm479 = vcmp.eq.s32.totalorder %v226, %v361
        %vm480 = vcmp.eq.s32.totalorder %v227, %v361
        %vm481 = vcmp.eq.s32.totalorder %v224, %v364
        %vm482 = vcmp.eq.s32.totalorder %v225, %v364
        %vm483 = vcmp.eq.s32.totalorder %v226, %v364
        %vm484 = vcmp.eq.s32.totalorder %v227, %v364
        %vm485 = vcmp.eq.s32.totalorder %v224, %v367
        %vm486 = vcmp.eq.s32.totalorder %v225, %v367
        %vm487 = vcmp.eq.s32.totalorder %v226, %v367
        %vm488 = vcmp.eq.s32.totalorder %v227, %v367
        %vm489 = vcmp.eq.s32.totalorder %v224, %v370
        %vm490 = vcmp.eq.s32.totalorder %v225, %v370
        %vm491 = vcmp.eq.s32.totalorder %v226, %v370
        %vm492 = vcmp.eq.s32.totalorder %v227, %v370
        %vm493 = vcmp.eq.s32.totalorder %v224, %v373
        %vm494 = vcmp.eq.s32.totalorder %v225, %v373
        %vm495 = vcmp.eq.s32.totalorder %v226, %v373
        %vm496 = vcmp.eq.s32.totalorder %v227, %v373
        %vm497 = vcmp.eq.s32.totalorder %v224, %v376
        %vm498 = vcmp.eq.s32.totalorder %v225, %v376
        %vm499 = vcmp.eq.s32.totalorder %v226, %v376
        %vm500 = vcmp.eq.s32.totalorder %v227, %v376
        %vm501 = vcmp.eq.s32.totalorder %v224, %v379
        %vm502 = vcmp.eq.s32.totalorder %v225, %v379
        %vm503 = vcmp.eq.s32.totalorder %v226, %v379
        %vm504 = vcmp.eq.s32.totalorder %v227, %v379
        %vm505 = vcmp.eq.s32.totalorder %v224, %v382
        %vm506 = vcmp.eq.s32.totalorder %v225, %v382
        %vm507 = vcmp.eq.s32.totalorder %v226, %v382
        %vm508 = vcmp.eq.s32.totalorder %v227, %v382
        %vm509 = vcmp.eq.s32.totalorder %v224, %v385
        %vm510 = vcmp.eq.s32.totalorder %v225, %v385
        %vm511 = vcmp.eq.s32.totalorder %v226, %v385
        %vm512 = vcmp.eq.s32.totalorder %v227, %v385
        %vm513 = vcmp.eq.s32.totalorder %v224, %v388
        %vm514 = vcmp.eq.s32.totalorder %v225, %v388
        %vm515 = vcmp.eq.s32.totalorder %v226, %v388
        %vm516 = vcmp.eq.s32.totalorder %v227, %v388
        %v517 = vld [vmem:[%s213] sm:$0xff]
        %v518 = vld [vmem:[%s213 + $0x8] sm:$0xff]
        %v519 = vld [vmem:[%s213 + $0x10] sm:$0xff]
        %v520 = vld [vmem:[%s213 + $0x18] sm:$0xff]
        %v521 = vld [vmem:[%s213 + $0x20] sm:$0xff]
        %v522 = vld [vmem:[%s213 + $0x28] sm:$0xff]
        %v523 = vld [vmem:[%s213 + $0x30] sm:$0xff]
        %v524 = vld [vmem:[%s213 + $0x38] sm:$0xff]
        %v525 = vld [vmem:[%s213 + $0x40] sm:$0xff]
        %v526 = vld [vmem:[%s213 + $0x48] sm:$0xff]
        %v527 = vld [vmem:[%s213 + $0x50] sm:$0xff]
        %v528 = vld [vmem:[%s213 + $0x58] sm:$0xff]
        %v529 = vld [vmem:[%s213 + $0x60] sm:$0xff]
        %v530 = vld [vmem:[%s213 + $0x68] sm:$0xff]
        %v531 = vld [vmem:[%s213 + $0x70] sm:$0xff]
        %v532 = vld [vmem:[%s213 + $0x78] sm:$0xff]
        %v533 = vld [vmem:[%s213 + $0x80] sm:$0xff]
        %v534 = vld [vmem:[%s213 + $0x88] sm:$0xff]
        %v535 = vld [vmem:[%s213 + $0x90] sm:$0xff]
        %v536 = vld [vmem:[%s213 + $0x98] sm:$0xff]
        %v537 = vld [vmem:[%s213 + $0xa0] sm:$0xff]
        %v538 = vld [vmem:[%s213 + $0xa8] sm:$0xff]
        %v539 = vld [vmem:[%s213 + $0xb0] sm:$0xff]
        %v540 = vld [vmem:[%s213 + $0xb8] sm:$0xff]
        %v541 = vld [vmem:[%s213 + $0xc0] sm:$0xff]
        %v542 = vld [vmem:[%s213 + $0xc8] sm:$0xff]
        %v543 = vld [vmem:[%s213 + $0xd0] sm:$0xff]
        %v544 = vld [vmem:[%s213 + $0xd8] sm:$0xff]
        %v545 = vld [vmem:[%s213 + $0xe0] sm:$0xff]
        %v546 = vld [vmem:[%s213 + $0xe8] sm:$0xff]
        %v547 = vld [vmem:[%s213 + $0xf0] sm:$0xff]
        %v548 = vld [vmem:[%s213 + $0xf8] sm:$0xff]
        %550 = vset.pattern.permute.xlu0 0
        %551 = vperm.xlu0 %550, %v517
        %v552 = vpop.permute.xlu0 %551
        %555 = vset.pattern.permute.xlu0 0
        %556 = vperm.xlu0 %555, %v518
        %v557 = vpop.permute.xlu0 %556
        %560 = vset.pattern.permute.xlu0 0
        %561 = vperm.xlu0 %560, %v519
        %v562 = vpop.permute.xlu0 %561
        %565 = vset.pattern.permute.xlu0 0
        %566 = vperm.xlu0 %565, %v520
        %v567 = vpop.permute.xlu0 %566
        %570 = vset.pattern.permute.xlu0 0
        %571 = vperm.xlu0 %570, %v521
        %v572 = vpop.permute.xlu0 %571
        %575 = vset.pattern.permute.xlu0 0
        %576 = vperm.xlu0 %575, %v522
        %v577 = vpop.permute.xlu0 %576
        %580 = vset.pattern.permute.xlu0 0
        %581 = vperm.xlu0 %580, %v523
        %v582 = vpop.permute.xlu0 %581
        %585 = vset.pattern.permute.xlu0 0
        %586 = vperm.xlu0 %585, %v524
        %v587 = vpop.permute.xlu0 %586
        %590 = vset.pattern.permute.xlu0 0
        %591 = vperm.xlu0 %590, %v525
        %v592 = vpop.permute.xlu0 %591
        %595 = vset.pattern.permute.xlu0 0
        %596 = vperm.xlu0 %595, %v526
        %v597 = vpop.permute.xlu0 %596
        %600 = vset.pattern.permute.xlu0 0
        %601 = vperm.xlu0 %600, %v527
        %v602 = vpop.permute.xlu0 %601
        %605 = vset.pattern.permute.xlu0 0
        %606 = vperm.xlu0 %605, %v528
        %v607 = vpop.permute.xlu0 %606
        %610 = vset.pattern.permute.xlu0 0
        %611 = vperm.xlu0 %610, %v529
        %v612 = vpop.permute.xlu0 %611
        %615 = vset.pattern.permute.xlu0 0
        %616 = vperm.xlu0 %615, %v530
        %v617 = vpop.permute.xlu0 %616
        %620 = vset.pattern.permute.xlu0 0
        %621 = vperm.xlu0 %620, %v531
        %v622 = vpop.permute.xlu0 %621
        %625 = vset.pattern.permute.xlu0 0
        %626 = vperm.xlu0 %625, %v532
        %v627 = vpop.permute.xlu0 %626
        %630 = vset.pattern.permute.xlu0 0
        %631 = vperm.xlu0 %630, %v533
        %v632 = vpop.permute.xlu0 %631
        %635 = vset.pattern.permute.xlu0 0
        %636 = vperm.xlu0 %635, %v534
        %v637 = vpop.permute.xlu0 %636
        %640 = vset.pattern.permute.xlu0 0
        %641 = vperm.xlu0 %640, %v535
        %v642 = vpop.permute.xlu0 %641
        %645 = vset.pattern.permute.xlu0 0
        %646 = vperm.xlu0 %645, %v536
        %v647 = vpop.permute.xlu0 %646
        %650 = vset.pattern.permute.xlu0 0
        %651 = vperm.xlu0 %650, %v537
        %v652 = vpop.permute.xlu0 %651
        %655 = vset.pattern.permute.xlu0 0
        %656 = vperm.xlu0 %655, %v538
        %v657 = vpop.permute.xlu0 %656
        %660 = vset.pattern.permute.xlu0 0
        %661 = vperm.xlu0 %660, %v539
        %v662 = vpop.permute.xlu0 %661
        %665 = vset.pattern.permute.xlu0 0
        %666 = vperm.xlu0 %665, %v540
        %v667 = vpop.permute.xlu0 %666
        %670 = vset.pattern.permute.xlu0 0
        %671 = vperm.xlu0 %670, %v541
        %v672 = vpop.permute.xlu0 %671
        %675 = vset.pattern.permute.xlu0 0
        %676 = vperm.xlu0 %675, %v542
        %v677 = vpop.permute.xlu0 %676
        %680 = vset.pattern.permute.xlu0 0
        %681 = vperm.xlu0 %680, %v543
        %v682 = vpop.permute.xlu0 %681
        %685 = vset.pattern.permute.xlu0 0
        %686 = vperm.xlu0 %685, %v544
        %v687 = vpop.permute.xlu0 %686
        %690 = vset.pattern.permute.xlu0 0
        %691 = vperm.xlu0 %690, %v545
        %v692 = vpop.permute.xlu0 %691
        %695 = vset.pattern.permute.xlu0 0
        %696 = vperm.xlu0 %695, %v546
        %v697 = vpop.permute.xlu0 %696
        %700 = vset.pattern.permute.xlu0 0
        %701 = vperm.xlu0 %700, %v547
        %v702 = vpop.permute.xlu0 %701
        %705 = vset.pattern.permute.xlu0 0
        %706 = vperm.xlu0 %705, %v548
        %v707 = vpop.permute.xlu0 %706
        %v709 = vsel %vm389, %v552, 0.0
        %v710 = vsel %vm390, %v552, 0.0
        %v711 = vsel %vm391, %v552, 0.0
        %v712 = vsel %vm392, %v552, 0.0
        %v713 = vsel %vm393, %v557, 0.0
        %v714 = vsel %vm394, %v557, 0.0
        %v715 = vsel %vm395, %v557, 0.0
        %v716 = vsel %vm396, %v557, 0.0
        %v717 = vsel %vm397, %v562, 0.0
        %v718 = vsel %vm398, %v562, 0.0
        %v719 = vsel %vm399, %v562, 0.0
        %v720 = vsel %vm400, %v562, 0.0
        %v721 = vsel %vm401, %v567, 0.0
        %v722 = vsel %vm402, %v567, 0.0
        %v723 = vsel %vm403, %v567, 0.0
        %v724 = vsel %vm404, %v567, 0.0
        %v725 = vsel %vm405, %v572, 0.0
        %v726 = vsel %vm406, %v572, 0.0
        %v727 = vsel %vm407, %v572, 0.0
        %v728 = vsel %vm408, %v572, 0.0
        %v729 = vsel %vm409, %v577, 0.0
        %v730 = vsel %vm410, %v577, 0.0
        %v731 = vsel %vm411, %v577, 0.0
        %v732 = vsel %vm412, %v577, 0.0
        %v733 = vsel %vm413, %v582, 0.0
        %v734 = vsel %vm414, %v582, 0.0
        %v735 = vsel %vm415, %v582, 0.0
        %v736 = vsel %vm416, %v582, 0.0
        %v737 = vsel %vm417, %v587, 0.0
        %v738 = vsel %vm418, %v587, 0.0
        %v739 = vsel %vm419, %v587, 0.0
        %v740 = vsel %vm420, %v587, 0.0
        %v741 = vsel %vm421, %v592, 0.0
        %v742 = vsel %vm422, %v592, 0.0
        %v743 = vsel %vm423, %v592, 0.0
        %v744 = vsel %vm424, %v592, 0.0
        %v745 = vsel %vm425, %v597, 0.0
        %v746 = vsel %vm426, %v597, 0.0
        %v747 = vsel %vm427, %v597, 0.0
        %v748 = vsel %vm428, %v597, 0.0
        %v749 = vsel %vm429, %v602, 0.0
        %v750 = vsel %vm430, %v602, 0.0
        %v751 = vsel %vm431, %v602, 0.0
        %v752 = vsel %vm432, %v602, 0.0
        %v753 = vsel %vm433, %v607, 0.0
        %v754 = vsel %vm434, %v607, 0.0
        %v755 = vsel %vm435, %v607, 0.0
        %v756 = vsel %vm436, %v607, 0.0
        %v757 = vsel %vm437, %v612, 0.0
        %v758 = vsel %vm438, %v612, 0.0
        %v759 = vsel %vm439, %v612, 0.0
        %v760 = vsel %vm440, %v612, 0.0
        %v761 = vsel %vm441, %v617, 0.0
        %v762 = vsel %vm442, %v617, 0.0
        %v763 = vsel %vm443, %v617, 0.0
        %v764 = vsel %vm444, %v617, 0.0
        %v765 = vsel %vm445, %v622, 0.0
        %v766 = vsel %vm446, %v622, 0.0
        %v767 = vsel %vm447, %v622, 0.0
        %v768 = vsel %vm448, %v622, 0.0
        %v769 = vsel %vm449, %v627, 0.0
        %v770 = vsel %vm450, %v627, 0.0
        %v771 = vsel %vm451, %v627, 0.0
        %v772 = vsel %vm452, %v627, 0.0
        %v773 = vsel %vm453, %v632, 0.0
        %v774 = vsel %vm454, %v632, 0.0
        %v775 = vsel %vm455, %v632, 0.0
        %v776 = vsel %vm456, %v632, 0.0
        %v777 = vsel %vm457, %v637, 0.0
        %v778 = vsel %vm458, %v637, 0.0
        %v779 = vsel %vm459, %v637, 0.0
        %v780 = vsel %vm460, %v637, 0.0
        %v781 = vsel %vm461, %v642, 0.0
        %v782 = vsel %vm462, %v642, 0.0
        %v783 = vsel %vm463, %v642, 0.0
        %v784 = vsel %vm464, %v642, 0.0
        %v785 = vsel %vm465, %v647, 0.0
        %v786 = vsel %vm466, %v647, 0.0
        %v787 = vsel %vm467, %v647, 0.0
        %v788 = vsel %vm468, %v647, 0.0
        %v789 = vsel %vm469, %v652, 0.0
        %v790 = vsel %vm470, %v652, 0.0
        %v791 = vsel %vm471, %v652, 0.0
        %v792 = vsel %vm472, %v652, 0.0
        %v793 = vsel %vm473, %v657, 0.0
        %v794 = vsel %vm474, %v657, 0.0
        %v795 = vsel %vm475, %v657, 0.0
        %v796 = vsel %vm476, %v657, 0.0
        %v797 = vsel %vm477, %v662, 0.0
        %v798 = vsel %vm478, %v662, 0.0
        %v799 = vsel %vm479, %v662, 0.0
        %v800 = vsel %vm480, %v662, 0.0
        %v801 = vsel %vm481, %v667, 0.0
        %v802 = vsel %vm482, %v667, 0.0
        %v803 = vsel %vm483, %v667, 0.0
        %v804 = vsel %vm484, %v667, 0.0
        %v805 = vsel %vm485, %v672, 0.0
        %v806 = vsel %vm486, %v672, 0.0
        %v807 = vsel %vm487, %v672, 0.0
        %v808 = vsel %vm488, %v672, 0.0
        %v809 = vsel %vm489, %v677, 0.0
        %v810 = vsel %vm490, %v677, 0.0
        %v811 = vsel %vm491, %v677, 0.0
        %v812 = vsel %vm492, %v677, 0.0
        %v813 = vsel %vm493, %v682, 0.0
        %v814 = vsel %vm494, %v682, 0.0
        %v815 = vsel %vm495, %v682, 0.0
        %v816 = vsel %vm496, %v682, 0.0
        %v817 = vsel %vm497, %v687, 0.0
        %v818 = vsel %vm498, %v687, 0.0
        %v819 = vsel %vm499, %v687, 0.0
        %v820 = vsel %vm500, %v687, 0.0
        %v821 = vsel %vm501, %v692, 0.0
        %v822 = vsel %vm502, %v692, 0.0
        %v823 = vsel %vm503, %v692, 0.0
        %v824 = vsel %vm504, %v692, 0.0
        %v825 = vsel %vm505, %v697, 0.0
        %v826 = vsel %vm506, %v697, 0.0
        %v827 = vsel %vm507, %v697, 0.0
        %v828 = vsel %vm508, %v697, 0.0
        %v829 = vsel %vm509, %v702, 0.0
        %v830 = vsel %vm510, %v702, 0.0
        %v831 = vsel %vm511, %v702, 0.0
        %v832 = vsel %vm512, %v702, 0.0
        %v833 = vsel %vm513, %v707, 0.0
        %v834 = vsel %vm514, %v707, 0.0
        %v835 = vsel %vm515, %v707, 0.0
        %v836 = vsel %vm516, %v707, 0.0
        %v837 = vmax.f32 %v709, %v713
        %v838 = vmax.f32 %v837, %v717
        %v839 = vmax.f32 %v838, %v721
        %v840 = vmax.f32 %v839, %v725
        %v841 = vmax.f32 %v840, %v729
        %v842 = vmax.f32 %v841, %v733
        %v843 = vmax.f32 %v842, %v737
        %v844 = vmax.f32 %v843, %v741
        %v845 = vmax.f32 %v844, %v745
        %v846 = vmax.f32 %v845, %v749
        %v847 = vmax.f32 %v846, %v753
        %v848 = vmax.f32 %v847, %v757
        %v849 = vmax.f32 %v848, %v761
        %v850 = vmax.f32 %v849, %v765
        %v851 = vmax.f32 %v850, %v769
        %v852 = vmax.f32 %v851, %v773
        %v853 = vmax.f32 %v852, %v777
        %v854 = vmax.f32 %v853, %v781
        %v855 = vmax.f32 %v854, %v785
        %v856 = vmax.f32 %v855, %v789
        %v857 = vmax.f32 %v856, %v793
        %v858 = vmax.f32 %v857, %v797
        %v859 = vmax.f32 %v858, %v801
        %v860 = vmax.f32 %v859, %v805
        %v861 = vmax.f32 %v860, %v809
        %v862 = vmax.f32 %v861, %v813
        %v863 = vmax.f32 %v862, %v817
        %v864 = vmax.f32 %v863, %v821
        %v865 = vmax.f32 %v864, %v825
        %v866 = vmax.f32 %v865, %v829
        %v867 = vmax.f32 %v866, %v833
        %v868 = vrot.slane %v867, 4
        %v869 = vmax.f32 %v867, %v868
        %v870 = vrot.slane %v869, 2
        %v871 = vmax.f32 %v869, %v870
        %v872 = vrot.slane %v871, 1
        %v873 = vmax.f32 %v871, %v872
        %v874 = vmax.f32 %v710, %v714
        %v875 = vmax.f32 %v874, %v718
        %v876 = vmax.f32 %v875, %v722
        %v877 = vmax.f32 %v876, %v726
        %v878 = vmax.f32 %v877, %v730
        %v879 = vmax.f32 %v878, %v734
        %v880 = vmax.f32 %v879, %v738
        %v881 = vmax.f32 %v880, %v742
        %v882 = vmax.f32 %v881, %v746
        %v883 = vmax.f32 %v882, %v750
        %v884 = vmax.f32 %v883, %v754
        %v885 = vmax.f32 %v884, %v758
        %v886 = vmax.f32 %v885, %v762
        %v887 = vmax.f32 %v886, %v766
        %v888 = vmax.f32 %v887, %v770
        %v889 = vmax.f32 %v888, %v774
        %v890 = vmax.f32 %v889, %v778
        %v891 = vmax.f32 %v890, %v782
        %v892 = vmax.f32 %v891, %v786
        %v893 = vmax.f32 %v892, %v790
        %v894 = vmax.f32 %v893, %v794
        %v895 = vmax.f32 %v894, %v798
        %v896 = vmax.f32 %v895, %v802
        %v897 = vmax.f32 %v896, %v806
        %v898 = vmax.f32 %v897, %v810
        %v899 = vmax.f32 %v898, %v814
        %v900 = vmax.f32 %v899, %v818
        %v901 = vmax.f32 %v900, %v822
        %v902 = vmax.f32 %v901, %v826
        %v903 = vmax.f32 %v902, %v830
        %v904 = vmax.f32 %v903, %v834
        %v905 = vrot.slane %v904, 4
        %v906 = vmax.f32 %v904, %v905
        %v907 = vrot.slane %v906, 2
        %v908 = vmax.f32 %v906, %v907
        %v909 = vrot.slane %v908, 1
        %v910 = vmax.f32 %v908, %v909
        %v911 = vmax.f32 %v711, %v715
        %v912 = vmax.f32 %v911, %v719
        %v913 = vmax.f32 %v912, %v723
        %v914 = vmax.f32 %v913, %v727
        %v915 = vmax.f32 %v914, %v731
        %v916 = vmax.f32 %v915, %v735
        %v917 = vmax.f32 %v916, %v739
        %v918 = vmax.f32 %v917, %v743
        %v919 = vmax.f32 %v918, %v747
        %v920 = vmax.f32 %v919, %v751
        %v921 = vmax.f32 %v920, %v755
        %v922 = vmax.f32 %v921, %v759
        %v923 = vmax.f32 %v922, %v763
        %v924 = vmax.f32 %v923, %v767
        %v925 = vmax.f32 %v924, %v771
        %v926 = vmax.f32 %v925, %v775
        %v927 = vmax.f32 %v926, %v779
        %v928 = vmax.f32 %v927, %v783
        %v929 = vmax.f32 %v928, %v787
        %v930 = vmax.f32 %v929, %v791
        %v931 = vmax.f32 %v930, %v795
        %v932 = vmax.f32 %v931, %v799
        %v933 = vmax.f32 %v932, %v803
        %v934 = vmax.f32 %v933, %v807
        %v935 = vmax.f32 %v934, %v811
        %v936 = vmax.f32 %v935, %v815
        %v937 = vmax.f32 %v936, %v819
        %v938 = vmax.f32 %v937, %v823
        %v939 = vmax.f32 %v938, %v827
        %v940 = vmax.f32 %v939, %v831
        %v941 = vmax.f32 %v940, %v835
        %v942 = vrot.slane %v941, 4
        %v943 = vmax.f32 %v941, %v942
        %v944 = vrot.slane %v943, 2
        %v945 = vmax.f32 %v943, %v944
        %v946 = vrot.slane %v945, 1
        %v947 = vmax.f32 %v945, %v946
        %v948 = vmax.f32 %v712, %v716
        %v949 = vmax.f32 %v948, %v720
        %v950 = vmax.f32 %v949, %v724
        %v951 = vmax.f32 %v950, %v728
        %v952 = vmax.f32 %v951, %v732
        %v953 = vmax.f32 %v952, %v736
        %v954 = vmax.f32 %v953, %v740
        %v955 = vmax.f32 %v954, %v744
        %v956 = vmax.f32 %v955, %v748
        %v957 = vmax.f32 %v956, %v752
        %v958 = vmax.f32 %v957, %v756
        %v959 = vmax.f32 %v958, %v760
        %v960 = vmax.f32 %v959, %v764
        %v961 = vmax.f32 %v960, %v768
        %v962 = vmax.f32 %v961, %v772
        %v963 = vmax.f32 %v962, %v776
        %v964 = vmax.f32 %v963, %v780
        %v965 = vmax.f32 %v964, %v784
        %v966 = vmax.f32 %v965, %v788
        %v967 = vmax.f32 %v966, %v792
        %v968 = vmax.f32 %v967, %v796
        %v969 = vmax.f32 %v968, %v800
        %v970 = vmax.f32 %v969, %v804
        %v971 = vmax.f32 %v970, %v808
        %v972 = vmax.f32 %v971, %v812
        %v973 = vmax.f32 %v972, %v816
        %v974 = vmax.f32 %v973, %v820
        %v975 = vmax.f32 %v974, %v824
        %v976 = vmax.f32 %v975, %v828
        %v977 = vmax.f32 %v976, %v832
        %v978 = vmax.f32 %v977, %v836
        %v979 = vrot.slane %v978, 4
        %v980 = vmax.f32 %v978, %v979
        %v981 = vrot.slane %v980, 2
        %v982 = vmax.f32 %v980, %v981
        %v983 = vrot.slane %v982, 1
        %v984 = vmax.f32 %v982, %v983
        %v985 = vld [vmem:[%s194] ss:$4 sm:$0xf]
        %v990 = vcombine.low %v873, %v910
        %v991 = vcombine.low %v947, %v984
        %v993 = vunpack.c.l.s4 1966171168
        %v994 = vunpack.c.0.s8 %v993
        %v995 = vlaneseq
        %v996 = vshrl.u32 %v995, 7
        %v997 = vsub.s32 %v994, %v996
        %v998 = vrot.slane %v990, %v997
        %v1000 = vunpack.c.l.s4 1966171168
        %v1001 = vunpack.c.0.s8 %v1000
        %v1002 = vlaneseq
        %v1003 = vshrl.u32 %v1002, 7
        %v1004 = vsub.s32 %v1001, %v1003
        %v1005 = vrot.slane %v991, %v1004
        %v1006 = vcombine.low %v998, %v1005
        %v1008 = vunpack.c.l.s4 1966171168
        %v1009 = vunpack.c.0.s8 %v1008
        %v1010 = vlaneseq
        %v1011 = vshrl.u32 %v1010, 7
        %v1012 = vsub.s32 %v1009, %v1011
        %v1013 = vrot.slane %v1006, %v1012
        %v1015 = vmax.f32 %v985, %v1013
        %v1016 = vlaneseq
        %vm1017 = vcmp.ge.s32.totalorder %v1016, 0
        %vm1018 = vcmp.lt.s32.totalorder %v1016, 512
        %vm1019 = vmand %vm1017, %vm1018
        %1020 = vst.msk [vmem:[%s194] ss:$4 sm:$0xf] %vm1019, %v1015
        %1021 = vset.pattern.permute.xlu0 1
        %1022 = vperm.xlu0 %1021, %v517
        %v1023 = vpop.permute.xlu0 %1022
        %1025 = vset.pattern.permute.xlu0 1
        %1026 = vperm.xlu0 %1025, %v518
        %v1027 = vpop.permute.xlu0 %1026
        %1029 = vset.pattern.permute.xlu0 1
        %1030 = vperm.xlu0 %1029, %v519
        %v1031 = vpop.permute.xlu0 %1030
        %1033 = vset.pattern.permute.xlu0 1
        %1034 = vperm.xlu0 %1033, %v520
        %v1035 = vpop.permute.xlu0 %1034
        %1037 = vset.pattern.permute.xlu0 1
        %1038 = vperm.xlu0 %1037, %v521
        %v1039 = vpop.permute.xlu0 %1038
        %1041 = vset.pattern.permute.xlu0 1
        %1042 = vperm.xlu0 %1041, %v522
        %v1043 = vpop.permute.xlu0 %1042
        %1045 = vset.pattern.permute.xlu0 1
        %1046 = vperm.xlu0 %1045, %v523
        %v1047 = vpop.permute.xlu0 %1046
        %1049 = vset.pattern.permute.xlu0 1
        %1050 = vperm.xlu0 %1049, %v524
        %v1051 = vpop.permute.xlu0 %1050
        %1053 = vset.pattern.permute.xlu0 1
        %1054 = vperm.xlu0 %1053, %v525
        %v1055 = vpop.permute.xlu0 %1054
        %1057 = vset.pattern.permute.xlu0 1
        %1058 = vperm.xlu0 %1057, %v526
        %v1059 = vpop.permute.xlu0 %1058
        %1061 = vset.pattern.permute.xlu0 1
        %1062 = vperm.xlu0 %1061, %v527
        %v1063 = vpop.permute.xlu0 %1062
        %1065 = vset.pattern.permute.xlu0 1
        %1066 = vperm.xlu0 %1065, %v528
        %v1067 = vpop.permute.xlu0 %1066
        %1069 = vset.pattern.permute.xlu0 1
        %1070 = vperm.xlu0 %1069, %v529
        %v1071 = vpop.permute.xlu0 %1070
        %1073 = vset.pattern.permute.xlu0 1
        %1074 = vperm.xlu0 %1073, %v530
        %v1075 = vpop.permute.xlu0 %1074
        %1077 = vset.pattern.permute.xlu0 1
        %1078 = vperm.xlu0 %1077, %v531
        %v1079 = vpop.permute.xlu0 %1078
        %1081 = vset.pattern.permute.xlu0 1
        %1082 = vperm.xlu0 %1081, %v532
        %v1083 = vpop.permute.xlu0 %1082
        %1085 = vset.pattern.permute.xlu0 1
        %1086 = vperm.xlu0 %1085, %v533
        %v1087 = vpop.permute.xlu0 %1086
        %1089 = vset.pattern.permute.xlu0 1
        %1090 = vperm.xlu0 %1089, %v534
        %v1091 = vpop.permute.xlu0 %1090
        %1093 = vset.pattern.permute.xlu0 1
        %1094 = vperm.xlu0 %1093, %v535
        %v1095 = vpop.permute.xlu0 %1094
        %1097 = vset.pattern.permute.xlu0 1
        %1098 = vperm.xlu0 %1097, %v536
        %v1099 = vpop.permute.xlu0 %1098
        %1101 = vset.pattern.permute.xlu0 1
        %1102 = vperm.xlu0 %1101, %v537
        %v1103 = vpop.permute.xlu0 %1102
        %1105 = vset.pattern.permute.xlu0 1
        %1106 = vperm.xlu0 %1105, %v538
        %v1107 = vpop.permute.xlu0 %1106
        %1109 = vset.pattern.permute.xlu0 1
        %1110 = vperm.xlu0 %1109, %v539
        %v1111 = vpop.permute.xlu0 %1110
        %1113 = vset.pattern.permute.xlu0 1
        %1114 = vperm.xlu0 %1113, %v540
        %v1115 = vpop.permute.xlu0 %1114
        %1117 = vset.pattern.permute.xlu0 1
        %1118 = vperm.xlu0 %1117, %v541
        %v1119 = vpop.permute.xlu0 %1118
        %1121 = vset.pattern.permute.xlu0 1
        %1122 = vperm.xlu0 %1121, %v542
        %v1123 = vpop.permute.xlu0 %1122
        %1125 = vset.pattern.permute.xlu0 1
        %1126 = vperm.xlu0 %1125, %v543
        %v1127 = vpop.permute.xlu0 %1126
        %1129 = vset.pattern.permute.xlu0 1
        %1130 = vperm.xlu0 %1129, %v544
        %v1131 = vpop.permute.xlu0 %1130
        %1133 = vset.pattern.permute.xlu0 1
        %1134 = vperm.xlu0 %1133, %v545
        %v1135 = vpop.permute.xlu0 %1134
        %1137 = vset.pattern.permute.xlu0 1
        %1138 = vperm.xlu0 %1137, %v546
        %v1139 = vpop.permute.xlu0 %1138
        %1141 = vset.pattern.permute.xlu0 1
        %1142 = vperm.xlu0 %1141, %v547
        %v1143 = vpop.permute.xlu0 %1142
        %1145 = vset.pattern.permute.xlu0 1
        %1146 = vperm.xlu0 %1145, %v548
        %v1147 = vpop.permute.xlu0 %1146
        %v1149 = vsel %vm389, %v1023, 0.0
        %v1150 = vsel %vm390, %v1023, 0.0
        %v1151 = vsel %vm391, %v1023, 0.0
        %v1152 = vsel %vm392, %v1023, 0.0
        %v1153 = vsel %vm393, %v1027, 0.0
        %v1154 = vsel %vm394, %v1027, 0.0
        %v1155 = vsel %vm395, %v1027, 0.0
        %v1156 = vsel %vm396, %v1027, 0.0
        %v1157 = vsel %vm397, %v1031, 0.0
        %v1158 = vsel %vm398, %v1031, 0.0
        %v1159 = vsel %vm399, %v1031, 0.0
        %v1160 = vsel %vm400, %v1031, 0.0
        %v1161 = vsel %vm401, %v1035, 0.0
        %v1162 = vsel %vm402, %v1035, 0.0
        %v1163 = vsel %vm403, %v1035, 0.0
        %v1164 = vsel %vm404, %v1035, 0.0
        %v1165 = vsel %vm405, %v1039, 0.0
        %v1166 = vsel %vm406, %v1039, 0.0
        %v1167 = vsel %vm407, %v1039, 0.0
        %v1168 = vsel %vm408, %v1039, 0.0
        %v1169 = vsel %vm409, %v1043, 0.0
        %v1170 = vsel %vm410, %v1043, 0.0
        %v1171 = vsel %vm411, %v1043, 0.0
        %v1172 = vsel %vm412, %v1043, 0.0
        %v1173 = vsel %vm413, %v1047, 0.0
        %v1174 = vsel %vm414, %v1047, 0.0
        %v1175 = vsel %vm415, %v1047, 0.0
        %v1176 = vsel %vm416, %v1047, 0.0
        %v1177 = vsel %vm417, %v1051, 0.0
        %v1178 = vsel %vm418, %v1051, 0.0
        %v1179 = vsel %vm419, %v1051, 0.0
        %v1180 = vsel %vm420, %v1051, 0.0
        %v1181 = vsel %vm421, %v1055, 0.0
        %v1182 = vsel %vm422, %v1055, 0.0
        %v1183 = vsel %vm423, %v1055, 0.0
        %v1184 = vsel %vm424, %v1055, 0.0
        %v1185 = vsel %vm425, %v1059, 0.0
        %v1186 = vsel %vm426, %v1059, 0.0
        %v1187 = vsel %vm427, %v1059, 0.0
        %v1188 = vsel %vm428, %v1059, 0.0
        %v1189 = vsel %vm429, %v1063, 0.0
        %v1190 = vsel %vm430, %v1063, 0.0
        %v1191 = vsel %vm431, %v1063, 0.0
        %v1192 = vsel %vm432, %v1063, 0.0
        %v1193 = vsel %vm433, %v1067, 0.0
        %v1194 = vsel %vm434, %v1067, 0.0
        %v1195 = vsel %vm435, %v1067, 0.0
        %v1196 = vsel %vm436, %v1067, 0.0
        %v1197 = vsel %vm437, %v1071, 0.0
        %v1198 = vsel %vm438, %v1071, 0.0
        %v1199 = vsel %vm439, %v1071, 0.0
        %v1200 = vsel %vm440, %v1071, 0.0
        %v1201 = vsel %vm441, %v1075, 0.0
        %v1202 = vsel %vm442, %v1075, 0.0
        %v1203 = vsel %vm443, %v1075, 0.0
        %v1204 = vsel %vm444, %v1075, 0.0
        %v1205 = vsel %vm445, %v1079, 0.0
        %v1206 = vsel %vm446, %v1079, 0.0
        %v1207 = vsel %vm447, %v1079, 0.0
        %v1208 = vsel %vm448, %v1079, 0.0
        %v1209 = vsel %vm449, %v1083, 0.0
        %v1210 = vsel %vm450, %v1083, 0.0
        %v1211 = vsel %vm451, %v1083, 0.0
        %v1212 = vsel %vm452, %v1083, 0.0
        %v1213 = vsel %vm453, %v1087, 0.0
        %v1214 = vsel %vm454, %v1087, 0.0
        %v1215 = vsel %vm455, %v1087, 0.0
        %v1216 = vsel %vm456, %v1087, 0.0
        %v1217 = vsel %vm457, %v1091, 0.0
        %v1218 = vsel %vm458, %v1091, 0.0
        %v1219 = vsel %vm459, %v1091, 0.0
        %v1220 = vsel %vm460, %v1091, 0.0
        %v1221 = vsel %vm461, %v1095, 0.0
        %v1222 = vsel %vm462, %v1095, 0.0
        %v1223 = vsel %vm463, %v1095, 0.0
        %v1224 = vsel %vm464, %v1095, 0.0
        %v1225 = vsel %vm465, %v1099, 0.0
        %v1226 = vsel %vm466, %v1099, 0.0
        %v1227 = vsel %vm467, %v1099, 0.0
        %v1228 = vsel %vm468, %v1099, 0.0
        %v1229 = vsel %vm469, %v1103, 0.0
        %v1230 = vsel %vm470, %v1103, 0.0
        %v1231 = vsel %vm471, %v1103, 0.0
        %v1232 = vsel %vm472, %v1103, 0.0
        %v1233 = vsel %vm473, %v1107, 0.0
        %v1234 = vsel %vm474, %v1107, 0.0
        %v1235 = vsel %vm475, %v1107, 0.0
        %v1236 = vsel %vm476, %v1107, 0.0
        %v1237 = vsel %vm477, %v1111, 0.0
        %v1238 = vsel %vm478, %v1111, 0.0
        %v1239 = vsel %vm479, %v1111, 0.0
        %v1240 = vsel %vm480, %v1111, 0.0
        %v1241 = vsel %vm481, %v1115, 0.0
        %v1242 = vsel %vm482, %v1115, 0.0
        %v1243 = vsel %vm483, %v1115, 0.0
        %v1244 = vsel %vm484, %v1115, 0.0
        %v1245 = vsel %vm485, %v1119, 0.0
        %v1246 = vsel %vm486, %v1119, 0.0
        %v1247 = vsel %vm487, %v1119, 0.0
        %v1248 = vsel %vm488, %v1119, 0.0
        %v1249 = vsel %vm489, %v1123, 0.0
        %v1250 = vsel %vm490, %v1123, 0.0
        %v1251 = vsel %vm491, %v1123, 0.0
        %v1252 = vsel %vm492, %v1123, 0.0
        %v1253 = vsel %vm493, %v1127, 0.0
        %v1254 = vsel %vm494, %v1127, 0.0
        %v1255 = vsel %vm495, %v1127, 0.0
        %v1256 = vsel %vm496, %v1127, 0.0
        %v1257 = vsel %vm497, %v1131, 0.0
        %v1258 = vsel %vm498, %v1131, 0.0
        %v1259 = vsel %vm499, %v1131, 0.0
        %v1260 = vsel %vm500, %v1131, 0.0
        %v1261 = vsel %vm501, %v1135, 0.0
        %v1262 = vsel %vm502, %v1135, 0.0
        %v1263 = vsel %vm503, %v1135, 0.0
        %v1264 = vsel %vm504, %v1135, 0.0
        %v1265 = vsel %vm505, %v1139, 0.0
        %v1266 = vsel %vm506, %v1139, 0.0
        %v1267 = vsel %vm507, %v1139, 0.0
        %v1268 = vsel %vm508, %v1139, 0.0
        %v1269 = vsel %vm509, %v1143, 0.0
        %v1270 = vsel %vm510, %v1143, 0.0
        %v1271 = vsel %vm511, %v1143, 0.0
        %v1272 = vsel %vm512, %v1143, 0.0
        %v1273 = vsel %vm513, %v1147, 0.0
        %v1274 = vsel %vm514, %v1147, 0.0
        %v1275 = vsel %vm515, %v1147, 0.0
        %v1276 = vsel %vm516, %v1147, 0.0
        %v1277 = vmax.f32 %v1149, %v1153
        %v1278 = vmax.f32 %v1277, %v1157
        %v1279 = vmax.f32 %v1278, %v1161
        %v1280 = vmax.f32 %v1279, %v1165
        %v1281 = vmax.f32 %v1280, %v1169
        %v1282 = vmax.f32 %v1281, %v1173
        %v1283 = vmax.f32 %v1282, %v1177
        %v1284 = vmax.f32 %v1283, %v1181
        %v1285 = vmax.f32 %v1284, %v1185
        %v1286 = vmax.f32 %v1285, %v1189
        %v1287 = vmax.f32 %v1286, %v1193
        %v1288 = vmax.f32 %v1287, %v1197
        %v1289 = vmax.f32 %v1288, %v1201
        %v1290 = vmax.f32 %v1289, %v1205
        %v1291 = vmax.f32 %v1290, %v1209
        %v1292 = vmax.f32 %v1291, %v1213
        %v1293 = vmax.f32 %v1292, %v1217
        %v1294 = vmax.f32 %v1293, %v1221
        %v1295 = vmax.f32 %v1294, %v1225
        %v1296 = vmax.f32 %v1295, %v1229
        %v1297 = vmax.f32 %v1296, %v1233
        %v1298 = vmax.f32 %v1297, %v1237
        %v1299 = vmax.f32 %v1298, %v1241
        %v1300 = vmax.f32 %v1299, %v1245
        %v1301 = vmax.f32 %v1300, %v1249
        %v1302 = vmax.f32 %v1301, %v1253
        %v1303 = vmax.f32 %v1302, %v1257
        %v1304 = vmax.f32 %v1303, %v1261
        %v1305 = vmax.f32 %v1304, %v1265
        %v1306 = vmax.f32 %v1305, %v1269
        %v1307 = vmax.f32 %v1306, %v1273
        %v1308 = vrot.slane %v1307, 4
        %v1309 = vmax.f32 %v1307, %v1308
        %v1310 = vrot.slane %v1309, 2
        %v1311 = vmax.f32 %v1309, %v1310
        %v1312 = vrot.slane %v1311, 1
        %v1313 = vmax.f32 %v1311, %v1312
        %v1314 = vmax.f32 %v1150, %v1154
        %v1315 = vmax.f32 %v1314, %v1158
        %v1316 = vmax.f32 %v1315, %v1162
        %v1317 = vmax.f32 %v1316, %v1166
        %v1318 = vmax.f32 %v1317, %v1170
        %v1319 = vmax.f32 %v1318, %v1174
        %v1320 = vmax.f32 %v1319, %v1178
        %v1321 = vmax.f32 %v1320, %v1182
        %v1322 = vmax.f32 %v1321, %v1186
        %v1323 = vmax.f32 %v1322, %v1190
        %v1324 = vmax.f32 %v1323, %v1194
        %v1325 = vmax.f32 %v1324, %v1198
        %v1326 = vmax.f32 %v1325, %v1202
        %v1327 = vmax.f32 %v1326, %v1206
        %v1328 = vmax.f32 %v1327, %v1210
        %v1329 = vmax.f32 %v1328, %v1214
        %v1330 = vmax.f32 %v1329, %v1218
        %v1331 = vmax.f32 %v1330, %v1222
        %v1332 = vmax.f32 %v1331, %v1226
        %v1333 = vmax.f32 %v1332, %v1230
        %v1334 = vmax.f32 %v1333, %v1234
        %v1335 = vmax.f32 %v1334, %v1238
        %v1336 = vmax.f32 %v1335, %v1242
        %v1337 = vmax.f32 %v1336, %v1246
        %v1338 = vmax.f32 %v1337, %v1250
        %v1339 = vmax.f32 %v1338, %v1254
        %v1340 = vmax.f32 %v1339, %v1258
        %v1341 = vmax.f32 %v1340, %v1262
        %v1342 = vmax.f32 %v1341, %v1266
        %v1343 = vmax.f32 %v1342, %v1270
        %v1344 = vmax.f32 %v1343, %v1274
        %v1345 = vrot.slane %v1344, 4
        %v1346 = vmax.f32 %v1344, %v1345
        %v1347 = vrot.slane %v1346, 2
        %v1348 = vmax.f32 %v1346, %v1347
        %v1349 = vrot.slane %v1348, 1
        %v1350 = vmax.f32 %v1348, %v1349
        %v1351 = vmax.f32 %v1151, %v1155
        %v1352 = vmax.f32 %v1351, %v1159
        %v1353 = vmax.f32 %v1352, %v1163
        %v1354 = vmax.f32 %v1353, %v1167
        %v1355 = vmax.f32 %v1354, %v1171
        %v1356 = vmax.f32 %v1355, %v1175
        %v1357 = vmax.f32 %v1356, %v1179
        %v1358 = vmax.f32 %v1357, %v1183
        %v1359 = vmax.f32 %v1358, %v1187
        %v1360 = vmax.f32 %v1359, %v1191
        %v1361 = vmax.f32 %v1360, %v1195
        %v1362 = vmax.f32 %v1361, %v1199
        %v1363 = vmax.f32 %v1362, %v1203
        %v1364 = vmax.f32 %v1363, %v1207
        %v1365 = vmax.f32 %v1364, %v1211
        %v1366 = vmax.f32 %v1365, %v1215
        %v1367 = vmax.f32 %v1366, %v1219
        %v1368 = vmax.f32 %v1367, %v1223
        %v1369 = vmax.f32 %v1368, %v1227
        %v1370 = vmax.f32 %v1369, %v1231
        %v1371 = vmax.f32 %v1370, %v1235
        %v1372 = vmax.f32 %v1371, %v1239
        %v1373 = vmax.f32 %v1372, %v1243
        %v1374 = vmax.f32 %v1373, %v1247
        %v1375 = vmax.f32 %v1374, %v1251
        %v1376 = vmax.f32 %v1375, %v1255
        %v1377 = vmax.f32 %v1376, %v1259
        %v1378 = vmax.f32 %v1377, %v1263
        %v1379 = vmax.f32 %v1378, %v1267
        %v1380 = vmax.f32 %v1379, %v1271
        %v1381 = vmax.f32 %v1380, %v1275
        %v1382 = vrot.slane %v1381, 4
        %v1383 = vmax.f32 %v1381, %v1382
        %v1384 = vrot.slane %v1383, 2
        %v1385 = vmax.f32 %v1383, %v1384
        %v1386 = vrot.slane %v1385, 1
        %v1387 = vmax.f32 %v1385, %v1386
        %v1388 = vmax.f32 %v1152, %v1156
        %v1389 = vmax.f32 %v1388, %v1160
        %v1390 = vmax.f32 %v1389, %v1164
        %v1391 = vmax.f32 %v1390, %v1168
        %v1392 = vmax.f32 %v1391, %v1172
        %v1393 = vmax.f32 %v1392, %v1176
        %v1394 = vmax.f32 %v1393, %v1180
        %v1395 = vmax.f32 %v1394, %v1184
        %v1396 = vmax.f32 %v1395, %v1188
        %v1397 = vmax.f32 %v1396, %v1192
        %v1398 = vmax.f32 %v1397, %v1196
        %v1399 = vmax.f32 %v1398, %v1200
        %v1400 = vmax.f32 %v1399, %v1204
        %v1401 = vmax.f32 %v1400, %v1208
        %v1402 = vmax.f32 %v1401, %v1212
        %v1403 = vmax.f32 %v1402, %v1216
        %v1404 = vmax.f32 %v1403, %v1220
        %v1405 = vmax.f32 %v1404, %v1224
        %v1406 = vmax.f32 %v1405, %v1228
        %v1407 = vmax.f32 %v1406, %v1232
        %v1408 = vmax.f32 %v1407, %v1236
        %v1409 = vmax.f32 %v1408, %v1240
        %v1410 = vmax.f32 %v1409, %v1244
        %v1411 = vmax.f32 %v1410, %v1248
        %v1412 = vmax.f32 %v1411, %v1252
        %v1413 = vmax.f32 %v1412, %v1256
        %v1414 = vmax.f32 %v1413, %v1260
        %v1415 = vmax.f32 %v1414, %v1264
        %v1416 = vmax.f32 %v1415, %v1268
        %v1417 = vmax.f32 %v1416, %v1272
        %v1418 = vmax.f32 %v1417, %v1276
        %v1419 = vrot.slane %v1418, 4
        %v1420 = vmax.f32 %v1418, %v1419
        %v1421 = vrot.slane %v1420, 2
        %v1422 = vmax.f32 %v1420, %v1421
        %v1423 = vrot.slane %v1422, 1
        %v1424 = vmax.f32 %v1422, %v1423
        %s1425 = scalar_lea.vmem %s194, 1 [#allocation2]
        %v1426 = vld [vmem:[%s1425] ss:$4 sm:$0xf]
        %v1431 = vcombine.low %v1313, %v1350
        %v1432 = vcombine.low %v1387, %v1424
        %v1434 = vunpack.c.l.s4 1966171168
        %v1435 = vunpack.c.0.s8 %v1434
        %v1436 = vlaneseq
        %v1437 = vshrl.u32 %v1436, 7
        %v1438 = vsub.s32 %v1435, %v1437
        %v1439 = vrot.slane %v1431, %v1438
        %v1441 = vunpack.c.l.s4 1966171168
        %v1442 = vunpack.c.0.s8 %v1441
        %v1443 = vlaneseq
        %v1444 = vshrl.u32 %v1443, 7
        %v1445 = vsub.s32 %v1442, %v1444
        %v1446 = vrot.slane %v1432, %v1445
        %v1447 = vcombine.low %v1439, %v1446
        %v1449 = vunpack.c.l.s4 1966171168
        %v1450 = vunpack.c.0.s8 %v1449
        %v1451 = vlaneseq
        %v1452 = vshrl.u32 %v1451, 7
        %v1453 = vsub.s32 %v1450, %v1452
        %v1454 = vrot.slane %v1447, %v1453
        %v1456 = vmax.f32 %v1426, %v1454
        %1457 = vst.msk [vmem:[%s1425] ss:$4 sm:$0xf] %vm1019, %v1456
        %1458 = vset.pattern.permute.xlu0 2
        %1459 = vperm.xlu0 %1458, %v517
        %v1460 = vpop.permute.xlu0 %1459
        %1462 = vset.pattern.permute.xlu0 2
        %1463 = vperm.xlu0 %1462, %v518
        %v1464 = vpop.permute.xlu0 %1463
        %1466 = vset.pattern.permute.xlu0 2
        %1467 = vperm.xlu0 %1466, %v519
        %v1468 = vpop.permute.xlu0 %1467
        %1470 = vset.pattern.permute.xlu0 2
        %1471 = vperm.xlu0 %1470, %v520
        %v1472 = vpop.permute.xlu0 %1471
        %1474 = vset.pattern.permute.xlu0 2
        %1475 = vperm.xlu0 %1474, %v521
        %v1476 = vpop.permute.xlu0 %1475
        %1478 = vset.pattern.permute.xlu0 2
        %1479 = vperm.xlu0 %1478, %v522
        %v1480 = vpop.permute.xlu0 %1479
        %1482 = vset.pattern.permute.xlu0 2
        %1483 = vperm.xlu0 %1482, %v523
        %v1484 = vpop.permute.xlu0 %1483
        %1486 = vset.pattern.permute.xlu0 2
        %1487 = vperm.xlu0 %1486, %v524
        %v1488 = vpop.permute.xlu0 %1487
        %1490 = vset.pattern.permute.xlu0 2
        %1491 = vperm.xlu0 %1490, %v525
        %v1492 = vpop.permute.xlu0 %1491
        %1494 = vset.pattern.permute.xlu0 2
        %1495 = vperm.xlu0 %1494, %v526
        %v1496 = vpop.permute.xlu0 %1495
        %1498 = vset.pattern.permute.xlu0 2
        %1499 = vperm.xlu0 %1498, %v527
        %v1500 = vpop.permute.xlu0 %1499
        %1502 = vset.pattern.permute.xlu0 2
        %1503 = vperm.xlu0 %1502, %v528
        %v1504 = vpop.permute.xlu0 %1503
        %1506 = vset.pattern.permute.xlu0 2
        %1507 = vperm.xlu0 %1506, %v529
        %v1508 = vpop.permute.xlu0 %1507
        %1510 = vset.pattern.permute.xlu0 2
        %1511 = vperm.xlu0 %1510, %v530
        %v1512 = vpop.permute.xlu0 %1511
        %1514 = vset.pattern.permute.xlu0 2
        %1515 = vperm.xlu0 %1514, %v531
        %v1516 = vpop.permute.xlu0 %1515
        %1518 = vset.pattern.permute.xlu0 2
        %1519 = vperm.xlu0 %1518, %v532
        %v1520 = vpop.permute.xlu0 %1519
        %1522 = vset.pattern.permute.xlu0 2
        %1523 = vperm.xlu0 %1522, %v533
        %v1524 = vpop.permute.xlu0 %1523
        %1526 = vset.pattern.permute.xlu0 2
        %1527 = vperm.xlu0 %1526, %v534
        %v1528 = vpop.permute.xlu0 %1527
        %1530 = vset.pattern.permute.xlu0 2
        %1531 = vperm.xlu0 %1530, %v535
        %v1532 = vpop.permute.xlu0 %1531
        %1534 = vset.pattern.permute.xlu0 2
        %1535 = vperm.xlu0 %1534, %v536
        %v1536 = vpop.permute.xlu0 %1535
        %1538 = vset.pattern.permute.xlu0 2
        %1539 = vperm.xlu0 %1538, %v537
        %v1540 = vpop.permute.xlu0 %1539
        %1542 = vset.pattern.permute.xlu0 2
        %1543 = vperm.xlu0 %1542, %v538
        %v1544 = vpop.permute.xlu0 %1543
        %1546 = vset.pattern.permute.xlu0 2
        %1547 = vperm.xlu0 %1546, %v539
        %v1548 = vpop.permute.xlu0 %1547
        %1550 = vset.pattern.permute.xlu0 2
        %1551 = vperm.xlu0 %1550, %v540
        %v1552 = vpop.permute.xlu0 %1551
        %1554 = vset.pattern.permute.xlu0 2
        %1555 = vperm.xlu0 %1554, %v541
        %v1556 = vpop.permute.xlu0 %1555
        %1558 = vset.pattern.permute.xlu0 2
        %1559 = vperm.xlu0 %1558, %v542
        %v1560 = vpop.permute.xlu0 %1559
        %1562 = vset.pattern.permute.xlu0 2
        %1563 = vperm.xlu0 %1562, %v543
        %v1564 = vpop.permute.xlu0 %1563
        %1566 = vset.pattern.permute.xlu0 2
        %1567 = vperm.xlu0 %1566, %v544
        %v1568 = vpop.permute.xlu0 %1567
        %1570 = vset.pattern.permute.xlu0 2
        %1571 = vperm.xlu0 %1570, %v545
        %v1572 = vpop.permute.xlu0 %1571
        %1574 = vset.pattern.permute.xlu0 2
        %1575 = vperm.xlu0 %1574, %v546
        %v1576 = vpop.permute.xlu0 %1575
        %1578 = vset.pattern.permute.xlu0 2
        %1579 = vperm.xlu0 %1578, %v547
        %v1580 = vpop.permute.xlu0 %1579
        %1582 = vset.pattern.permute.xlu0 2
        %1583 = vperm.xlu0 %1582, %v548
        %v1584 = vpop.permute.xlu0 %1583
        %v1586 = vsel %vm389, %v1460, 0.0
        %v1587 = vsel %vm390, %v1460, 0.0
        %v1588 = vsel %vm391, %v1460, 0.0
        %v1589 = vsel %vm392, %v1460, 0.0
        %v1590 = vsel %vm393, %v1464, 0.0
        %v1591 = vsel %vm394, %v1464, 0.0
        %v1592 = vsel %vm395, %v1464, 0.0
        %v1593 = vsel %vm396, %v1464, 0.0
        %v1594 = vsel %vm397, %v1468, 0.0
        %v1595 = vsel %vm398, %v1468, 0.0
        %v1596 = vsel %vm399, %v1468, 0.0
        %v1597 = vsel %vm400, %v1468, 0.0
        %v1598 = vsel %vm401, %v1472, 0.0
        %v1599 = vsel %vm402, %v1472, 0.0
        %v1600 = vsel %vm403, %v1472, 0.0
        %v1601 = vsel %vm404, %v1472, 0.0
        %v1602 = vsel %vm405, %v1476, 0.0
        %v1603 = vsel %vm406, %v1476, 0.0
        %v1604 = vsel %vm407, %v1476, 0.0
        %v1605 = vsel %vm408, %v1476, 0.0
        %v1606 = vsel %vm409, %v1480, 0.0
        %v1607 = vsel %vm410, %v1480, 0.0
        %v1608 = vsel %vm411, %v1480, 0.0
        %v1609 = vsel %vm412, %v1480, 0.0
        %v1610 = vsel %vm413, %v1484, 0.0
        %v1611 = vsel %vm414, %v1484, 0.0
        %v1612 = vsel %vm415, %v1484, 0.0
        %v1613 = vsel %vm416, %v1484, 0.0
        %v1614 = vsel %vm417, %v1488, 0.0
        %v1615 = vsel %vm418, %v1488, 0.0
        %v1616 = vsel %vm419, %v1488, 0.0
        %v1617 = vsel %vm420, %v1488, 0.0
        %v1618 = vsel %vm421, %v1492, 0.0
        %v1619 = vsel %vm422, %v1492, 0.0
        %v1620 = vsel %vm423, %v1492, 0.0
        %v1621 = vsel %vm424, %v1492, 0.0
        %v1622 = vsel %vm425, %v1496, 0.0
        %v1623 = vsel %vm426, %v1496, 0.0
        %v1624 = vsel %vm427, %v1496, 0.0
        %v1625 = vsel %vm428, %v1496, 0.0
        %v1626 = vsel %vm429, %v1500, 0.0
        %v1627 = vsel %vm430, %v1500, 0.0
        %v1628 = vsel %vm431, %v1500, 0.0
        %v1629 = vsel %vm432, %v1500, 0.0
        %v1630 = vsel %vm433, %v1504, 0.0
        %v1631 = vsel %vm434, %v1504, 0.0
        %v1632 = vsel %vm435, %v1504, 0.0
        %v1633 = vsel %vm436, %v1504, 0.0
        %v1634 = vsel %vm437, %v1508, 0.0
        %v1635 = vsel %vm438, %v1508, 0.0
        %v1636 = vsel %vm439, %v1508, 0.0
        %v1637 = vsel %vm440, %v1508, 0.0
        %v1638 = vsel %vm441, %v1512, 0.0
        %v1639 = vsel %vm442, %v1512, 0.0
        %v1640 = vsel %vm443, %v1512, 0.0
        %v1641 = vsel %vm444, %v1512, 0.0
        %v1642 = vsel %vm445, %v1516, 0.0
        %v1643 = vsel %vm446, %v1516, 0.0
        %v1644 = vsel %vm447, %v1516, 0.0
        %v1645 = vsel %vm448, %v1516, 0.0
        %v1646 = vsel %vm449, %v1520, 0.0
        %v1647 = vsel %vm450, %v1520, 0.0
        %v1648 = vsel %vm451, %v1520, 0.0
        %v1649 = vsel %vm452, %v1520, 0.0
        %v1650 = vsel %vm453, %v1524, 0.0
        %v1651 = vsel %vm454, %v1524, 0.0
        %v1652 = vsel %vm455, %v1524, 0.0
        %v1653 = vsel %vm456, %v1524, 0.0
        %v1654 = vsel %vm457, %v1528, 0.0
        %v1655 = vsel %vm458, %v1528, 0.0
        %v1656 = vsel %vm459, %v1528, 0.0
        %v1657 = vsel %vm460, %v1528, 0.0
        %v1658 = vsel %vm461, %v1532, 0.0
        %v1659 = vsel %vm462, %v1532, 0.0
        %v1660 = vsel %vm463, %v1532, 0.0
        %v1661 = vsel %vm464, %v1532, 0.0
        %v1662 = vsel %vm465, %v1536, 0.0
        %v1663 = vsel %vm466, %v1536, 0.0
        %v1664 = vsel %vm467, %v1536, 0.0
        %v1665 = vsel %vm468, %v1536, 0.0
        %v1666 = vsel %vm469, %v1540, 0.0
        %v1667 = vsel %vm470, %v1540, 0.0
        %v1668 = vsel %vm471, %v1540, 0.0
        %v1669 = vsel %vm472, %v1540, 0.0
        %v1670 = vsel %vm473, %v1544, 0.0
        %v1671 = vsel %vm474, %v1544, 0.0
        %v1672 = vsel %vm475, %v1544, 0.0
        %v1673 = vsel %vm476, %v1544, 0.0
        %v1674 = vsel %vm477, %v1548, 0.0
        %v1675 = vsel %vm478, %v1548, 0.0
        %v1676 = vsel %vm479, %v1548, 0.0
        %v1677 = vsel %vm480, %v1548, 0.0
        %v1678 = vsel %vm481, %v1552, 0.0
        %v1679 = vsel %vm482, %v1552, 0.0
        %v1680 = vsel %vm483, %v1552, 0.0
        %v1681 = vsel %vm484, %v1552, 0.0
        %v1682 = vsel %vm485, %v1556, 0.0
        %v1683 = vsel %vm486, %v1556, 0.0
        %v1684 = vsel %vm487, %v1556, 0.0
        %v1685 = vsel %vm488, %v1556, 0.0
        %v1686 = vsel %vm489, %v1560, 0.0
        %v1687 = vsel %vm490, %v1560, 0.0
        %v1688 = vsel %vm491, %v1560, 0.0
        %v1689 = vsel %vm492, %v1560, 0.0
        %v1690 = vsel %vm493, %v1564, 0.0
        %v1691 = vsel %vm494, %v1564, 0.0
        %v1692 = vsel %vm495, %v1564, 0.0
        %v1693 = vsel %vm496, %v1564, 0.0
        %v1694 = vsel %vm497, %v1568, 0.0
        %v1695 = vsel %vm498, %v1568, 0.0
        %v1696 = vsel %vm499, %v1568, 0.0
        %v1697 = vsel %vm500, %v1568, 0.0
        %v1698 = vsel %vm501, %v1572, 0.0
        %v1699 = vsel %vm502, %v1572, 0.0
        %v1700 = vsel %vm503, %v1572, 0.0
        %v1701 = vsel %vm504, %v1572, 0.0
        %v1702 = vsel %vm505, %v1576, 0.0
        %v1703 = vsel %vm506, %v1576, 0.0
        %v1704 = vsel %vm507, %v1576, 0.0
        %v1705 = vsel %vm508, %v1576, 0.0
        %v1706 = vsel %vm509, %v1580, 0.0
        %v1707 = vsel %vm510, %v1580, 0.0
        %v1708 = vsel %vm511, %v1580, 0.0
        %v1709 = vsel %vm512, %v1580, 0.0
        %v1710 = vsel %vm513, %v1584, 0.0
        %v1711 = vsel %vm514, %v1584, 0.0
        %v1712 = vsel %vm515, %v1584, 0.0
        %v1713 = vsel %vm516, %v1584, 0.0
        %v1714 = vmax.f32 %v1586, %v1590
        %v1715 = vmax.f32 %v1714, %v1594
        %v1716 = vmax.f32 %v1715, %v1598
        %v1717 = vmax.f32 %v1716, %v1602
        %v1718 = vmax.f32 %v1717, %v1606
        %v1719 = vmax.f32 %v1718, %v1610
        %v1720 = vmax.f32 %v1719, %v1614
        %v1721 = vmax.f32 %v1720, %v1618
        %v1722 = vmax.f32 %v1721, %v1622
        %v1723 = vmax.f32 %v1722, %v1626
        %v1724 = vmax.f32 %v1723, %v1630
        %v1725 = vmax.f32 %v1724, %v1634
        %v1726 = vmax.f32 %v1725, %v1638
        %v1727 = vmax.f32 %v1726, %v1642
        %v1728 = vmax.f32 %v1727, %v1646
        %v1729 = vmax.f32 %v1728, %v1650
        %v1730 = vmax.f32 %v1729, %v1654
        %v1731 = vmax.f32 %v1730, %v1658
        %v1732 = vmax.f32 %v1731, %v1662
        %v1733 = vmax.f32 %v1732, %v1666
        %v1734 = vmax.f32 %v1733, %v1670
        %v1735 = vmax.f32 %v1734, %v1674
        %v1736 = vmax.f32 %v1735, %v1678
        %v1737 = vmax.f32 %v1736, %v1682
        %v1738 = vmax.f32 %v1737, %v1686
        %v1739 = vmax.f32 %v1738, %v1690
        %v1740 = vmax.f32 %v1739, %v1694
        %v1741 = vmax.f32 %v1740, %v1698
        %v1742 = vmax.f32 %v1741, %v1702
        %v1743 = vmax.f32 %v1742, %v1706
        %v1744 = vmax.f32 %v1743, %v1710
        %v1745 = vrot.slane %v1744, 4
        %v1746 = vmax.f32 %v1744, %v1745
        %v1747 = vrot.slane %v1746, 2
        %v1748 = vmax.f32 %v1746, %v1747
        %v1749 = vrot.slane %v1748, 1
        %v1750 = vmax.f32 %v1748, %v1749
        %v1751 = vmax.f32 %v1587, %v1591
        %v1752 = vmax.f32 %v1751, %v1595
        %v1753 = vmax.f32 %v1752, %v1599
        %v1754 = vmax.f32 %v1753, %v1603
        %v1755 = vmax.f32 %v1754, %v1607
        %v1756 = vmax.f32 %v1755, %v1611
        %v1757 = vmax.f32 %v1756, %v1615
        %v1758 = vmax.f32 %v1757, %v1619
        %v1759 = vmax.f32 %v1758, %v1623
        %v1760 = vmax.f32 %v1759, %v1627
        %v1761 = vmax.f32 %v1760, %v1631
        %v1762 = vmax.f32 %v1761, %v1635
        %v1763 = vmax.f32 %v1762, %v1639
        %v1764 = vmax.f32 %v1763, %v1643
        %v1765 = vmax.f32 %v1764, %v1647
        %v1766 = vmax.f32 %v1765, %v1651
        %v1767 = vmax.f32 %v1766, %v1655
        %v1768 = vmax.f32 %v1767, %v1659
        %v1769 = vmax.f32 %v1768, %v1663
        %v1770 = vmax.f32 %v1769, %v1667
        %v1771 = vmax.f32 %v1770, %v1671
        %v1772 = vmax.f32 %v1771, %v1675
        %v1773 = vmax.f32 %v1772, %v1679
        %v1774 = vmax.f32 %v1773, %v1683
        %v1775 = vmax.f32 %v1774, %v1687
        %v1776 = vmax.f32 %v1775, %v1691
        %v1777 = vmax.f32 %v1776, %v1695
        %v1778 = vmax.f32 %v1777, %v1699
        %v1779 = vmax.f32 %v1778, %v1703
        %v1780 = vmax.f32 %v1779, %v1707
        %v1781 = vmax.f32 %v1780, %v1711
        %v1782 = vrot.slane %v1781, 4
        %v1783 = vmax.f32 %v1781, %v1782
        %v1784 = vrot.slane %v1783, 2
        %v1785 = vmax.f32 %v1783, %v1784
        %v1786 = vrot.slane %v1785, 1
        %v1787 = vmax.f32 %v1785, %v1786
        %v1788 = vmax.f32 %v1588, %v1592
        %v1789 = vmax.f32 %v1788, %v1596
        %v1790 = vmax.f32 %v1789, %v1600
        %v1791 = vmax.f32 %v1790, %v1604
        %v1792 = vmax.f32 %v1791, %v1608
        %v1793 = vmax.f32 %v1792, %v1612
        %v1794 = vmax.f32 %v1793, %v1616
        %v1795 = vmax.f32 %v1794, %v1620
        %v1796 = vmax.f32 %v1795, %v1624
        %v1797 = vmax.f32 %v1796, %v1628
        %v1798 = vmax.f32 %v1797, %v1632
        %v1799 = vmax.f32 %v1798, %v1636
        %v1800 = vmax.f32 %v1799, %v1640
        %v1801 = vmax.f32 %v1800, %v1644
        %v1802 = vmax.f32 %v1801, %v1648
        %v1803 = vmax.f32 %v1802, %v1652
        %v1804 = vmax.f32 %v1803, %v1656
        %v1805 = vmax.f32 %v1804, %v1660
        %v1806 = vmax.f32 %v1805, %v1664
        %v1807 = vmax.f32 %v1806, %v1668
        %v1808 = vmax.f32 %v1807, %v1672
        %v1809 = vmax.f32 %v1808, %v1676
        %v1810 = vmax.f32 %v1809, %v1680
        %v1811 = vmax.f32 %v1810, %v1684
        %v1812 = vmax.f32 %v1811, %v1688
        %v1813 = vmax.f32 %v1812, %v1692
        %v1814 = vmax.f32 %v1813, %v1696
        %v1815 = vmax.f32 %v1814, %v1700
        %v1816 = vmax.f32 %v1815, %v1704
        %v1817 = vmax.f32 %v1816, %v1708
        %v1818 = vmax.f32 %v1817, %v1712
        %v1819 = vrot.slane %v1818, 4
        %v1820 = vmax.f32 %v1818, %v1819
        %v1821 = vrot.slane %v1820, 2
        %v1822 = vmax.f32 %v1820, %v1821
        %v1823 = vrot.slane %v1822, 1
        %v1824 = vmax.f32 %v1822, %v1823
        %v1825 = vmax.f32 %v1589, %v1593
        %v1826 = vmax.f32 %v1825, %v1597
        %v1827 = vmax.f32 %v1826, %v1601
        %v1828 = vmax.f32 %v1827, %v1605
        %v1829 = vmax.f32 %v1828, %v1609
        %v1830 = vmax.f32 %v1829, %v1613
        %v1831 = vmax.f32 %v1830, %v1617
        %v1832 = vmax.f32 %v1831, %v1621
        %v1833 = vmax.f32 %v1832, %v1625
        %v1834 = vmax.f32 %v1833, %v1629
        %v1835 = vmax.f32 %v1834, %v1633
        %v1836 = vmax.f32 %v1835, %v1637
        %v1837 = vmax.f32 %v1836, %v1641
        %v1838 = vmax.f32 %v1837, %v1645
        %v1839 = vmax.f32 %v1838, %v1649
        %v1840 = vmax.f32 %v1839, %v1653
        %v1841 = vmax.f32 %v1840, %v1657
        %v1842 = vmax.f32 %v1841, %v1661
        %v1843 = vmax.f32 %v1842, %v1665
        %v1844 = vmax.f32 %v1843, %v1669
        %v1845 = vmax.f32 %v1844, %v1673
        %v1846 = vmax.f32 %v1845, %v1677
        %v1847 = vmax.f32 %v1846, %v1681
        %v1848 = vmax.f32 %v1847, %v1685
        %v1849 = vmax.f32 %v1848, %v1689
        %v1850 = vmax.f32 %v1849, %v1693
        %v1851 = vmax.f32 %v1850, %v1697
        %v1852 = vmax.f32 %v1851, %v1701
        %v1853 = vmax.f32 %v1852, %v1705
        %v1854 = vmax.f32 %v1853, %v1709
        %v1855 = vmax.f32 %v1854, %v1713
        %v1856 = vrot.slane %v1855, 4
        %v1857 = vmax.f32 %v1855, %v1856
        %v1858 = vrot.slane %v1857, 2
        %v1859 = vmax.f32 %v1857, %v1858
        %v1860 = vrot.slane %v1859, 1
        %v1861 = vmax.f32 %v1859, %v1860
        %s1862 = scalar_lea.vmem %s194, 2 [#allocation2]
        %v1863 = vld [vmem:[%s1862] ss:$4 sm:$0xf]
        %v1868 = vcombine.low %v1750, %v1787
        %v1869 = vcombine.low %v1824, %v1861
        %v1871 = vunpack.c.l.s4 1966171168
        %v1872 = vunpack.c.0.s8 %v1871
        %v1873 = vlaneseq
        %v1874 = vshrl.u32 %v1873, 7
        %v1875 = vsub.s32 %v1872, %v1874
        %v1876 = vrot.slane %v1868, %v1875
        %v1878 = vunpack.c.l.s4 1966171168
        %v1879 = vunpack.c.0.s8 %v1878
        %v1880 = vlaneseq
        %v1881 = vshrl.u32 %v1880, 7
        %v1882 = vsub.s32 %v1879, %v1881
        %v1883 = vrot.slane %v1869, %v1882
        %v1884 = vcombine.low %v1876, %v1883
        %v1886 = vunpack.c.l.s4 1966171168
        %v1887 = vunpack.c.0.s8 %v1886
        %v1888 = vlaneseq
        %v1889 = vshrl.u32 %v1888, 7
        %v1890 = vsub.s32 %v1887, %v1889
        %v1891 = vrot.slane %v1884, %v1890
        %v1893 = vmax.f32 %v1863, %v1891
        %1894 = vst.msk [vmem:[%s1862] ss:$4 sm:$0xf] %vm1019, %v1893
        %1895 = vset.pattern.permute.xlu0 3
        %1896 = vperm.xlu0 %1895, %v517
        %v1897 = vpop.permute.xlu0 %1896
        %1899 = vset.pattern.permute.xlu0 3
        %1900 = vperm.xlu0 %1899, %v518
        %v1901 = vpop.permute.xlu0 %1900
        %1903 = vset.pattern.permute.xlu0 3
        %1904 = vperm.xlu0 %1903, %v519
        %v1905 = vpop.permute.xlu0 %1904
        %1907 = vset.pattern.permute.xlu0 3
        %1908 = vperm.xlu0 %1907, %v520
        %v1909 = vpop.permute.xlu0 %1908
        %1911 = vset.pattern.permute.xlu0 3
        %1912 = vperm.xlu0 %1911, %v521
        %v1913 = vpop.permute.xlu0 %1912
        %1915 = vset.pattern.permute.xlu0 3
        %1916 = vperm.xlu0 %1915, %v522
        %v1917 = vpop.permute.xlu0 %1916
        %1919 = vset.pattern.permute.xlu0 3
        %1920 = vperm.xlu0 %1919, %v523
        %v1921 = vpop.permute.xlu0 %1920
        %1923 = vset.pattern.permute.xlu0 3
        %1924 = vperm.xlu0 %1923, %v524
        %v1925 = vpop.permute.xlu0 %1924
        %1927 = vset.pattern.permute.xlu0 3
        %1928 = vperm.xlu0 %1927, %v525
        %v1929 = vpop.permute.xlu0 %1928
        %1931 = vset.pattern.permute.xlu0 3
        %1932 = vperm.xlu0 %1931, %v526
        %v1933 = vpop.permute.xlu0 %1932
        %1935 = vset.pattern.permute.xlu0 3
        %1936 = vperm.xlu0 %1935, %v527
        %v1937 = vpop.permute.xlu0 %1936
        %1939 = vset.pattern.permute.xlu0 3
        %1940 = vperm.xlu0 %1939, %v528
        %v1941 = vpop.permute.xlu0 %1940
        %1943 = vset.pattern.permute.xlu0 3
        %1944 = vperm.xlu0 %1943, %v529
        %v1945 = vpop.permute.xlu0 %1944
        %1947 = vset.pattern.permute.xlu0 3
        %1948 = vperm.xlu0 %1947, %v530
        %v1949 = vpop.permute.xlu0 %1948
        %1951 = vset.pattern.permute.xlu0 3
        %1952 = vperm.xlu0 %1951, %v531
        %v1953 = vpop.permute.xlu0 %1952
        %1955 = vset.pattern.permute.xlu0 3
        %1956 = vperm.xlu0 %1955, %v532
        %v1957 = vpop.permute.xlu0 %1956
        %1959 = vset.pattern.permute.xlu0 3
        %1960 = vperm.xlu0 %1959, %v533
        %v1961 = vpop.permute.xlu0 %1960
        %1963 = vset.pattern.permute.xlu0 3
        %1964 = vperm.xlu0 %1963, %v534
        %v1965 = vpop.permute.xlu0 %1964
        %1967 = vset.pattern.permute.xlu0 3
        %1968 = vperm.xlu0 %1967, %v535
        %v1969 = vpop.permute.xlu0 %1968
        %1971 = vset.pattern.permute.xlu0 3
        %1972 = vperm.xlu0 %1971, %v536
        %v1973 = vpop.permute.xlu0 %1972
        %1975 = vset.pattern.permute.xlu0 3
        %1976 = vperm.xlu0 %1975, %v537
        %v1977 = vpop.permute.xlu0 %1976
        %1979 = vset.pattern.permute.xlu0 3
        %1980 = vperm.xlu0 %1979, %v538
        %v1981 = vpop.permute.xlu0 %1980
        %1983 = vset.pattern.permute.xlu0 3
        %1984 = vperm.xlu0 %1983, %v539
        %v1985 = vpop.permute.xlu0 %1984
        %1987 = vset.pattern.permute.xlu0 3
        %1988 = vperm.xlu0 %1987, %v540
        %v1989 = vpop.permute.xlu0 %1988
        %1991 = vset.pattern.permute.xlu0 3
        %1992 = vperm.xlu0 %1991, %v541
        %v1993 = vpop.permute.xlu0 %1992
        %1995 = vset.pattern.permute.xlu0 3
        %1996 = vperm.xlu0 %1995, %v542
        %v1997 = vpop.permute.xlu0 %1996
        %1999 = vset.pattern.permute.xlu0 3
        %2000 = vperm.xlu0 %1999, %v543
        %v2001 = vpop.permute.xlu0 %2000
        %2003 = vset.pattern.permute.xlu0 3
        %2004 = vperm.xlu0 %2003, %v544
        %v2005 = vpop.permute.xlu0 %2004
        %2007 = vset.pattern.permute.xlu0 3
        %2008 = vperm.xlu0 %2007, %v545
        %v2009 = vpop.permute.xlu0 %2008
        %2011 = vset.pattern.permute.xlu0 3
        %2012 = vperm.xlu0 %2011, %v546
        %v2013 = vpop.permute.xlu0 %2012
        %2015 = vset.pattern.permute.xlu0 3
        %2016 = vperm.xlu0 %2015, %v547
        %v2017 = vpop.permute.xlu0 %2016
        %2019 = vset.pattern.permute.xlu0 3
        %2020 = vperm.xlu0 %2019, %v548
        %v2021 = vpop.permute.xlu0 %2020
        %v2023 = vsel %vm389, %v1897, 0.0
        %v2024 = vsel %vm390, %v1897, 0.0
        %v2025 = vsel %vm391, %v1897, 0.0
        %v2026 = vsel %vm392, %v1897, 0.0
        %v2027 = vsel %vm393, %v1901, 0.0
        %v2028 = vsel %vm394, %v1901, 0.0
        %v2029 = vsel %vm395, %v1901, 0.0
        %v2030 = vsel %vm396, %v1901, 0.0
        %v2031 = vsel %vm397, %v1905, 0.0
        %v2032 = vsel %vm398, %v1905, 0.0
        %v2033 = vsel %vm399, %v1905, 0.0
        %v2034 = vsel %vm400, %v1905, 0.0
        %v2035 = vsel %vm401, %v1909, 0.0
        %v2036 = vsel %vm402, %v1909, 0.0
        %v2037 = vsel %vm403, %v1909, 0.0
        %v2038 = vsel %vm404, %v1909, 0.0
        %v2039 = vsel %vm405, %v1913, 0.0
        %v2040 = vsel %vm406, %v1913, 0.0
        %v2041 = vsel %vm407, %v1913, 0.0
        %v2042 = vsel %vm408, %v1913, 0.0
        %v2043 = vsel %vm409, %v1917, 0.0
        %v2044 = vsel %vm410, %v1917, 0.0
        %v2045 = vsel %vm411, %v1917, 0.0
        %v2046 = vsel %vm412, %v1917, 0.0
        %v2047 = vsel %vm413, %v1921, 0.0
        %v2048 = vsel %vm414, %v1921, 0.0
        %v2049 = vsel %vm415, %v1921, 0.0
        %v2050 = vsel %vm416, %v1921, 0.0
        %v2051 = vsel %vm417, %v1925, 0.0
        %v2052 = vsel %vm418, %v1925, 0.0
        %v2053 = vsel %vm419, %v1925, 0.0
        %v2054 = vsel %vm420, %v1925, 0.0
        %v2055 = vsel %vm421, %v1929, 0.0
        %v2056 = vsel %vm422, %v1929, 0.0
        %v2057 = vsel %vm423, %v1929, 0.0
        %v2058 = vsel %vm424, %v1929, 0.0
        %v2059 = vsel %vm425, %v1933, 0.0
        %v2060 = vsel %vm426, %v1933, 0.0
        %v2061 = vsel %vm427, %v1933, 0.0
        %v2062 = vsel %vm428, %v1933, 0.0
        %v2063 = vsel %vm429, %v1937, 0.0
        %v2064 = vsel %vm430, %v1937, 0.0
        %v2065 = vsel %vm431, %v1937, 0.0
        %v2066 = vsel %vm432, %v1937, 0.0
        %v2067 = vsel %vm433, %v1941, 0.0
        %v2068 = vsel %vm434, %v1941, 0.0
        %v2069 = vsel %vm435, %v1941, 0.0
        %v2070 = vsel %vm436, %v1941, 0.0
        %v2071 = vsel %vm437, %v1945, 0.0
        %v2072 = vsel %vm438, %v1945, 0.0
        %v2073 = vsel %vm439, %v1945, 0.0
        %v2074 = vsel %vm440, %v1945, 0.0
        %v2075 = vsel %vm441, %v1949, 0.0
        %v2076 = vsel %vm442, %v1949, 0.0
        %v2077 = vsel %vm443, %v1949, 0.0
        %v2078 = vsel %vm444, %v1949, 0.0
        %v2079 = vsel %vm445, %v1953, 0.0
        %v2080 = vsel %vm446, %v1953, 0.0
        %v2081 = vsel %vm447, %v1953, 0.0
        %v2082 = vsel %vm448, %v1953, 0.0
        %v2083 = vsel %vm449, %v1957, 0.0
        %v2084 = vsel %vm450, %v1957, 0.0
        %v2085 = vsel %vm451, %v1957, 0.0
        %v2086 = vsel %vm452, %v1957, 0.0
        %v2087 = vsel %vm453, %v1961, 0.0
        %v2088 = vsel %vm454, %v1961, 0.0
        %v2089 = vsel %vm455, %v1961, 0.0
        %v2090 = vsel %vm456, %v1961, 0.0
        %v2091 = vsel %vm457, %v1965, 0.0
        %v2092 = vsel %vm458, %v1965, 0.0
        %v2093 = vsel %vm459, %v1965, 0.0
        %v2094 = vsel %vm460, %v1965, 0.0
        %v2095 = vsel %vm461, %v1969, 0.0
        %v2096 = vsel %vm462, %v1969, 0.0
        %v2097 = vsel %vm463, %v1969, 0.0
        %v2098 = vsel %vm464, %v1969, 0.0
        %v2099 = vsel %vm465, %v1973, 0.0
        %v2100 = vsel %vm466, %v1973, 0.0
        %v2101 = vsel %vm467, %v1973, 0.0
        %v2102 = vsel %vm468, %v1973, 0.0
        %v2103 = vsel %vm469, %v1977, 0.0
        %v2104 = vsel %vm470, %v1977, 0.0
        %v2105 = vsel %vm471, %v1977, 0.0
        %v2106 = vsel %vm472, %v1977, 0.0
        %v2107 = vsel %vm473, %v1981, 0.0
        %v2108 = vsel %vm474, %v1981, 0.0
        %v2109 = vsel %vm475, %v1981, 0.0
        %v2110 = vsel %vm476, %v1981, 0.0
        %v2111 = vsel %vm477, %v1985, 0.0
        %v2112 = vsel %vm478, %v1985, 0.0
        %v2113 = vsel %vm479, %v1985, 0.0
        %v2114 = vsel %vm480, %v1985, 0.0
        %v2115 = vsel %vm481, %v1989, 0.0
        %v2116 = vsel %vm482, %v1989, 0.0
        %v2117 = vsel %vm483, %v1989, 0.0
        %v2118 = vsel %vm484, %v1989, 0.0
        %v2119 = vsel %vm485, %v1993, 0.0
        %v2120 = vsel %vm486, %v1993, 0.0
        %v2121 = vsel %vm487, %v1993, 0.0
        %v2122 = vsel %vm488, %v1993, 0.0
        %v2123 = vsel %vm489, %v1997, 0.0
        %v2124 = vsel %vm490, %v1997, 0.0
        %v2125 = vsel %vm491, %v1997, 0.0
        %v2126 = vsel %vm492, %v1997, 0.0
        %v2127 = vsel %vm493, %v2001, 0.0
        %v2128 = vsel %vm494, %v2001, 0.0
        %v2129 = vsel %vm495, %v2001, 0.0
        %v2130 = vsel %vm496, %v2001, 0.0
        %v2131 = vsel %vm497, %v2005, 0.0
        %v2132 = vsel %vm498, %v2005, 0.0
        %v2133 = vsel %vm499, %v2005, 0.0
        %v2134 = vsel %vm500, %v2005, 0.0
        %v2135 = vsel %vm501, %v2009, 0.0
        %v2136 = vsel %vm502, %v2009, 0.0
        %v2137 = vsel %vm503, %v2009, 0.0
        %v2138 = vsel %vm504, %v2009, 0.0
        %v2139 = vsel %vm505, %v2013, 0.0
        %v2140 = vsel %vm506, %v2013, 0.0
        %v2141 = vsel %vm507, %v2013, 0.0
        %v2142 = vsel %vm508, %v2013, 0.0
        %v2143 = vsel %vm509, %v2017, 0.0
        %v2144 = vsel %vm510, %v2017, 0.0
        %v2145 = vsel %vm511, %v2017, 0.0
        %v2146 = vsel %vm512, %v2017, 0.0
        %v2147 = vsel %vm513, %v2021, 0.0
        %v2148 = vsel %vm514, %v2021, 0.0
        %v2149 = vsel %vm515, %v2021, 0.0
        %v2150 = vsel %vm516, %v2021, 0.0
        %v2151 = vmax.f32 %v2023, %v2027
        %v2152 = vmax.f32 %v2151, %v2031
        %v2153 = vmax.f32 %v2152, %v2035
        %v2154 = vmax.f32 %v2153, %v2039
        %v2155 = vmax.f32 %v2154, %v2043
        %v2156 = vmax.f32 %v2155, %v2047
        %v2157 = vmax.f32 %v2156, %v2051
        %v2158 = vmax.f32 %v2157, %v2055
        %v2159 = vmax.f32 %v2158, %v2059
        %v2160 = vmax.f32 %v2159, %v2063
        %v2161 = vmax.f32 %v2160, %v2067
        %v2162 = vmax.f32 %v2161, %v2071
        %v2163 = vmax.f32 %v2162, %v2075
        %v2164 = vmax.f32 %v2163, %v2079
        %v2165 = vmax.f32 %v2164, %v2083
        %v2166 = vmax.f32 %v2165, %v2087
        %v2167 = vmax.f32 %v2166, %v2091
        %v2168 = vmax.f32 %v2167, %v2095
        %v2169 = vmax.f32 %v2168, %v2099
        %v2170 = vmax.f32 %v2169, %v2103
        %v2171 = vmax.f32 %v2170, %v2107
        %v2172 = vmax.f32 %v2171, %v2111
        %v2173 = vmax.f32 %v2172, %v2115
        %v2174 = vmax.f32 %v2173, %v2119
        %v2175 = vmax.f32 %v2174, %v2123
        %v2176 = vmax.f32 %v2175, %v2127
        %v2177 = vmax.f32 %v2176, %v2131
        %v2178 = vmax.f32 %v2177, %v2135
        %v2179 = vmax.f32 %v2178, %v2139
        %v2180 = vmax.f32 %v2179, %v2143
        %v2181 = vmax.f32 %v2180, %v2147
        %v2182 = vrot.slane %v2181, 4
        %v2183 = vmax.f32 %v2181, %v2182
        %v2184 = vrot.slane %v2183, 2
        %v2185 = vmax.f32 %v2183, %v2184
        %v2186 = vrot.slane %v2185, 1
        %v2187 = vmax.f32 %v2185, %v2186
        %v2188 = vmax.f32 %v2024, %v2028
        %v2189 = vmax.f32 %v2188, %v2032
        %v2190 = vmax.f32 %v2189, %v2036
        %v2191 = vmax.f32 %v2190, %v2040
        %v2192 = vmax.f32 %v2191, %v2044
        %v2193 = vmax.f32 %v2192, %v2048
        %v2194 = vmax.f32 %v2193, %v2052
        %v2195 = vmax.f32 %v2194, %v2056
        %v2196 = vmax.f32 %v2195, %v2060
        %v2197 = vmax.f32 %v2196, %v2064
        %v2198 = vmax.f32 %v2197, %v2068
        %v2199 = vmax.f32 %v2198, %v2072
        %v2200 = vmax.f32 %v2199, %v2076
        %v2201 = vmax.f32 %v2200, %v2080
        %v2202 = vmax.f32 %v2201, %v2084
        %v2203 = vmax.f32 %v2202, %v2088
        %v2204 = vmax.f32 %v2203, %v2092
        %v2205 = vmax.f32 %v2204, %v2096
        %v2206 = vmax.f32 %v2205, %v2100
        %v2207 = vmax.f32 %v2206, %v2104
        %v2208 = vmax.f32 %v2207, %v2108
        %v2209 = vmax.f32 %v2208, %v2112
        %v2210 = vmax.f32 %v2209, %v2116
        %v2211 = vmax.f32 %v2210, %v2120
        %v2212 = vmax.f32 %v2211, %v2124
        %v2213 = vmax.f32 %v2212, %v2128
        %v2214 = vmax.f32 %v2213, %v2132
        %v2215 = vmax.f32 %v2214, %v2136
        %v2216 = vmax.f32 %v2215, %v2140
        %v2217 = vmax.f32 %v2216, %v2144
        %v2218 = vmax.f32 %v2217, %v2148
        %v2219 = vrot.slane %v2218, 4
        %v2220 = vmax.f32 %v2218, %v2219
        %v2221 = vrot.slane %v2220, 2
        %v2222 = vmax.f32 %v2220, %v2221
        %v2223 = vrot.slane %v2222, 1
        %v2224 = vmax.f32 %v2222, %v2223
        %v2225 = vmax.f32 %v2025, %v2029
        %v2226 = vmax.f32 %v2225, %v2033
        %v2227 = vmax.f32 %v2226, %v2037
        %v2228 = vmax.f32 %v2227, %v2041
        %v2229 = vmax.f32 %v2228, %v2045
        %v2230 = vmax.f32 %v2229, %v2049
        %v2231 = vmax.f32 %v2230, %v2053
        %v2232 = vmax.f32 %v2231, %v2057
        %v2233 = vmax.f32 %v2232, %v2061
        %v2234 = vmax.f32 %v2233, %v2065
        %v2235 = vmax.f32 %v2234, %v2069
        %v2236 = vmax.f32 %v2235, %v2073
        %v2237 = vmax.f32 %v2236, %v2077
        %v2238 = vmax.f32 %v2237, %v2081
        %v2239 = vmax.f32 %v2238, %v2085
        %v2240 = vmax.f32 %v2239, %v2089
        %v2241 = vmax.f32 %v2240, %v2093
        %v2242 = vmax.f32 %v2241, %v2097
        %v2243 = vmax.f32 %v2242, %v2101
        %v2244 = vmax.f32 %v2243, %v2105
        %v2245 = vmax.f32 %v2244, %v2109
        %v2246 = vmax.f32 %v2245, %v2113
        %v2247 = vmax.f32 %v2246, %v2117
        %v2248 = vmax.f32 %v2247, %v2121
        %v2249 = vmax.f32 %v2248, %v2125
        %v2250 = vmax.f32 %v2249, %v2129
        %v2251 = vmax.f32 %v2250, %v2133
        %v2252 = vmax.f32 %v2251, %v2137
        %v2253 = vmax.f32 %v2252, %v2141
        %v2254 = vmax.f32 %v2253, %v2145
        %v2255 = vmax.f32 %v2254, %v2149
        %v2256 = vrot.slane %v2255, 4
        %v2257 = vmax.f32 %v2255, %v2256
        %v2258 = vrot.slane %v2257, 2
        %v2259 = vmax.f32 %v2257, %v2258
        %v2260 = vrot.slane %v2259, 1
        %v2261 = vmax.f32 %v2259, %v2260
        %v2262 = vmax.f32 %v2026, %v2030
        %v2263 = vmax.f32 %v2262, %v2034
        %v2264 = vmax.f32 %v2263, %v2038
        %v2265 = vmax.f32 %v2264, %v2042
        %v2266 = vmax.f32 %v2265, %v2046
        %v2267 = vmax.f32 %v2266, %v2050
        %v2268 = vmax.f32 %v2267, %v2054
        %v2269 = vmax.f32 %v2268, %v2058
        %v2270 = vmax.f32 %v2269, %v2062
        %v2271 = vmax.f32 %v2270, %v2066
        %v2272 = vmax.f32 %v2271, %v2070
        %v2273 = vmax.f32 %v2272, %v2074
        %v2274 = vmax.f32 %v2273, %v2078
        %v2275 = vmax.f32 %v2274, %v2082
        %v2276 = vmax.f32 %v2275, %v2086
        %v2277 = vmax.f32 %v2276, %v2090
        %v2278 = vmax.f32 %v2277, %v2094
        %v2279 = vmax.f32 %v2278, %v2098
        %v2280 = vmax.f32 %v2279, %v2102
        %v2281 = vmax.f32 %v2280, %v2106
        %v2282 = vmax.f32 %v2281, %v2110
        %v2283 = vmax.f32 %v2282, %v2114
        %v2284 = vmax.f32 %v2283, %v2118
        %v2285 = vmax.f32 %v2284, %v2122
        %v2286 = vmax.f32 %v2285, %v2126
        %v2287 = vmax.f32 %v2286, %v2130
        %v2288 = vmax.f32 %v2287, %v2134
        %v2289 = vmax.f32 %v2288, %v2138
        %v2290 = vmax.f32 %v2289, %v2142
        %v2291 = vmax.f32 %v2290, %v2146
        %v2292 = vmax.f32 %v2291, %v2150
        %v2293 = vrot.slane %v2292, 4
        %v2294 = vmax.f32 %v2292, %v2293
        %v2295 = vrot.slane %v2294, 2
        %v2296 = vmax.f32 %v2294, %v2295
        %v2297 = vrot.slane %v2296, 1
        %v2298 = vmax.f32 %v2296, %v2297
        %s2299 = scalar_lea.vmem %s194, 3 [#allocation2]
        %v2300 = vld [vmem:[%s2299] ss:$4 sm:$0xf]
        %v2305 = vcombine.low %v2187, %v2224
        %v2306 = vcombine.low %v2261, %v2298
        %v2308 = vunpack.c.l.s4 1966171168
        %v2309 = vunpack.c.0.s8 %v2308
        %v2310 = vlaneseq
        %v2311 = vshrl.u32 %v2310, 7
        %v2312 = vsub.s32 %v2309, %v2311
        %v2313 = vrot.slane %v2305, %v2312
        %v2315 = vunpack.c.l.s4 1966171168
        %v2316 = vunpack.c.0.s8 %v2315
        %v2317 = vlaneseq
        %v2318 = vshrl.u32 %v2317, 7
        %v2319 = vsub.s32 %v2316, %v2318
        %v2320 = vrot.slane %v2306, %v2319
        %v2321 = vcombine.low %v2313, %v2320
        %v2323 = vunpack.c.l.s4 1966171168
        %v2324 = vunpack.c.0.s8 %v2323
        %v2325 = vlaneseq
        %v2326 = vshrl.u32 %v2325, 7
        %v2327 = vsub.s32 %v2324, %v2326
        %v2328 = vrot.slane %v2321, %v2327
        %v2330 = vmax.f32 %v2300, %v2328
        %2331 = vst.msk [vmem:[%s2299] ss:$4 sm:$0xf] %vm1019, %v2330
        %v2332 = vld [vmem:[%s203 + $0x100] sm:$0xff]
        %v2333 = vld [vmem:[%s203 + $0x108] sm:$0xff]
        %v2334 = vld [vmem:[%s203 + $0x110] sm:$0xff]
        %v2335 = vld [vmem:[%s203 + $0x118] sm:$0xff]
        %v2336 = vld [vmem:[%s203 + $0x120] sm:$0xff]
        %v2337 = vld [vmem:[%s203 + $0x128] sm:$0xff]
        %v2338 = vld [vmem:[%s203 + $0x130] sm:$0xff]
        %v2339 = vld [vmem:[%s203 + $0x138] sm:$0xff]
        %v2340 = vld [vmem:[%s203 + $0x140] sm:$0xff]
        %v2341 = vld [vmem:[%s203 + $0x148] sm:$0xff]
        %v2342 = vld [vmem:[%s203 + $0x150] sm:$0xff]
        %v2343 = vld [vmem:[%s203 + $0x158] sm:$0xff]
        %v2344 = vld [vmem:[%s203 + $0x160] sm:$0xff]
        %v2345 = vld [vmem:[%s203 + $0x168] sm:$0xff]
        %v2346 = vld [vmem:[%s203 + $0x170] sm:$0xff]
        %v2347 = vld [vmem:[%s203 + $0x178] sm:$0xff]
        %v2348 = vld [vmem:[%s203 + $0x180] sm:$0xff]
        %v2349 = vld [vmem:[%s203 + $0x188] sm:$0xff]
        %v2350 = vld [vmem:[%s203 + $0x190] sm:$0xff]
        %v2351 = vld [vmem:[%s203 + $0x198] sm:$0xff]
        %v2352 = vld [vmem:[%s203 + $0x1a0] sm:$0xff]
        %v2353 = vld [vmem:[%s203 + $0x1a8] sm:$0xff]
        %v2354 = vld [vmem:[%s203 + $0x1b0] sm:$0xff]
        %v2355 = vld [vmem:[%s203 + $0x1b8] sm:$0xff]
        %v2356 = vld [vmem:[%s203 + $0x1c0] sm:$0xff]
        %v2357 = vld [vmem:[%s203 + $0x1c8] sm:$0xff]
        %v2358 = vld [vmem:[%s203 + $0x1d0] sm:$0xff]
        %v2359 = vld [vmem:[%s203 + $0x1d8] sm:$0xff]
        %v2360 = vld [vmem:[%s203 + $0x1e0] sm:$0xff]
        %v2361 = vld [vmem:[%s203 + $0x1e8] sm:$0xff]
        %v2362 = vld [vmem:[%s203 + $0x1f0] sm:$0xff]
        %v2363 = vld [vmem:[%s203 + $0x1f8] sm:$0xff]
        %v2364 = vsub.s32 %v2332, %v260
        %v2365 = vsub.s32 %v2333, %v260
        %v2366 = vsub.s32 %v2334, %v260
        %v2367 = vsub.s32 %v2335, %v260
        %v2368 = vsub.s32 %v2336, %v260
        %v2369 = vsub.s32 %v2337, %v260
        %v2370 = vsub.s32 %v2338, %v260
        %v2371 = vsub.s32 %v2339, %v260
        %v2372 = vsub.s32 %v2340, %v260
        %v2373 = vsub.s32 %v2341, %v260
        %v2374 = vsub.s32 %v2342, %v260
        %v2375 = vsub.s32 %v2343, %v260
        %v2376 = vsub.s32 %v2344, %v260
        %v2377 = vsub.s32 %v2345, %v260
        %v2378 = vsub.s32 %v2346, %v260
        %v2379 = vsub.s32 %v2347, %v260
        %v2380 = vsub.s32 %v2348, %v260
        %v2381 = vsub.s32 %v2349, %v260
        %v2382 = vsub.s32 %v2350, %v260
        %v2383 = vsub.s32 %v2351, %v260
        %v2384 = vsub.s32 %v2352, %v260
        %v2385 = vsub.s32 %v2353, %v260
        %v2386 = vsub.s32 %v2354, %v260
        %v2387 = vsub.s32 %v2355, %v260
        %v2388 = vsub.s32 %v2356, %v260
        %v2389 = vsub.s32 %v2357, %v260
        %v2390 = vsub.s32 %v2358, %v260
        %v2391 = vsub.s32 %v2359, %v260
        %v2392 = vsub.s32 %v2360, %v260
        %v2393 = vsub.s32 %v2361, %v260
        %v2394 = vsub.s32 %v2362, %v260
        %v2395 = vsub.s32 %v2363, %v260
        %2396 = vset.pattern.permute.xlu0 0
        %2397 = vperm.xlu0 %2396, %v2364
        %v2398 = vpop.permute.xlu0 %2397
        %2399 = vset.pattern.permute.xlu0 0
        %2400 = vperm.xlu0 %2399, %v2365
        %v2401 = vpop.permute.xlu0 %2400
        %2402 = vset.pattern.permute.xlu0 0
        %2403 = vperm.xlu0 %2402, %v2366
        %v2404 = vpop.permute.xlu0 %2403
        %2405 = vset.pattern.permute.xlu0 0
        %2406 = vperm.xlu0 %2405, %v2367
        %v2407 = vpop.permute.xlu0 %2406
        %2408 = vset.pattern.permute.xlu0 0
        %2409 = vperm.xlu0 %2408, %v2368
        %v2410 = vpop.permute.xlu0 %2409
        %2411 = vset.pattern.permute.xlu0 0
        %2412 = vperm.xlu0 %2411, %v2369
        %v2413 = vpop.permute.xlu0 %2412
        %2414 = vset.pattern.permute.xlu0 0
        %2415 = vperm.xlu0 %2414, %v2370
        %v2416 = vpop.permute.xlu0 %2415
        %2417 = vset.pattern.permute.xlu0 0
        %2418 = vperm.xlu0 %2417, %v2371
        %v2419 = vpop.permute.xlu0 %2418
        %2420 = vset.pattern.permute.xlu0 0
        %2421 = vperm.xlu0 %2420, %v2372
        %v2422 = vpop.permute.xlu0 %2421
        %2423 = vset.pattern.permute.xlu0 0
        %2424 = vperm.xlu0 %2423, %v2373
        %v2425 = vpop.permute.xlu0 %2424
        %2426 = vset.pattern.permute.xlu0 0
        %2427 = vperm.xlu0 %2426, %v2374
        %v2428 = vpop.permute.xlu0 %2427
        %2429 = vset.pattern.permute.xlu0 0
        %2430 = vperm.xlu0 %2429, %v2375
        %v2431 = vpop.permute.xlu0 %2430
        %2432 = vset.pattern.permute.xlu0 0
        %2433 = vperm.xlu0 %2432, %v2376
        %v2434 = vpop.permute.xlu0 %2433
        %2435 = vset.pattern.permute.xlu0 0
        %2436 = vperm.xlu0 %2435, %v2377
        %v2437 = vpop.permute.xlu0 %2436
        %2438 = vset.pattern.permute.xlu0 0
        %2439 = vperm.xlu0 %2438, %v2378
        %v2440 = vpop.permute.xlu0 %2439
        %2441 = vset.pattern.permute.xlu0 0
        %2442 = vperm.xlu0 %2441, %v2379
        %v2443 = vpop.permute.xlu0 %2442
        %2444 = vset.pattern.permute.xlu0 0
        %2445 = vperm.xlu0 %2444, %v2380
        %v2446 = vpop.permute.xlu0 %2445
        %2447 = vset.pattern.permute.xlu0 0
        %2448 = vperm.xlu0 %2447, %v2381
        %v2449 = vpop.permute.xlu0 %2448
        %2450 = vset.pattern.permute.xlu0 0
        %2451 = vperm.xlu0 %2450, %v2382
        %v2452 = vpop.permute.xlu0 %2451
        %2453 = vset.pattern.permute.xlu0 0
        %2454 = vperm.xlu0 %2453, %v2383
        %v2455 = vpop.permute.xlu0 %2454
        %2456 = vset.pattern.permute.xlu0 0
        %2457 = vperm.xlu0 %2456, %v2384
        %v2458 = vpop.permute.xlu0 %2457
        %2459 = vset.pattern.permute.xlu0 0
        %2460 = vperm.xlu0 %2459, %v2385
        %v2461 = vpop.permute.xlu0 %2460
        %2462 = vset.pattern.permute.xlu0 0
        %2463 = vperm.xlu0 %2462, %v2386
        %v2464 = vpop.permute.xlu0 %2463
        %2465 = vset.pattern.permute.xlu0 0
        %2466 = vperm.xlu0 %2465, %v2387
        %v2467 = vpop.permute.xlu0 %2466
        %2468 = vset.pattern.permute.xlu0 0
        %2469 = vperm.xlu0 %2468, %v2388
        %v2470 = vpop.permute.xlu0 %2469
        %2471 = vset.pattern.permute.xlu0 0
        %2472 = vperm.xlu0 %2471, %v2389
        %v2473 = vpop.permute.xlu0 %2472
        %2474 = vset.pattern.permute.xlu0 0
        %2475 = vperm.xlu0 %2474, %v2390
        %v2476 = vpop.permute.xlu0 %2475
        %2477 = vset.pattern.permute.xlu0 0
        %2478 = vperm.xlu0 %2477, %v2391
        %v2479 = vpop.permute.xlu0 %2478
        %2480 = vset.pattern.permute.xlu0 0
        %2481 = vperm.xlu0 %2480, %v2392
        %v2482 = vpop.permute.xlu0 %2481
        %2483 = vset.pattern.permute.xlu0 0
        %2484 = vperm.xlu0 %2483, %v2393
        %v2485 = vpop.permute.xlu0 %2484
        %2486 = vset.pattern.permute.xlu0 0
        %2487 = vperm.xlu0 %2486, %v2394
        %v2488 = vpop.permute.xlu0 %2487
        %2489 = vset.pattern.permute.xlu0 0
        %2490 = vperm.xlu0 %2489, %v2395
        %v2491 = vpop.permute.xlu0 %2490
        %vm2492 = vcmp.eq.s32.totalorder %v224, %v2398
        %vm2493 = vcmp.eq.s32.totalorder %v225, %v2398
        %vm2494 = vcmp.eq.s32.totalorder %v226, %v2398
        %vm2495 = vcmp.eq.s32.totalorder %v227, %v2398
        %vm2496 = vcmp.eq.s32.totalorder %v224, %v2401
        %vm2497 = vcmp.eq.s32.totalorder %v225, %v2401
        %vm2498 = vcmp.eq.s32.totalorder %v226, %v2401
        %vm2499 = vcmp.eq.s32.totalorder %v227, %v2401
        %vm2500 = vcmp.eq.s32.totalorder %v224, %v2404
        %vm2501 = vcmp.eq.s32.totalorder %v225, %v2404
        %vm2502 = vcmp.eq.s32.totalorder %v226, %v2404
        %vm2503 = vcmp.eq.s32.totalorder %v227, %v2404
        %vm2504 = vcmp.eq.s32.totalorder %v224, %v2407
        %vm2505 = vcmp.eq.s32.totalorder %v225, %v2407
        %vm2506 = vcmp.eq.s32.totalorder %v226, %v2407
        %vm2507 = vcmp.eq.s32.totalorder %v227, %v2407
        %vm2508 = vcmp.eq.s32.totalorder %v224, %v2410
        %vm2509 = vcmp.eq.s32.totalorder %v225, %v2410
        %vm2510 = vcmp.eq.s32.totalorder %v226, %v2410
        %vm2511 = vcmp.eq.s32.totalorder %v227, %v2410
        %vm2512 = vcmp.eq.s32.totalorder %v224, %v2413
        %vm2513 = vcmp.eq.s32.totalorder %v225, %v2413
        %vm2514 = vcmp.eq.s32.totalorder %v226, %v2413
        %vm2515 = vcmp.eq.s32.totalorder %v227, %v2413
        %vm2516 = vcmp.eq.s32.totalorder %v224, %v2416
        %vm2517 = vcmp.eq.s32.totalorder %v225, %v2416
        %vm2518 = vcmp.eq.s32.totalorder %v226, %v2416
        %vm2519 = vcmp.eq.s32.totalorder %v227, %v2416
        %vm2520 = vcmp.eq.s32.totalorder %v224, %v2419
        %vm2521 = vcmp.eq.s32.totalorder %v225, %v2419
        %vm2522 = vcmp.eq.s32.totalorder %v226, %v2419
        %vm2523 = vcmp.eq.s32.totalorder %v227, %v2419
        %vm2524 = vcmp.eq.s32.totalorder %v224, %v2422
        %vm2525 = vcmp.eq.s32.totalorder %v225, %v2422
        %vm2526 = vcmp.eq.s32.totalorder %v226, %v2422
        %vm2527 = vcmp.eq.s32.totalorder %v227, %v2422
        %vm2528 = vcmp.eq.s32.totalorder %v224, %v2425
        %vm2529 = vcmp.eq.s32.totalorder %v225, %v2425
        %vm2530 = vcmp.eq.s32.totalorder %v226, %v2425
        %vm2531 = vcmp.eq.s32.totalorder %v227, %v2425
        %vm2532 = vcmp.eq.s32.totalorder %v224, %v2428
        %vm2533 = vcmp.eq.s32.totalorder %v225, %v2428
        %vm2534 = vcmp.eq.s32.totalorder %v226, %v2428
        %vm2535 = vcmp.eq.s32.totalorder %v227, %v2428
        %vm2536 = vcmp.eq.s32.totalorder %v224, %v2431
        %vm2537 = vcmp.eq.s32.totalorder %v225, %v2431
        %vm2538 = vcmp.eq.s32.totalorder %v226, %v2431
        %vm2539 = vcmp.eq.s32.totalorder %v227, %v2431
        %vm2540 = vcmp.eq.s32.totalorder %v224, %v2434
        %vm2541 = vcmp.eq.s32.totalorder %v225, %v2434
        %vm2542 = vcmp.eq.s32.totalorder %v226, %v2434
        %vm2543 = vcmp.eq.s32.totalorder %v227, %v2434
        %vm2544 = vcmp.eq.s32.totalorder %v224, %v2437
        %vm2545 = vcmp.eq.s32.totalorder %v225, %v2437
        %vm2546 = vcmp.eq.s32.totalorder %v226, %v2437
        %vm2547 = vcmp.eq.s32.totalorder %v227, %v2437
        %vm2548 = vcmp.eq.s32.totalorder %v224, %v2440
        %vm2549 = vcmp.eq.s32.totalorder %v225, %v2440
        %vm2550 = vcmp.eq.s32.totalorder %v226, %v2440
        %vm2551 = vcmp.eq.s32.totalorder %v227, %v2440
        %vm2552 = vcmp.eq.s32.totalorder %v224, %v2443
        %vm2553 = vcmp.eq.s32.totalorder %v225, %v2443
        %vm2554 = vcmp.eq.s32.totalorder %v226, %v2443
        %vm2555 = vcmp.eq.s32.totalorder %v227, %v2443
        %vm2556 = vcmp.eq.s32.totalorder %v224, %v2446
        %vm2557 = vcmp.eq.s32.totalorder %v225, %v2446
        %vm2558 = vcmp.eq.s32.totalorder %v226, %v2446
        %vm2559 = vcmp.eq.s32.totalorder %v227, %v2446
        %vm2560 = vcmp.eq.s32.totalorder %v224, %v2449
        %vm2561 = vcmp.eq.s32.totalorder %v225, %v2449
        %vm2562 = vcmp.eq.s32.totalorder %v226, %v2449
        %vm2563 = vcmp.eq.s32.totalorder %v227, %v2449
        %vm2564 = vcmp.eq.s32.totalorder %v224, %v2452
        %vm2565 = vcmp.eq.s32.totalorder %v225, %v2452
        %vm2566 = vcmp.eq.s32.totalorder %v226, %v2452
        %vm2567 = vcmp.eq.s32.totalorder %v227, %v2452
        %vm2568 = vcmp.eq.s32.totalorder %v224, %v2455
        %vm2569 = vcmp.eq.s32.totalorder %v225, %v2455
        %vm2570 = vcmp.eq.s32.totalorder %v226, %v2455
        %vm2571 = vcmp.eq.s32.totalorder %v227, %v2455
        %vm2572 = vcmp.eq.s32.totalorder %v224, %v2458
        %vm2573 = vcmp.eq.s32.totalorder %v225, %v2458
        %vm2574 = vcmp.eq.s32.totalorder %v226, %v2458
        %vm2575 = vcmp.eq.s32.totalorder %v227, %v2458
        %vm2576 = vcmp.eq.s32.totalorder %v224, %v2461
        %vm2577 = vcmp.eq.s32.totalorder %v225, %v2461
        %vm2578 = vcmp.eq.s32.totalorder %v226, %v2461
        %vm2579 = vcmp.eq.s32.totalorder %v227, %v2461
        %vm2580 = vcmp.eq.s32.totalorder %v224, %v2464
        %vm2581 = vcmp.eq.s32.totalorder %v225, %v2464
        %vm2582 = vcmp.eq.s32.totalorder %v226, %v2464
        %vm2583 = vcmp.eq.s32.totalorder %v227, %v2464
        %vm2584 = vcmp.eq.s32.totalorder %v224, %v2467
        %vm2585 = vcmp.eq.s32.totalorder %v225, %v2467
        %vm2586 = vcmp.eq.s32.totalorder %v226, %v2467
        %vm2587 = vcmp.eq.s32.totalorder %v227, %v2467
        %vm2588 = vcmp.eq.s32.totalorder %v224, %v2470
        %vm2589 = vcmp.eq.s32.totalorder %v225, %v2470
        %vm2590 = vcmp.eq.s32.totalorder %v226, %v2470
        %vm2591 = vcmp.eq.s32.totalorder %v227, %v2470
        %vm2592 = vcmp.eq.s32.totalorder %v224, %v2473
        %vm2593 = vcmp.eq.s32.totalorder %v225, %v2473
        %vm2594 = vcmp.eq.s32.totalorder %v226, %v2473
        %vm2595 = vcmp.eq.s32.totalorder %v227, %v2473
        %vm2596 = vcmp.eq.s32.totalorder %v224, %v2476
        %vm2597 = vcmp.eq.s32.totalorder %v225, %v2476
        %vm2598 = vcmp.eq.s32.totalorder %v226, %v2476
        %vm2599 = vcmp.eq.s32.totalorder %v227, %v2476
        %vm2600 = vcmp.eq.s32.totalorder %v224, %v2479
        %vm2601 = vcmp.eq.s32.totalorder %v225, %v2479
        %vm2602 = vcmp.eq.s32.totalorder %v226, %v2479
        %vm2603 = vcmp.eq.s32.totalorder %v227, %v2479
        %vm2604 = vcmp.eq.s32.totalorder %v224, %v2482
        %vm2605 = vcmp.eq.s32.totalorder %v225, %v2482
        %vm2606 = vcmp.eq.s32.totalorder %v226, %v2482
        %vm2607 = vcmp.eq.s32.totalorder %v227, %v2482
        %vm2608 = vcmp.eq.s32.totalorder %v224, %v2485
        %vm2609 = vcmp.eq.s32.totalorder %v225, %v2485
        %vm2610 = vcmp.eq.s32.totalorder %v226, %v2485
        %vm2611 = vcmp.eq.s32.totalorder %v227, %v2485
        %vm2612 = vcmp.eq.s32.totalorder %v224, %v2488
        %vm2613 = vcmp.eq.s32.totalorder %v225, %v2488
        %vm2614 = vcmp.eq.s32.totalorder %v226, %v2488
        %vm2615 = vcmp.eq.s32.totalorder %v227, %v2488
        %vm2616 = vcmp.eq.s32.totalorder %v224, %v2491
        %vm2617 = vcmp.eq.s32.totalorder %v225, %v2491
        %vm2618 = vcmp.eq.s32.totalorder %v226, %v2491
        %vm2619 = vcmp.eq.s32.totalorder %v227, %v2491
        %v2620 = vld [vmem:[%s213 + $0x100] sm:$0xff]
        %v2621 = vld [vmem:[%s213 + $0x108] sm:$0xff]
        %v2622 = vld [vmem:[%s213 + $0x110] sm:$0xff]
        %v2623 = vld [vmem:[%s213 + $0x118] sm:$0xff]
        %v2624 = vld [vmem:[%s213 + $0x120] sm:$0xff]
        %v2625 = vld [vmem:[%s213 + $0x128] sm:$0xff]
        %v2626 = vld [vmem:[%s213 + $0x130] sm:$0xff]
        %v2627 = vld [vmem:[%s213 + $0x138] sm:$0xff]
        %v2628 = vld [vmem:[%s213 + $0x140] sm:$0xff]
        %v2629 = vld [vmem:[%s213 + $0x148] sm:$0xff]
        %v2630 = vld [vmem:[%s213 + $0x150] sm:$0xff]
        %v2631 = vld [vmem:[%s213 + $0x158] sm:$0xff]
        %v2632 = vld [vmem:[%s213 + $0x160] sm:$0xff]
        %v2633 = vld [vmem:[%s213 + $0x168] sm:$0xff]
        %v2634 = vld [vmem:[%s213 + $0x170] sm:$0xff]
        %v2635 = vld [vmem:[%s213 + $0x178] sm:$0xff]
        %v2636 = vld [vmem:[%s213 + $0x180] sm:$0xff]
        %v2637 = vld [vmem:[%s213 + $0x188] sm:$0xff]
        %v2638 = vld [vmem:[%s213 + $0x190] sm:$0xff]
        %v2639 = vld [vmem:[%s213 + $0x198] sm:$0xff]
        %v2640 = vld [vmem:[%s213 + $0x1a0] sm:$0xff]
        %v2641 = vld [vmem:[%s213 + $0x1a8] sm:$0xff]
        %v2642 = vld [vmem:[%s213 + $0x1b0] sm:$0xff]
        %v2643 = vld [vmem:[%s213 + $0x1b8] sm:$0xff]
        %v2644 = vld [vmem:[%s213 + $0x1c0] sm:$0xff]
        %v2645 = vld [vmem:[%s213 + $0x1c8] sm:$0xff]
        %v2646 = vld [vmem:[%s213 + $0x1d0] sm:$0xff]
        %v2647 = vld [vmem:[%s213 + $0x1d8] sm:$0xff]
        %v2648 = vld [vmem:[%s213 + $0x1e0] sm:$0xff]
        %v2649 = vld [vmem:[%s213 + $0x1e8] sm:$0xff]
        %v2650 = vld [vmem:[%s213 + $0x1f0] sm:$0xff]
        %v2651 = vld [vmem:[%s213 + $0x1f8] sm:$0xff]
        %2653 = vset.pattern.permute.xlu0 0
        %2654 = vperm.xlu0 %2653, %v2620
        %v2655 = vpop.permute.xlu0 %2654
        %2658 = vset.pattern.permute.xlu0 0
        %2659 = vperm.xlu0 %2658, %v2621
        %v2660 = vpop.permute.xlu0 %2659
        %2663 = vset.pattern.permute.xlu0 0
        %2664 = vperm.xlu0 %2663, %v2622
        %v2665 = vpop.permute.xlu0 %2664
        %2668 = vset.pattern.permute.xlu0 0
        %2669 = vperm.xlu0 %2668, %v2623
        %v2670 = vpop.permute.xlu0 %2669
        %2673 = vset.pattern.permute.xlu0 0
        %2674 = vperm.xlu0 %2673, %v2624
        %v2675 = vpop.permute.xlu0 %2674
        %2678 = vset.pattern.permute.xlu0 0
        %2679 = vperm.xlu0 %2678, %v2625
        %v2680 = vpop.permute.xlu0 %2679
        %2683 = vset.pattern.permute.xlu0 0
        %2684 = vperm.xlu0 %2683, %v2626
        %v2685 = vpop.permute.xlu0 %2684
        %2688 = vset.pattern.permute.xlu0 0
        %2689 = vperm.xlu0 %2688, %v2627
        %v2690 = vpop.permute.xlu0 %2689
        %2693 = vset.pattern.permute.xlu0 0
        %2694 = vperm.xlu0 %2693, %v2628
        %v2695 = vpop.permute.xlu0 %2694
        %2698 = vset.pattern.permute.xlu0 0
        %2699 = vperm.xlu0 %2698, %v2629
        %v2700 = vpop.permute.xlu0 %2699
        %2703 = vset.pattern.permute.xlu0 0
        %2704 = vperm.xlu0 %2703, %v2630
        %v2705 = vpop.permute.xlu0 %2704
        %2708 = vset.pattern.permute.xlu0 0
        %2709 = vperm.xlu0 %2708, %v2631
        %v2710 = vpop.permute.xlu0 %2709
        %2713 = vset.pattern.permute.xlu0 0
        %2714 = vperm.xlu0 %2713, %v2632
        %v2715 = vpop.permute.xlu0 %2714
        %2718 = vset.pattern.permute.xlu0 0
        %2719 = vperm.xlu0 %2718, %v2633
        %v2720 = vpop.permute.xlu0 %2719
        %2723 = vset.pattern.permute.xlu0 0
        %2724 = vperm.xlu0 %2723, %v2634
        %v2725 = vpop.permute.xlu0 %2724
        %2728 = vset.pattern.permute.xlu0 0
        %2729 = vperm.xlu0 %2728, %v2635
        %v2730 = vpop.permute.xlu0 %2729
        %2733 = vset.pattern.permute.xlu0 0
        %2734 = vperm.xlu0 %2733, %v2636
        %v2735 = vpop.permute.xlu0 %2734
        %2738 = vset.pattern.permute.xlu0 0
        %2739 = vperm.xlu0 %2738, %v2637
        %v2740 = vpop.permute.xlu0 %2739
        %2743 = vset.pattern.permute.xlu0 0
        %2744 = vperm.xlu0 %2743, %v2638
        %v2745 = vpop.permute.xlu0 %2744
        %2748 = vset.pattern.permute.xlu0 0
        %2749 = vperm.xlu0 %2748, %v2639
        %v2750 = vpop.permute.xlu0 %2749
        %2753 = vset.pattern.permute.xlu0 0
        %2754 = vperm.xlu0 %2753, %v2640
        %v2755 = vpop.permute.xlu0 %2754
        %2758 = vset.pattern.permute.xlu0 0
        %2759 = vperm.xlu0 %2758, %v2641
        %v2760 = vpop.permute.xlu0 %2759
        %2763 = vset.pattern.permute.xlu0 0
        %2764 = vperm.xlu0 %2763, %v2642
        %v2765 = vpop.permute.xlu0 %2764
        %2768 = vset.pattern.permute.xlu0 0
        %2769 = vperm.xlu0 %2768, %v2643
        %v2770 = vpop.permute.xlu0 %2769
        %2773 = vset.pattern.permute.xlu0 0
        %2774 = vperm.xlu0 %2773, %v2644
        %v2775 = vpop.permute.xlu0 %2774
        %2778 = vset.pattern.permute.xlu0 0
        %2779 = vperm.xlu0 %2778, %v2645
        %v2780 = vpop.permute.xlu0 %2779
        %2783 = vset.pattern.permute.xlu0 0
        %2784 = vperm.xlu0 %2783, %v2646
        %v2785 = vpop.permute.xlu0 %2784
        %2788 = vset.pattern.permute.xlu0 0
        %2789 = vperm.xlu0 %2788, %v2647
        %v2790 = vpop.permute.xlu0 %2789
        %2793 = vset.pattern.permute.xlu0 0
        %2794 = vperm.xlu0 %2793, %v2648
        %v2795 = vpop.permute.xlu0 %2794
        %2798 = vset.pattern.permute.xlu0 0
        %2799 = vperm.xlu0 %2798, %v2649
        %v2800 = vpop.permute.xlu0 %2799
        %2803 = vset.pattern.permute.xlu0 0
        %2804 = vperm.xlu0 %2803, %v2650
        %v2805 = vpop.permute.xlu0 %2804
        %2808 = vset.pattern.permute.xlu0 0
        %2809 = vperm.xlu0 %2808, %v2651
        %v2810 = vpop.permute.xlu0 %2809
        %v2812 = vsel %vm2492, %v2655, 0.0
        %v2813 = vsel %vm2493, %v2655, 0.0
        %v2814 = vsel %vm2494, %v2655, 0.0
        %v2815 = vsel %vm2495, %v2655, 0.0
        %v2816 = vsel %vm2496, %v2660, 0.0
        %v2817 = vsel %vm2497, %v2660, 0.0
        %v2818 = vsel %vm2498, %v2660, 0.0
        %v2819 = vsel %vm2499, %v2660, 0.0
        %v2820 = vsel %vm2500, %v2665, 0.0
        %v2821 = vsel %vm2501, %v2665, 0.0
        %v2822 = vsel %vm2502, %v2665, 0.0
        %v2823 = vsel %vm2503, %v2665, 0.0
        %v2824 = vsel %vm2504, %v2670, 0.0
        %v2825 = vsel %vm2505, %v2670, 0.0
        %v2826 = vsel %vm2506, %v2670, 0.0
        %v2827 = vsel %vm2507, %v2670, 0.0
        %v2828 = vsel %vm2508, %v2675, 0.0
        %v2829 = vsel %vm2509, %v2675, 0.0
        %v2830 = vsel %vm2510, %v2675, 0.0
        %v2831 = vsel %vm2511, %v2675, 0.0
        %v2832 = vsel %vm2512, %v2680, 0.0
        %v2833 = vsel %vm2513, %v2680, 0.0
        %v2834 = vsel %vm2514, %v2680, 0.0
        %v2835 = vsel %vm2515, %v2680, 0.0
        %v2836 = vsel %vm2516, %v2685, 0.0
        %v2837 = vsel %vm2517, %v2685, 0.0
        %v2838 = vsel %vm2518, %v2685, 0.0
        %v2839 = vsel %vm2519, %v2685, 0.0
        %v2840 = vsel %vm2520, %v2690, 0.0
        %v2841 = vsel %vm2521, %v2690, 0.0
        %v2842 = vsel %vm2522, %v2690, 0.0
        %v2843 = vsel %vm2523, %v2690, 0.0
        %v2844 = vsel %vm2524, %v2695, 0.0
        %v2845 = vsel %vm2525, %v2695, 0.0
        %v2846 = vsel %vm2526, %v2695, 0.0
        %v2847 = vsel %vm2527, %v2695, 0.0
        %v2848 = vsel %vm2528, %v2700, 0.0
        %v2849 = vsel %vm2529, %v2700, 0.0
        %v2850 = vsel %vm2530, %v2700, 0.0
        %v2851 = vsel %vm2531, %v2700, 0.0
        %v2852 = vsel %vm2532, %v2705, 0.0
        %v2853 = vsel %vm2533, %v2705, 0.0
        %v2854 = vsel %vm2534, %v2705, 0.0
        %v2855 = vsel %vm2535, %v2705, 0.0
        %v2856 = vsel %vm2536, %v2710, 0.0
        %v2857 = vsel %vm2537, %v2710, 0.0
        %v2858 = vsel %vm2538, %v2710, 0.0
        %v2859 = vsel %vm2539, %v2710, 0.0
        %v2860 = vsel %vm2540, %v2715, 0.0
        %v2861 = vsel %vm2541, %v2715, 0.0
        %v2862 = vsel %vm2542, %v2715, 0.0
        %v2863 = vsel %vm2543, %v2715, 0.0
        %v2864 = vsel %vm2544, %v2720, 0.0
        %v2865 = vsel %vm2545, %v2720, 0.0
        %v2866 = vsel %vm2546, %v2720, 0.0
        %v2867 = vsel %vm2547, %v2720, 0.0
        %v2868 = vsel %vm2548, %v2725, 0.0
        %v2869 = vsel %vm2549, %v2725, 0.0
        %v2870 = vsel %vm2550, %v2725, 0.0
        %v2871 = vsel %vm2551, %v2725, 0.0
        %v2872 = vsel %vm2552, %v2730, 0.0
        %v2873 = vsel %vm2553, %v2730, 0.0
        %v2874 = vsel %vm2554, %v2730, 0.0
        %v2875 = vsel %vm2555, %v2730, 0.0
        %v2876 = vsel %vm2556, %v2735, 0.0
        %v2877 = vsel %vm2557, %v2735, 0.0
        %v2878 = vsel %vm2558, %v2735, 0.0
        %v2879 = vsel %vm2559, %v2735, 0.0
        %v2880 = vsel %vm2560, %v2740, 0.0
        %v2881 = vsel %vm2561, %v2740, 0.0
        %v2882 = vsel %vm2562, %v2740, 0.0
        %v2883 = vsel %vm2563, %v2740, 0.0
        %v2884 = vsel %vm2564, %v2745, 0.0
        %v2885 = vsel %vm2565, %v2745, 0.0
        %v2886 = vsel %vm2566, %v2745, 0.0
        %v2887 = vsel %vm2567, %v2745, 0.0
        %v2888 = vsel %vm2568, %v2750, 0.0
        %v2889 = vsel %vm2569, %v2750, 0.0
        %v2890 = vsel %vm2570, %v2750, 0.0
        %v2891 = vsel %vm2571, %v2750, 0.0
        %v2892 = vsel %vm2572, %v2755, 0.0
        %v2893 = vsel %vm2573, %v2755, 0.0
        %v2894 = vsel %vm2574, %v2755, 0.0
        %v2895 = vsel %vm2575, %v2755, 0.0
        %v2896 = vsel %vm2576, %v2760, 0.0
        %v2897 = vsel %vm2577, %v2760, 0.0
        %v2898 = vsel %vm2578, %v2760, 0.0
        %v2899 = vsel %vm2579, %v2760, 0.0
        %v2900 = vsel %vm2580, %v2765, 0.0
        %v2901 = vsel %vm2581, %v2765, 0.0
        %v2902 = vsel %vm2582, %v2765, 0.0
        %v2903 = vsel %vm2583, %v2765, 0.0
        %v2904 = vsel %vm2584, %v2770, 0.0
        %v2905 = vsel %vm2585, %v2770, 0.0
        %v2906 = vsel %vm2586, %v2770, 0.0
        %v2907 = vsel %vm2587, %v2770, 0.0
        %v2908 = vsel %vm2588, %v2775, 0.0
        %v2909 = vsel %vm2589, %v2775, 0.0
        %v2910 = vsel %vm2590, %v2775, 0.0
        %v2911 = vsel %vm2591, %v2775, 0.0
        %v2912 = vsel %vm2592, %v2780, 0.0
        %v2913 = vsel %vm2593, %v2780, 0.0
        %v2914 = vsel %vm2594, %v2780, 0.0
        %v2915 = vsel %vm2595, %v2780, 0.0
        %v2916 = vsel %vm2596, %v2785, 0.0
        %v2917 = vsel %vm2597, %v2785, 0.0
        %v2918 = vsel %vm2598, %v2785, 0.0
        %v2919 = vsel %vm2599, %v2785, 0.0
        %v2920 = vsel %vm2600, %v2790, 0.0
        %v2921 = vsel %vm2601, %v2790, 0.0
        %v2922 = vsel %vm2602, %v2790, 0.0
        %v2923 = vsel %vm2603, %v2790, 0.0
        %v2924 = vsel %vm2604, %v2795, 0.0
        %v2925 = vsel %vm2605, %v2795, 0.0
        %v2926 = vsel %vm2606, %v2795, 0.0
        %v2927 = vsel %vm2607, %v2795, 0.0
        %v2928 = vsel %vm2608, %v2800, 0.0
        %v2929 = vsel %vm2609, %v2800, 0.0
        %v2930 = vsel %vm2610, %v2800, 0.0
        %v2931 = vsel %vm2611, %v2800, 0.0
        %v2932 = vsel %vm2612, %v2805, 0.0
        %v2933 = vsel %vm2613, %v2805, 0.0
        %v2934 = vsel %vm2614, %v2805, 0.0
        %v2935 = vsel %vm2615, %v2805, 0.0
        %v2936 = vsel %vm2616, %v2810, 0.0
        %v2937 = vsel %vm2617, %v2810, 0.0
        %v2938 = vsel %vm2618, %v2810, 0.0
        %v2939 = vsel %vm2619, %v2810, 0.0
        %v2940 = vmax.f32 %v2812, %v2816
        %v2941 = vmax.f32 %v2940, %v2820
        %v2942 = vmax.f32 %v2941, %v2824
        %v2943 = vmax.f32 %v2942, %v2828
        %v2944 = vmax.f32 %v2943, %v2832
        %v2945 = vmax.f32 %v2944, %v2836
        %v2946 = vmax.f32 %v2945, %v2840
        %v2947 = vmax.f32 %v2946, %v2844
        %v2948 = vmax.f32 %v2947, %v2848
        %v2949 = vmax.f32 %v2948, %v2852
        %v2950 = vmax.f32 %v2949, %v2856
        %v2951 = vmax.f32 %v2950, %v2860
        %v2952 = vmax.f32 %v2951, %v2864
        %v2953 = vmax.f32 %v2952, %v2868
        %v2954 = vmax.f32 %v2953, %v2872
        %v2955 = vmax.f32 %v2954, %v2876
        %v2956 = vmax.f32 %v2955, %v2880
        %v2957 = vmax.f32 %v2956, %v2884
        %v2958 = vmax.f32 %v2957, %v2888
        %v2959 = vmax.f32 %v2958, %v2892
        %v2960 = vmax.f32 %v2959, %v2896
        %v2961 = vmax.f32 %v2960, %v2900
        %v2962 = vmax.f32 %v2961, %v2904
        %v2963 = vmax.f32 %v2962, %v2908
        %v2964 = vmax.f32 %v2963, %v2912
        %v2965 = vmax.f32 %v2964, %v2916
        %v2966 = vmax.f32 %v2965, %v2920
        %v2967 = vmax.f32 %v2966, %v2924
        %v2968 = vmax.f32 %v2967, %v2928
        %v2969 = vmax.f32 %v2968, %v2932
        %v2970 = vmax.f32 %v2969, %v2936
        %v2971 = vrot.slane %v2970, 4
        %v2972 = vmax.f32 %v2970, %v2971
        %v2973 = vrot.slane %v2972, 2
        %v2974 = vmax.f32 %v2972, %v2973
        %v2975 = vrot.slane %v2974, 1
        %v2976 = vmax.f32 %v2974, %v2975
        %v2977 = vmax.f32 %v2813, %v2817
        %v2978 = vmax.f32 %v2977, %v2821
        %v2979 = vmax.f32 %v2978, %v2825
        %v2980 = vmax.f32 %v2979, %v2829
        %v2981 = vmax.f32 %v2980, %v2833
        %v2982 = vmax.f32 %v2981, %v2837
        %v2983 = vmax.f32 %v2982, %v2841
        %v2984 = vmax.f32 %v2983, %v2845
        %v2985 = vmax.f32 %v2984, %v2849
        %v2986 = vmax.f32 %v2985, %v2853
        %v2987 = vmax.f32 %v2986, %v2857
        %v2988 = vmax.f32 %v2987, %v2861
        %v2989 = vmax.f32 %v2988, %v2865
        %v2990 = vmax.f32 %v2989, %v2869
        %v2991 = vmax.f32 %v2990, %v2873
        %v2992 = vmax.f32 %v2991, %v2877
        %v2993 = vmax.f32 %v2992, %v2881
        %v2994 = vmax.f32 %v2993, %v2885
        %v2995 = vmax.f32 %v2994, %v2889
        %v2996 = vmax.f32 %v2995, %v2893
        %v2997 = vmax.f32 %v2996, %v2897
        %v2998 = vmax.f32 %v2997, %v2901
        %v2999 = vmax.f32 %v2998, %v2905
        %v3000 = vmax.f32 %v2999, %v2909
        %v3001 = vmax.f32 %v3000, %v2913
        %v3002 = vmax.f32 %v3001, %v2917
        %v3003 = vmax.f32 %v3002, %v2921
        %v3004 = vmax.f32 %v3003, %v2925
        %v3005 = vmax.f32 %v3004, %v2929
        %v3006 = vmax.f32 %v3005, %v2933
        %v3007 = vmax.f32 %v3006, %v2937
        %v3008 = vrot.slane %v3007, 4
        %v3009 = vmax.f32 %v3007, %v3008
        %v3010 = vrot.slane %v3009, 2
        %v3011 = vmax.f32 %v3009, %v3010
        %v3012 = vrot.slane %v3011, 1
        %v3013 = vmax.f32 %v3011, %v3012
        %v3014 = vmax.f32 %v2814, %v2818
        %v3015 = vmax.f32 %v3014, %v2822
        %v3016 = vmax.f32 %v3015, %v2826
        %v3017 = vmax.f32 %v3016, %v2830
        %v3018 = vmax.f32 %v3017, %v2834
        %v3019 = vmax.f32 %v3018, %v2838
        %v3020 = vmax.f32 %v3019, %v2842
        %v3021 = vmax.f32 %v3020, %v2846
        %v3022 = vmax.f32 %v3021, %v2850
        %v3023 = vmax.f32 %v3022, %v2854
        %v3024 = vmax.f32 %v3023, %v2858
        %v3025 = vmax.f32 %v3024, %v2862
        %v3026 = vmax.f32 %v3025, %v2866
        %v3027 = vmax.f32 %v3026, %v2870
        %v3028 = vmax.f32 %v3027, %v2874
        %v3029 = vmax.f32 %v3028, %v2878
        %v3030 = vmax.f32 %v3029, %v2882
        %v3031 = vmax.f32 %v3030, %v2886
        %v3032 = vmax.f32 %v3031, %v2890
        %v3033 = vmax.f32 %v3032, %v2894
        %v3034 = vmax.f32 %v3033, %v2898
        %v3035 = vmax.f32 %v3034, %v2902
        %v3036 = vmax.f32 %v3035, %v2906
        %v3037 = vmax.f32 %v3036, %v2910
        %v3038 = vmax.f32 %v3037, %v2914
        %v3039 = vmax.f32 %v3038, %v2918
        %v3040 = vmax.f32 %v3039, %v2922
        %v3041 = vmax.f32 %v3040, %v2926
        %v3042 = vmax.f32 %v3041, %v2930
        %v3043 = vmax.f32 %v3042, %v2934
        %v3044 = vmax.f32 %v3043, %v2938
        %v3045 = vrot.slane %v3044, 4
        %v3046 = vmax.f32 %v3044, %v3045
        %v3047 = vrot.slane %v3046, 2
        %v3048 = vmax.f32 %v3046, %v3047
        %v3049 = vrot.slane %v3048, 1
        %v3050 = vmax.f32 %v3048, %v3049
        %v3051 = vmax.f32 %v2815, %v2819
        %v3052 = vmax.f32 %v3051, %v2823
        %v3053 = vmax.f32 %v3052, %v2827
        %v3054 = vmax.f32 %v3053, %v2831
        %v3055 = vmax.f32 %v3054, %v2835
        %v3056 = vmax.f32 %v3055, %v2839
        %v3057 = vmax.f32 %v3056, %v2843
        %v3058 = vmax.f32 %v3057, %v2847
        %v3059 = vmax.f32 %v3058, %v2851
        %v3060 = vmax.f32 %v3059, %v2855
        %v3061 = vmax.f32 %v3060, %v2859
        %v3062 = vmax.f32 %v3061, %v2863
        %v3063 = vmax.f32 %v3062, %v2867
        %v3064 = vmax.f32 %v3063, %v2871
        %v3065 = vmax.f32 %v3064, %v2875
        %v3066 = vmax.f32 %v3065, %v2879
        %v3067 = vmax.f32 %v3066, %v2883
        %v3068 = vmax.f32 %v3067, %v2887
        %v3069 = vmax.f32 %v3068, %v2891
        %v3070 = vmax.f32 %v3069, %v2895
        %v3071 = vmax.f32 %v3070, %v2899
        %v3072 = vmax.f32 %v3071, %v2903
        %v3073 = vmax.f32 %v3072, %v2907
        %v3074 = vmax.f32 %v3073, %v2911
        %v3075 = vmax.f32 %v3074, %v2915
        %v3076 = vmax.f32 %v3075, %v2919
        %v3077 = vmax.f32 %v3076, %v2923
        %v3078 = vmax.f32 %v3077, %v2927
        %v3079 = vmax.f32 %v3078, %v2931
        %v3080 = vmax.f32 %v3079, %v2935
        %v3081 = vmax.f32 %v3080, %v2939
        %v3082 = vrot.slane %v3081, 4
        %v3083 = vmax.f32 %v3081, %v3082
        %v3084 = vrot.slane %v3083, 2
        %v3085 = vmax.f32 %v3083, %v3084
        %v3086 = vrot.slane %v3085, 1
        %v3087 = vmax.f32 %v3085, %v3086
        %v3088 = vld [vmem:[%s194] ss:$4 sm:$0xf]
        %v3093 = vcombine.low %v2976, %v3013
        %v3094 = vcombine.low %v3050, %v3087
        %v3096 = vunpack.c.l.s4 1966171168
        %v3097 = vunpack.c.0.s8 %v3096
        %v3098 = vlaneseq
        %v3099 = vshrl.u32 %v3098, 7
        %v3100 = vsub.s32 %v3097, %v3099
        %v3101 = vrot.slane %v3093, %v3100
        %v3103 = vunpack.c.l.s4 1966171168
        %v3104 = vunpack.c.0.s8 %v3103
        %v3105 = vlaneseq
        %v3106 = vshrl.u32 %v3105, 7
        %v3107 = vsub.s32 %v3104, %v3106
        %v3108 = vrot.slane %v3094, %v3107
        %v3109 = vcombine.low %v3101, %v3108
        %v3111 = vunpack.c.l.s4 1966171168
        %v3112 = vunpack.c.0.s8 %v3111
        %v3113 = vlaneseq
        %v3114 = vshrl.u32 %v3113, 7
        %v3115 = vsub.s32 %v3112, %v3114
        %v3116 = vrot.slane %v3109, %v3115
        %v3118 = vmax.f32 %v3088, %v3116
        %3119 = vst.msk [vmem:[%s194] ss:$4 sm:$0xf] %vm1019, %v3118
        %3120 = vset.pattern.permute.xlu0 1
        %3121 = vperm.xlu0 %3120, %v2620
        %v3122 = vpop.permute.xlu0 %3121
        %3124 = vset.pattern.permute.xlu0 1
        %3125 = vperm.xlu0 %3124, %v2621
        %v3126 = vpop.permute.xlu0 %3125
        %3128 = vset.pattern.permute.xlu0 1
        %3129 = vperm.xlu0 %3128, %v2622
        %v3130 = vpop.permute.xlu0 %3129
        %3132 = vset.pattern.permute.xlu0 1
        %3133 = vperm.xlu0 %3132, %v2623
        %v3134 = vpop.permute.xlu0 %3133
        %3136 = vset.pattern.permute.xlu0 1
        %3137 = vperm.xlu0 %3136, %v2624
        %v3138 = vpop.permute.xlu0 %3137
        %3140 = vset.pattern.permute.xlu0 1
        %3141 = vperm.xlu0 %3140, %v2625
        %v3142 = vpop.permute.xlu0 %3141
        %3144 = vset.pattern.permute.xlu0 1
        %3145 = vperm.xlu0 %3144, %v2626
        %v3146 = vpop.permute.xlu0 %3145
        %3148 = vset.pattern.permute.xlu0 1
        %3149 = vperm.xlu0 %3148, %v2627
        %v3150 = vpop.permute.xlu0 %3149
        %3152 = vset.pattern.permute.xlu0 1
        %3153 = vperm.xlu0 %3152, %v2628
        %v3154 = vpop.permute.xlu0 %3153
        %3156 = vset.pattern.permute.xlu0 1
        %3157 = vperm.xlu0 %3156, %v2629
        %v3158 = vpop.permute.xlu0 %3157
        %3160 = vset.pattern.permute.xlu0 1
        %3161 = vperm.xlu0 %3160, %v2630
        %v3162 = vpop.permute.xlu0 %3161
        %3164 = vset.pattern.permute.xlu0 1
        %3165 = vperm.xlu0 %3164, %v2631
        %v3166 = vpop.permute.xlu0 %3165
        %3168 = vset.pattern.permute.xlu0 1
        %3169 = vperm.xlu0 %3168, %v2632
        %v3170 = vpop.permute.xlu0 %3169
        %3172 = vset.pattern.permute.xlu0 1
        %3173 = vperm.xlu0 %3172, %v2633
        %v3174 = vpop.permute.xlu0 %3173
        %3176 = vset.pattern.permute.xlu0 1
        %3177 = vperm.xlu0 %3176, %v2634
        %v3178 = vpop.permute.xlu0 %3177
        %3180 = vset.pattern.permute.xlu0 1
        %3181 = vperm.xlu0 %3180, %v2635
        %v3182 = vpop.permute.xlu0 %3181
        %3184 = vset.pattern.permute.xlu0 1
        %3185 = vperm.xlu0 %3184, %v2636
        %v3186 = vpop.permute.xlu0 %3185
        %3188 = vset.pattern.permute.xlu0 1
        %3189 = vperm.xlu0 %3188, %v2637
        %v3190 = vpop.permute.xlu0 %3189
        %3192 = vset.pattern.permute.xlu0 1
        %3193 = vperm.xlu0 %3192, %v2638
        %v3194 = vpop.permute.xlu0 %3193
        %3196 = vset.pattern.permute.xlu0 1
        %3197 = vperm.xlu0 %3196, %v2639
        %v3198 = vpop.permute.xlu0 %3197
        %3200 = vset.pattern.permute.xlu0 1
        %3201 = vperm.xlu0 %3200, %v2640
        %v3202 = vpop.permute.xlu0 %3201
        %3204 = vset.pattern.permute.xlu0 1
        %3205 = vperm.xlu0 %3204, %v2641
        %v3206 = vpop.permute.xlu0 %3205
        %3208 = vset.pattern.permute.xlu0 1
        %3209 = vperm.xlu0 %3208, %v2642
        %v3210 = vpop.permute.xlu0 %3209
        %3212 = vset.pattern.permute.xlu0 1
        %3213 = vperm.xlu0 %3212, %v2643
        %v3214 = vpop.permute.xlu0 %3213
        %3216 = vset.pattern.permute.xlu0 1
        %3217 = vperm.xlu0 %3216, %v2644
        %v3218 = vpop.permute.xlu0 %3217
        %3220 = vset.pattern.permute.xlu0 1
        %3221 = vperm.xlu0 %3220, %v2645
        %v3222 = vpop.permute.xlu0 %3221
        %3224 = vset.pattern.permute.xlu0 1
        %3225 = vperm.xlu0 %3224, %v2646
        %v3226 = vpop.permute.xlu0 %3225
        %3228 = vset.pattern.permute.xlu0 1
        %3229 = vperm.xlu0 %3228, %v2647
        %v3230 = vpop.permute.xlu0 %3229
        %3232 = vset.pattern.permute.xlu0 1
        %3233 = vperm.xlu0 %3232, %v2648
        %v3234 = vpop.permute.xlu0 %3233
        %3236 = vset.pattern.permute.xlu0 1
        %3237 = vperm.xlu0 %3236, %v2649
        %v3238 = vpop.permute.xlu0 %3237
        %3240 = vset.pattern.permute.xlu0 1
        %3241 = vperm.xlu0 %3240, %v2650
        %v3242 = vpop.permute.xlu0 %3241
        %3244 = vset.pattern.permute.xlu0 1
        %3245 = vperm.xlu0 %3244, %v2651
        %v3246 = vpop.permute.xlu0 %3245
        %v3248 = vsel %vm2492, %v3122, 0.0
        %v3249 = vsel %vm2493, %v3122, 0.0
        %v3250 = vsel %vm2494, %v3122, 0.0
        %v3251 = vsel %vm2495, %v3122, 0.0
        %v3252 = vsel %vm2496, %v3126, 0.0
        %v3253 = vsel %vm2497, %v3126, 0.0
        %v3254 = vsel %vm2498, %v3126, 0.0
        %v3255 = vsel %vm2499, %v3126, 0.0
        %v3256 = vsel %vm2500, %v3130, 0.0
        %v3257 = vsel %vm2501, %v3130, 0.0
        %v3258 = vsel %vm2502, %v3130, 0.0
        %v3259 = vsel %vm2503, %v3130, 0.0
        %v3260 = vsel %vm2504, %v3134, 0.0
        %v3261 = vsel %vm2505, %v3134, 0.0
        %v3262 = vsel %vm2506, %v3134, 0.0
        %v3263 = vsel %vm2507, %v3134, 0.0
        %v3264 = vsel %vm2508, %v3138, 0.0
        %v3265 = vsel %vm2509, %v3138, 0.0
        %v3266 = vsel %vm2510, %v3138, 0.0
        %v3267 = vsel %vm2511, %v3138, 0.0
        %v3268 = vsel %vm2512, %v3142, 0.0
        %v3269 = vsel %vm2513, %v3142, 0.0
        %v3270 = vsel %vm2514, %v3142, 0.0
        %v3271 = vsel %vm2515, %v3142, 0.0
        %v3272 = vsel %vm2516, %v3146, 0.0
        %v3273 = vsel %vm2517, %v3146, 0.0
        %v3274 = vsel %vm2518, %v3146, 0.0
        %v3275 = vsel %vm2519, %v3146, 0.0
        %v3276 = vsel %vm2520, %v3150, 0.0
        %v3277 = vsel %vm2521, %v3150, 0.0
        %v3278 = vsel %vm2522, %v3150, 0.0
        %v3279 = vsel %vm2523, %v3150, 0.0
        %v3280 = vsel %vm2524, %v3154, 0.0
        %v3281 = vsel %vm2525, %v3154, 0.0
        %v3282 = vsel %vm2526, %v3154, 0.0
        %v3283 = vsel %vm2527, %v3154, 0.0
        %v3284 = vsel %vm2528, %v3158, 0.0
        %v3285 = vsel %vm2529, %v3158, 0.0
        %v3286 = vsel %vm2530, %v3158, 0.0
        %v3287 = vsel %vm2531, %v3158, 0.0
        %v3288 = vsel %vm2532, %v3162, 0.0
        %v3289 = vsel %vm2533, %v3162, 0.0
        %v3290 = vsel %vm2534, %v3162, 0.0
        %v3291 = vsel %vm2535, %v3162, 0.0
        %v3292 = vsel %vm2536, %v3166, 0.0
        %v3293 = vsel %vm2537, %v3166, 0.0
        %v3294 = vsel %vm2538, %v3166, 0.0
        %v3295 = vsel %vm2539, %v3166, 0.0
        %v3296 = vsel %vm2540, %v3170, 0.0
        %v3297 = vsel %vm2541, %v3170, 0.0
        %v3298 = vsel %vm2542, %v3170, 0.0
        %v3299 = vsel %vm2543, %v3170, 0.0
        %v3300 = vsel %vm2544, %v3174, 0.0
        %v3301 = vsel %vm2545, %v3174, 0.0
        %v3302 = vsel %vm2546, %v3174, 0.0
        %v3303 = vsel %vm2547, %v3174, 0.0
        %v3304 = vsel %vm2548, %v3178, 0.0
        %v3305 = vsel %vm2549, %v3178, 0.0
        %v3306 = vsel %vm2550, %v3178, 0.0
        %v3307 = vsel %vm2551, %v3178, 0.0
        %v3308 = vsel %vm2552, %v3182, 0.0
        %v3309 = vsel %vm2553, %v3182, 0.0
        %v3310 = vsel %vm2554, %v3182, 0.0
        %v3311 = vsel %vm2555, %v3182, 0.0
        %v3312 = vsel %vm2556, %v3186, 0.0
        %v3313 = vsel %vm2557, %v3186, 0.0
        %v3314 = vsel %vm2558, %v3186, 0.0
        %v3315 = vsel %vm2559, %v3186, 0.0
        %v3316 = vsel %vm2560, %v3190, 0.0
        %v3317 = vsel %vm2561, %v3190, 0.0
        %v3318 = vsel %vm2562, %v3190, 0.0
        %v3319 = vsel %vm2563, %v3190, 0.0
        %v3320 = vsel %vm2564, %v3194, 0.0
        %v3321 = vsel %vm2565, %v3194, 0.0
        %v3322 = vsel %vm2566, %v3194, 0.0
        %v3323 = vsel %vm2567, %v3194, 0.0
        %v3324 = vsel %vm2568, %v3198, 0.0
        %v3325 = vsel %vm2569, %v3198, 0.0
        %v3326 = vsel %vm2570, %v3198, 0.0
        %v3327 = vsel %vm2571, %v3198, 0.0
        %v3328 = vsel %vm2572, %v3202, 0.0
        %v3329 = vsel %vm2573, %v3202, 0.0
        %v3330 = vsel %vm2574, %v3202, 0.0
        %v3331 = vsel %vm2575, %v3202, 0.0
        %v3332 = vsel %vm2576, %v3206, 0.0
        %v3333 = vsel %vm2577, %v3206, 0.0
        %v3334 = vsel %vm2578, %v3206, 0.0
        %v3335 = vsel %vm2579, %v3206, 0.0
        %v3336 = vsel %vm2580, %v3210, 0.0
        %v3337 = vsel %vm2581, %v3210, 0.0
        %v3338 = vsel %vm2582, %v3210, 0.0
        %v3339 = vsel %vm2583, %v3210, 0.0
        %v3340 = vsel %vm2584, %v3214, 0.0
        %v3341 = vsel %vm2585, %v3214, 0.0
        %v3342 = vsel %vm2586, %v3214, 0.0
        %v3343 = vsel %vm2587, %v3214, 0.0
        %v3344 = vsel %vm2588, %v3218, 0.0
        %v3345 = vsel %vm2589, %v3218, 0.0
        %v3346 = vsel %vm2590, %v3218, 0.0
        %v3347 = vsel %vm2591, %v3218, 0.0
        %v3348 = vsel %vm2592, %v3222, 0.0
        %v3349 = vsel %vm2593, %v3222, 0.0
        %v3350 = vsel %vm2594, %v3222, 0.0
        %v3351 = vsel %vm2595, %v3222, 0.0
        %v3352 = vsel %vm2596, %v3226, 0.0
        %v3353 = vsel %vm2597, %v3226, 0.0
        %v3354 = vsel %vm2598, %v3226, 0.0
        %v3355 = vsel %vm2599, %v3226, 0.0
        %v3356 = vsel %vm2600, %v3230, 0.0
        %v3357 = vsel %vm2601, %v3230, 0.0
        %v3358 = vsel %vm2602, %v3230, 0.0
        %v3359 = vsel %vm2603, %v3230, 0.0
        %v3360 = vsel %vm2604, %v3234, 0.0
        %v3361 = vsel %vm2605, %v3234, 0.0
        %v3362 = vsel %vm2606, %v3234, 0.0
        %v3363 = vsel %vm2607, %v3234, 0.0
        %v3364 = vsel %vm2608, %v3238, 0.0
        %v3365 = vsel %vm2609, %v3238, 0.0
        %v3366 = vsel %vm2610, %v3238, 0.0
        %v3367 = vsel %vm2611, %v3238, 0.0
        %v3368 = vsel %vm2612, %v3242, 0.0
        %v3369 = vsel %vm2613, %v3242, 0.0
        %v3370 = vsel %vm2614, %v3242, 0.0
        %v3371 = vsel %vm2615, %v3242, 0.0
        %v3372 = vsel %vm2616, %v3246, 0.0
        %v3373 = vsel %vm2617, %v3246, 0.0
        %v3374 = vsel %vm2618, %v3246, 0.0
        %v3375 = vsel %vm2619, %v3246, 0.0
        %v3376 = vmax.f32 %v3248, %v3252
        %v3377 = vmax.f32 %v3376, %v3256
        %v3378 = vmax.f32 %v3377, %v3260
        %v3379 = vmax.f32 %v3378, %v3264
        %v3380 = vmax.f32 %v3379, %v3268
        %v3381 = vmax.f32 %v3380, %v3272
        %v3382 = vmax.f32 %v3381, %v3276
        %v3383 = vmax.f32 %v3382, %v3280
        %v3384 = vmax.f32 %v3383, %v3284
        %v3385 = vmax.f32 %v3384, %v3288
        %v3386 = vmax.f32 %v3385, %v3292
        %v3387 = vmax.f32 %v3386, %v3296
        %v3388 = vmax.f32 %v3387, %v3300
        %v3389 = vmax.f32 %v3388, %v3304
        %v3390 = vmax.f32 %v3389, %v3308
        %v3391 = vmax.f32 %v3390, %v3312
        %v3392 = vmax.f32 %v3391, %v3316
        %v3393 = vmax.f32 %v3392, %v3320
        %v3394 = vmax.f32 %v3393, %v3324
        %v3395 = vmax.f32 %v3394, %v3328
        %v3396 = vmax.f32 %v3395, %v3332
        %v3397 = vmax.f32 %v3396, %v3336
        %v3398 = vmax.f32 %v3397, %v3340
        %v3399 = vmax.f32 %v3398, %v3344
        %v3400 = vmax.f32 %v3399, %v3348
        %v3401 = vmax.f32 %v3400, %v3352
        %v3402 = vmax.f32 %v3401, %v3356
        %v3403 = vmax.f32 %v3402, %v3360
        %v3404 = vmax.f32 %v3403, %v3364
        %v3405 = vmax.f32 %v3404, %v3368
        %v3406 = vmax.f32 %v3405, %v3372
        %v3407 = vrot.slane %v3406, 4
        %v3408 = vmax.f32 %v3406, %v3407
        %v3409 = vrot.slane %v3408, 2
        %v3410 = vmax.f32 %v3408, %v3409
        %v3411 = vrot.slane %v3410, 1
        %v3412 = vmax.f32 %v3410, %v3411
        %v3413 = vmax.f32 %v3249, %v3253
        %v3414 = vmax.f32 %v3413, %v3257
        %v3415 = vmax.f32 %v3414, %v3261
        %v3416 = vmax.f32 %v3415, %v3265
        %v3417 = vmax.f32 %v3416, %v3269
        %v3418 = vmax.f32 %v3417, %v3273
        %v3419 = vmax.f32 %v3418, %v3277
        %v3420 = vmax.f32 %v3419, %v3281
        %v3421 = vmax.f32 %v3420, %v3285
        %v3422 = vmax.f32 %v3421, %v3289
        %v3423 = vmax.f32 %v3422, %v3293
        %v3424 = vmax.f32 %v3423, %v3297
        %v3425 = vmax.f32 %v3424, %v3301
        %v3426 = vmax.f32 %v3425, %v3305
        %v3427 = vmax.f32 %v3426, %v3309
        %v3428 = vmax.f32 %v3427, %v3313
        %v3429 = vmax.f32 %v3428, %v3317
        %v3430 = vmax.f32 %v3429, %v3321
        %v3431 = vmax.f32 %v3430, %v3325
        %v3432 = vmax.f32 %v3431, %v3329
        %v3433 = vmax.f32 %v3432, %v3333
        %v3434 = vmax.f32 %v3433, %v3337
        %v3435 = vmax.f32 %v3434, %v3341
        %v3436 = vmax.f32 %v3435, %v3345
        %v3437 = vmax.f32 %v3436, %v3349
        %v3438 = vmax.f32 %v3437, %v3353
        %v3439 = vmax.f32 %v3438, %v3357
        %v3440 = vmax.f32 %v3439, %v3361
        %v3441 = vmax.f32 %v3440, %v3365
        %v3442 = vmax.f32 %v3441, %v3369
        %v3443 = vmax.f32 %v3442, %v3373
        %v3444 = vrot.slane %v3443, 4
        %v3445 = vmax.f32 %v3443, %v3444
        %v3446 = vrot.slane %v3445, 2
        %v3447 = vmax.f32 %v3445, %v3446
        %v3448 = vrot.slane %v3447, 1
        %v3449 = vmax.f32 %v3447, %v3448
        %v3450 = vmax.f32 %v3250, %v3254
        %v3451 = vmax.f32 %v3450, %v3258
        %v3452 = vmax.f32 %v3451, %v3262
        %v3453 = vmax.f32 %v3452, %v3266
        %v3454 = vmax.f32 %v3453, %v3270
        %v3455 = vmax.f32 %v3454, %v3274
        %v3456 = vmax.f32 %v3455, %v3278
        %v3457 = vmax.f32 %v3456, %v3282
        %v3458 = vmax.f32 %v3457, %v3286
        %v3459 = vmax.f32 %v3458, %v3290
        %v3460 = vmax.f32 %v3459, %v3294
        %v3461 = vmax.f32 %v3460, %v3298
        %v3462 = vmax.f32 %v3461, %v3302
        %v3463 = vmax.f32 %v3462, %v3306
        %v3464 = vmax.f32 %v3463, %v3310
        %v3465 = vmax.f32 %v3464, %v3314
        %v3466 = vmax.f32 %v3465, %v3318
        %v3467 = vmax.f32 %v3466, %v3322
        %v3468 = vmax.f32 %v3467, %v3326
        %v3469 = vmax.f32 %v3468, %v3330
        %v3470 = vmax.f32 %v3469, %v3334
        %v3471 = vmax.f32 %v3470, %v3338
        %v3472 = vmax.f32 %v3471, %v3342
        %v3473 = vmax.f32 %v3472, %v3346
        %v3474 = vmax.f32 %v3473, %v3350
        %v3475 = vmax.f32 %v3474, %v3354
        %v3476 = vmax.f32 %v3475, %v3358
        %v3477 = vmax.f32 %v3476, %v3362
        %v3478 = vmax.f32 %v3477, %v3366
        %v3479 = vmax.f32 %v3478, %v3370
        %v3480 = vmax.f32 %v3479, %v3374
        %v3481 = vrot.slane %v3480, 4
        %v3482 = vmax.f32 %v3480, %v3481
        %v3483 = vrot.slane %v3482, 2
        %v3484 = vmax.f32 %v3482, %v3483
        %v3485 = vrot.slane %v3484, 1
        %v3486 = vmax.f32 %v3484, %v3485
        %v3487 = vmax.f32 %v3251, %v3255
        %v3488 = vmax.f32 %v3487, %v3259
        %v3489 = vmax.f32 %v3488, %v3263
        %v3490 = vmax.f32 %v3489, %v3267
        %v3491 = vmax.f32 %v3490, %v3271
        %v3492 = vmax.f32 %v3491, %v3275
        %v3493 = vmax.f32 %v3492, %v3279
        %v3494 = vmax.f32 %v3493, %v3283
        %v3495 = vmax.f32 %v3494, %v3287
        %v3496 = vmax.f32 %v3495, %v3291
        %v3497 = vmax.f32 %v3496, %v3295
        %v3498 = vmax.f32 %v3497, %v3299
        %v3499 = vmax.f32 %v3498, %v3303
        %v3500 = vmax.f32 %v3499, %v3307
        %v3501 = vmax.f32 %v3500, %v3311
        %v3502 = vmax.f32 %v3501, %v3315
        %v3503 = vmax.f32 %v3502, %v3319
        %v3504 = vmax.f32 %v3503, %v3323
        %v3505 = vmax.f32 %v3504, %v3327
        %v3506 = vmax.f32 %v3505, %v3331
        %v3507 = vmax.f32 %v3506, %v3335
        %v3508 = vmax.f32 %v3507, %v3339
        %v3509 = vmax.f32 %v3508, %v3343
        %v3510 = vmax.f32 %v3509, %v3347
        %v3511 = vmax.f32 %v3510, %v3351
        %v3512 = vmax.f32 %v3511, %v3355
        %v3513 = vmax.f32 %v3512, %v3359
        %v3514 = vmax.f32 %v3513, %v3363
        %v3515 = vmax.f32 %v3514, %v3367
        %v3516 = vmax.f32 %v3515, %v3371
        %v3517 = vmax.f32 %v3516, %v3375
        %v3518 = vrot.slane %v3517, 4
        %v3519 = vmax.f32 %v3517, %v3518
        %v3520 = vrot.slane %v3519, 2
        %v3521 = vmax.f32 %v3519, %v3520
        %v3522 = vrot.slane %v3521, 1
        %v3523 = vmax.f32 %v3521, %v3522
        %v3524 = vld [vmem:[%s1425] ss:$4 sm:$0xf]
        %v3529 = vcombine.low %v3412, %v3449
        %v3530 = vcombine.low %v3486, %v3523
        %v3532 = vunpack.c.l.s4 1966171168
        %v3533 = vunpack.c.0.s8 %v3532
        %v3534 = vlaneseq
        %v3535 = vshrl.u32 %v3534, 7
        %v3536 = vsub.s32 %v3533, %v3535
        %v3537 = vrot.slane %v3529, %v3536
        %v3539 = vunpack.c.l.s4 1966171168
        %v3540 = vunpack.c.0.s8 %v3539
        %v3541 = vlaneseq
        %v3542 = vshrl.u32 %v3541, 7
        %v3543 = vsub.s32 %v3540, %v3542
        %v3544 = vrot.slane %v3530, %v3543
        %v3545 = vcombine.low %v3537, %v3544
        %v3547 = vunpack.c.l.s4 1966171168
        %v3548 = vunpack.c.0.s8 %v3547
        %v3549 = vlaneseq
        %v3550 = vshrl.u32 %v3549, 7
        %v3551 = vsub.s32 %v3548, %v3550
        %v3552 = vrot.slane %v3545, %v3551
        %v3554 = vmax.f32 %v3524, %v3552
        %3555 = vst.msk [vmem:[%s1425] ss:$4 sm:$0xf] %vm1019, %v3554
        %3556 = vset.pattern.permute.xlu0 2
        %3557 = vperm.xlu0 %3556, %v2620
        %v3558 = vpop.permute.xlu0 %3557
        %3560 = vset.pattern.permute.xlu0 2
        %3561 = vperm.xlu0 %3560, %v2621
        %v3562 = vpop.permute.xlu0 %3561
        %3564 = vset.pattern.permute.xlu0 2
        %3565 = vperm.xlu0 %3564, %v2622
        %v3566 = vpop.permute.xlu0 %3565
        %3568 = vset.pattern.permute.xlu0 2
        %3569 = vperm.xlu0 %3568, %v2623
        %v3570 = vpop.permute.xlu0 %3569
        %3572 = vset.pattern.permute.xlu0 2
        %3573 = vperm.xlu0 %3572, %v2624
        %v3574 = vpop.permute.xlu0 %3573
        %3576 = vset.pattern.permute.xlu0 2
        %3577 = vperm.xlu0 %3576, %v2625
        %v3578 = vpop.permute.xlu0 %3577
        %3580 = vset.pattern.permute.xlu0 2
        %3581 = vperm.xlu0 %3580, %v2626
        %v3582 = vpop.permute.xlu0 %3581
        %3584 = vset.pattern.permute.xlu0 2
        %3585 = vperm.xlu0 %3584, %v2627
        %v3586 = vpop.permute.xlu0 %3585
        %3588 = vset.pattern.permute.xlu0 2
        %3589 = vperm.xlu0 %3588, %v2628
        %v3590 = vpop.permute.xlu0 %3589
        %3592 = vset.pattern.permute.xlu0 2
        %3593 = vperm.xlu0 %3592, %v2629
        %v3594 = vpop.permute.xlu0 %3593
        %3596 = vset.pattern.permute.xlu0 2
        %3597 = vperm.xlu0 %3596, %v2630
        %v3598 = vpop.permute.xlu0 %3597
        %3600 = vset.pattern.permute.xlu0 2
        %3601 = vperm.xlu0 %3600, %v2631
        %v3602 = vpop.permute.xlu0 %3601
        %3604 = vset.pattern.permute.xlu0 2
        %3605 = vperm.xlu0 %3604, %v2632
        %v3606 = vpop.permute.xlu0 %3605
        %3608 = vset.pattern.permute.xlu0 2
        %3609 = vperm.xlu0 %3608, %v2633
        %v3610 = vpop.permute.xlu0 %3609
        %3612 = vset.pattern.permute.xlu0 2
        %3613 = vperm.xlu0 %3612, %v2634
        %v3614 = vpop.permute.xlu0 %3613
        %3616 = vset.pattern.permute.xlu0 2
        %3617 = vperm.xlu0 %3616, %v2635
        %v3618 = vpop.permute.xlu0 %3617
        %3620 = vset.pattern.permute.xlu0 2
        %3621 = vperm.xlu0 %3620, %v2636
        %v3622 = vpop.permute.xlu0 %3621
        %3624 = vset.pattern.permute.xlu0 2
        %3625 = vperm.xlu0 %3624, %v2637
        %v3626 = vpop.permute.xlu0 %3625
        %3628 = vset.pattern.permute.xlu0 2
        %3629 = vperm.xlu0 %3628, %v2638
        %v3630 = vpop.permute.xlu0 %3629
        %3632 = vset.pattern.permute.xlu0 2
        %3633 = vperm.xlu0 %3632, %v2639
        %v3634 = vpop.permute.xlu0 %3633
        %3636 = vset.pattern.permute.xlu0 2
        %3637 = vperm.xlu0 %3636, %v2640
        %v3638 = vpop.permute.xlu0 %3637
        %3640 = vset.pattern.permute.xlu0 2
        %3641 = vperm.xlu0 %3640, %v2641
        %v3642 = vpop.permute.xlu0 %3641
        %3644 = vset.pattern.permute.xlu0 2
        %3645 = vperm.xlu0 %3644, %v2642
        %v3646 = vpop.permute.xlu0 %3645
        %3648 = vset.pattern.permute.xlu0 2
        %3649 = vperm.xlu0 %3648, %v2643
        %v3650 = vpop.permute.xlu0 %3649
        %3652 = vset.pattern.permute.xlu0 2
        %3653 = vperm.xlu0 %3652, %v2644
        %v3654 = vpop.permute.xlu0 %3653
        %3656 = vset.pattern.permute.xlu0 2
        %3657 = vperm.xlu0 %3656, %v2645
        %v3658 = vpop.permute.xlu0 %3657
        %3660 = vset.pattern.permute.xlu0 2
        %3661 = vperm.xlu0 %3660, %v2646
        %v3662 = vpop.permute.xlu0 %3661
        %3664 = vset.pattern.permute.xlu0 2
        %3665 = vperm.xlu0 %3664, %v2647
        %v3666 = vpop.permute.xlu0 %3665
        %3668 = vset.pattern.permute.xlu0 2
        %3669 = vperm.xlu0 %3668, %v2648
        %v3670 = vpop.permute.xlu0 %3669
        %3672 = vset.pattern.permute.xlu0 2
        %3673 = vperm.xlu0 %3672, %v2649
        %v3674 = vpop.permute.xlu0 %3673
        %3676 = vset.pattern.permute.xlu0 2
        %3677 = vperm.xlu0 %3676, %v2650
        %v3678 = vpop.permute.xlu0 %3677
        %3680 = vset.pattern.permute.xlu0 2
        %3681 = vperm.xlu0 %3680, %v2651
        %v3682 = vpop.permute.xlu0 %3681
        %v3684 = vsel %vm2492, %v3558, 0.0
        %v3685 = vsel %vm2493, %v3558, 0.0
        %v3686 = vsel %vm2494, %v3558, 0.0
        %v3687 = vsel %vm2495, %v3558, 0.0
        %v3688 = vsel %vm2496, %v3562, 0.0
        %v3689 = vsel %vm2497, %v3562, 0.0
        %v3690 = vsel %vm2498, %v3562, 0.0
        %v3691 = vsel %vm2499, %v3562, 0.0
        %v3692 = vsel %vm2500, %v3566, 0.0
        %v3693 = vsel %vm2501, %v3566, 0.0
        %v3694 = vsel %vm2502, %v3566, 0.0
        %v3695 = vsel %vm2503, %v3566, 0.0
        %v3696 = vsel %vm2504, %v3570, 0.0
        %v3697 = vsel %vm2505, %v3570, 0.0
        %v3698 = vsel %vm2506, %v3570, 0.0
        %v3699 = vsel %vm2507, %v3570, 0.0
        %v3700 = vsel %vm2508, %v3574, 0.0
        %v3701 = vsel %vm2509, %v3574, 0.0
        %v3702 = vsel %vm2510, %v3574, 0.0
        %v3703 = vsel %vm2511, %v3574, 0.0
        %v3704 = vsel %vm2512, %v3578, 0.0
        %v3705 = vsel %vm2513, %v3578, 0.0
        %v3706 = vsel %vm2514, %v3578, 0.0
        %v3707 = vsel %vm2515, %v3578, 0.0
        %v3708 = vsel %vm2516, %v3582, 0.0
        %v3709 = vsel %vm2517, %v3582, 0.0
        %v3710 = vsel %vm2518, %v3582, 0.0
        %v3711 = vsel %vm2519, %v3582, 0.0
        %v3712 = vsel %vm2520, %v3586, 0.0
        %v3713 = vsel %vm2521, %v3586, 0.0
        %v3714 = vsel %vm2522, %v3586, 0.0
        %v3715 = vsel %vm2523, %v3586, 0.0
        %v3716 = vsel %vm2524, %v3590, 0.0
        %v3717 = vsel %vm2525, %v3590, 0.0
        %v3718 = vsel %vm2526, %v3590, 0.0
        %v3719 = vsel %vm2527, %v3590, 0.0
        %v3720 = vsel %vm2528, %v3594, 0.0
        %v3721 = vsel %vm2529, %v3594, 0.0
        %v3722 = vsel %vm2530, %v3594, 0.0
        %v3723 = vsel %vm2531, %v3594, 0.0
        %v3724 = vsel %vm2532, %v3598, 0.0
        %v3725 = vsel %vm2533, %v3598, 0.0
        %v3726 = vsel %vm2534, %v3598, 0.0
        %v3727 = vsel %vm2535, %v3598, 0.0
        %v3728 = vsel %vm2536, %v3602, 0.0
        %v3729 = vsel %vm2537, %v3602, 0.0
        %v3730 = vsel %vm2538, %v3602, 0.0
        %v3731 = vsel %vm2539, %v3602, 0.0
        %v3732 = vsel %vm2540, %v3606, 0.0
        %v3733 = vsel %vm2541, %v3606, 0.0
        %v3734 = vsel %vm2542, %v3606, 0.0
        %v3735 = vsel %vm2543, %v3606, 0.0
        %v3736 = vsel %vm2544, %v3610, 0.0
        %v3737 = vsel %vm2545, %v3610, 0.0
        %v3738 = vsel %vm2546, %v3610, 0.0
        %v3739 = vsel %vm2547, %v3610, 0.0
        %v3740 = vsel %vm2548, %v3614, 0.0
        %v3741 = vsel %vm2549, %v3614, 0.0
        %v3742 = vsel %vm2550, %v3614, 0.0
        %v3743 = vsel %vm2551, %v3614, 0.0
        %v3744 = vsel %vm2552, %v3618, 0.0
        %v3745 = vsel %vm2553, %v3618, 0.0
        %v3746 = vsel %vm2554, %v3618, 0.0
        %v3747 = vsel %vm2555, %v3618, 0.0
        %v3748 = vsel %vm2556, %v3622, 0.0
        %v3749 = vsel %vm2557, %v3622, 0.0
        %v3750 = vsel %vm2558, %v3622, 0.0
        %v3751 = vsel %vm2559, %v3622, 0.0
        %v3752 = vsel %vm2560, %v3626, 0.0
        %v3753 = vsel %vm2561, %v3626, 0.0
        %v3754 = vsel %vm2562, %v3626, 0.0
        %v3755 = vsel %vm2563, %v3626, 0.0
        %v3756 = vsel %vm2564, %v3630, 0.0
        %v3757 = vsel %vm2565, %v3630, 0.0
        %v3758 = vsel %vm2566, %v3630, 0.0
        %v3759 = vsel %vm2567, %v3630, 0.0
        %v3760 = vsel %vm2568, %v3634, 0.0
        %v3761 = vsel %vm2569, %v3634, 0.0
        %v3762 = vsel %vm2570, %v3634, 0.0
        %v3763 = vsel %vm2571, %v3634, 0.0
        %v3764 = vsel %vm2572, %v3638, 0.0
        %v3765 = vsel %vm2573, %v3638, 0.0
        %v3766 = vsel %vm2574, %v3638, 0.0
        %v3767 = vsel %vm2575, %v3638, 0.0
        %v3768 = vsel %vm2576, %v3642, 0.0
        %v3769 = vsel %vm2577, %v3642, 0.0
        %v3770 = vsel %vm2578, %v3642, 0.0
        %v3771 = vsel %vm2579, %v3642, 0.0
        %v3772 = vsel %vm2580, %v3646, 0.0
        %v3773 = vsel %vm2581, %v3646, 0.0
        %v3774 = vsel %vm2582, %v3646, 0.0
        %v3775 = vsel %vm2583, %v3646, 0.0
        %v3776 = vsel %vm2584, %v3650, 0.0
        %v3777 = vsel %vm2585, %v3650, 0.0
        %v3778 = vsel %vm2586, %v3650, 0.0
        %v3779 = vsel %vm2587, %v3650, 0.0
        %v3780 = vsel %vm2588, %v3654, 0.0
        %v3781 = vsel %vm2589, %v3654, 0.0
        %v3782 = vsel %vm2590, %v3654, 0.0
        %v3783 = vsel %vm2591, %v3654, 0.0
        %v3784 = vsel %vm2592, %v3658, 0.0
        %v3785 = vsel %vm2593, %v3658, 0.0
        %v3786 = vsel %vm2594, %v3658, 0.0
        %v3787 = vsel %vm2595, %v3658, 0.0
        %v3788 = vsel %vm2596, %v3662, 0.0
        %v3789 = vsel %vm2597, %v3662, 0.0
        %v3790 = vsel %vm2598, %v3662, 0.0
        %v3791 = vsel %vm2599, %v3662, 0.0
        %v3792 = vsel %vm2600, %v3666, 0.0
        %v3793 = vsel %vm2601, %v3666, 0.0
        %v3794 = vsel %vm2602, %v3666, 0.0
        %v3795 = vsel %vm2603, %v3666, 0.0
        %v3796 = vsel %vm2604, %v3670, 0.0
        %v3797 = vsel %vm2605, %v3670, 0.0
        %v3798 = vsel %vm2606, %v3670, 0.0
        %v3799 = vsel %vm2607, %v3670, 0.0
        %v3800 = vsel %vm2608, %v3674, 0.0
        %v3801 = vsel %vm2609, %v3674, 0.0
        %v3802 = vsel %vm2610, %v3674, 0.0
        %v3803 = vsel %vm2611, %v3674, 0.0
        %v3804 = vsel %vm2612, %v3678, 0.0
        %v3805 = vsel %vm2613, %v3678, 0.0
        %v3806 = vsel %vm2614, %v3678, 0.0
        %v3807 = vsel %vm2615, %v3678, 0.0
        %v3808 = vsel %vm2616, %v3682, 0.0
        %v3809 = vsel %vm2617, %v3682, 0.0
        %v3810 = vsel %vm2618, %v3682, 0.0
        %v3811 = vsel %vm2619, %v3682, 0.0
        %v3812 = vmax.f32 %v3684, %v3688
        %v3813 = vmax.f32 %v3812, %v3692
        %v3814 = vmax.f32 %v3813, %v3696
        %v3815 = vmax.f32 %v3814, %v3700
        %v3816 = vmax.f32 %v3815, %v3704
        %v3817 = vmax.f32 %v3816, %v3708
        %v3818 = vmax.f32 %v3817, %v3712
        %v3819 = vmax.f32 %v3818, %v3716
        %v3820 = vmax.f32 %v3819, %v3720
        %v3821 = vmax.f32 %v3820, %v3724
        %v3822 = vmax.f32 %v3821, %v3728
        %v3823 = vmax.f32 %v3822, %v3732
        %v3824 = vmax.f32 %v3823, %v3736
        %v3825 = vmax.f32 %v3824, %v3740
        %v3826 = vmax.f32 %v3825, %v3744
        %v3827 = vmax.f32 %v3826, %v3748
        %v3828 = vmax.f32 %v3827, %v3752
        %v3829 = vmax.f32 %v3828, %v3756
        %v3830 = vmax.f32 %v3829, %v3760
        %v3831 = vmax.f32 %v3830, %v3764
        %v3832 = vmax.f32 %v3831, %v3768
        %v3833 = vmax.f32 %v3832, %v3772
        %v3834 = vmax.f32 %v3833, %v3776
        %v3835 = vmax.f32 %v3834, %v3780
        %v3836 = vmax.f32 %v3835, %v3784
        %v3837 = vmax.f32 %v3836, %v3788
        %v3838 = vmax.f32 %v3837, %v3792
        %v3839 = vmax.f32 %v3838, %v3796
        %v3840 = vmax.f32 %v3839, %v3800
        %v3841 = vmax.f32 %v3840, %v3804
        %v3842 = vmax.f32 %v3841, %v3808
        %v3843 = vrot.slane %v3842, 4
        %v3844 = vmax.f32 %v3842, %v3843
        %v3845 = vrot.slane %v3844, 2
        %v3846 = vmax.f32 %v3844, %v3845
        %v3847 = vrot.slane %v3846, 1
        %v3848 = vmax.f32 %v3846, %v3847
        %v3849 = vmax.f32 %v3685, %v3689
        %v3850 = vmax.f32 %v3849, %v3693
        %v3851 = vmax.f32 %v3850, %v3697
        %v3852 = vmax.f32 %v3851, %v3701
        %v3853 = vmax.f32 %v3852, %v3705
        %v3854 = vmax.f32 %v3853, %v3709
        %v3855 = vmax.f32 %v3854, %v3713
        %v3856 = vmax.f32 %v3855, %v3717
        %v3857 = vmax.f32 %v3856, %v3721
        %v3858 = vmax.f32 %v3857, %v3725
        %v3859 = vmax.f32 %v3858, %v3729
        %v3860 = vmax.f32 %v3859, %v3733
        %v3861 = vmax.f32 %v3860, %v3737
        %v3862 = vmax.f32 %v3861, %v3741
        %v3863 = vmax.f32 %v3862, %v3745
        %v3864 = vmax.f32 %v3863, %v3749
        %v3865 = vmax.f32 %v3864, %v3753
        %v3866 = vmax.f32 %v3865, %v3757
        %v3867 = vmax.f32 %v3866, %v3761
        %v3868 = vmax.f32 %v3867, %v3765
        %v3869 = vmax.f32 %v3868, %v3769
        %v3870 = vmax.f32 %v3869, %v3773
        %v3871 = vmax.f32 %v3870, %v3777
        %v3872 = vmax.f32 %v3871, %v3781
        %v3873 = vmax.f32 %v3872, %v3785
        %v3874 = vmax.f32 %v3873, %v3789
        %v3875 = vmax.f32 %v3874, %v3793
        %v3876 = vmax.f32 %v3875, %v3797
        %v3877 = vmax.f32 %v3876, %v3801
        %v3878 = vmax.f32 %v3877, %v3805
        %v3879 = vmax.f32 %v3878, %v3809
        %v3880 = vrot.slane %v3879, 4
        %v3881 = vmax.f32 %v3879, %v3880
        %v3882 = vrot.slane %v3881, 2
        %v3883 = vmax.f32 %v3881, %v3882
        %v3884 = vrot.slane %v3883, 1
        %v3885 = vmax.f32 %v3883, %v3884
        %v3886 = vmax.f32 %v3686, %v3690
        %v3887 = vmax.f32 %v3886, %v3694
        %v3888 = vmax.f32 %v3887, %v3698
        %v3889 = vmax.f32 %v3888, %v3702
        %v3890 = vmax.f32 %v3889, %v3706
        %v3891 = vmax.f32 %v3890, %v3710
        %v3892 = vmax.f32 %v3891, %v3714
        %v3893 = vmax.f32 %v3892, %v3718
        %v3894 = vmax.f32 %v3893, %v3722
        %v3895 = vmax.f32 %v3894, %v3726
        %v3896 = vmax.f32 %v3895, %v3730
        %v3897 = vmax.f32 %v3896, %v3734
        %v3898 = vmax.f32 %v3897, %v3738
        %v3899 = vmax.f32 %v3898, %v3742
        %v3900 = vmax.f32 %v3899, %v3746
        %v3901 = vmax.f32 %v3900, %v3750
        %v3902 = vmax.f32 %v3901, %v3754
        %v3903 = vmax.f32 %v3902, %v3758
        %v3904 = vmax.f32 %v3903, %v3762
        %v3905 = vmax.f32 %v3904, %v3766
        %v3906 = vmax.f32 %v3905, %v3770
        %v3907 = vmax.f32 %v3906, %v3774
        %v3908 = vmax.f32 %v3907, %v3778
        %v3909 = vmax.f32 %v3908, %v3782
        %v3910 = vmax.f32 %v3909, %v3786
        %v3911 = vmax.f32 %v3910, %v3790
        %v3912 = vmax.f32 %v3911, %v3794
        %v3913 = vmax.f32 %v3912, %v3798
        %v3914 = vmax.f32 %v3913, %v3802
        %v3915 = vmax.f32 %v3914, %v3806
        %v3916 = vmax.f32 %v3915, %v3810
        %v3917 = vrot.slane %v3916, 4
        %v3918 = vmax.f32 %v3916, %v3917
        %v3919 = vrot.slane %v3918, 2
        %v3920 = vmax.f32 %v3918, %v3919
        %v3921 = vrot.slane %v3920, 1
        %v3922 = vmax.f32 %v3920, %v3921
        %v3923 = vmax.f32 %v3687, %v3691
        %v3924 = vmax.f32 %v3923, %v3695
        %v3925 = vmax.f32 %v3924, %v3699
        %v3926 = vmax.f32 %v3925, %v3703
        %v3927 = vmax.f32 %v3926, %v3707
        %v3928 = vmax.f32 %v3927, %v3711
        %v3929 = vmax.f32 %v3928, %v3715
        %v3930 = vmax.f32 %v3929, %v3719
        %v3931 = vmax.f32 %v3930, %v3723
        %v3932 = vmax.f32 %v3931, %v3727
        %v3933 = vmax.f32 %v3932, %v3731
        %v3934 = vmax.f32 %v3933, %v3735
        %v3935 = vmax.f32 %v3934, %v3739
        %v3936 = vmax.f32 %v3935, %v3743
        %v3937 = vmax.f32 %v3936, %v3747
        %v3938 = vmax.f32 %v3937, %v3751
        %v3939 = vmax.f32 %v3938, %v3755
        %v3940 = vmax.f32 %v3939, %v3759
        %v3941 = vmax.f32 %v3940, %v3763
        %v3942 = vmax.f32 %v3941, %v3767
        %v3943 = vmax.f32 %v3942, %v3771
        %v3944 = vmax.f32 %v3943, %v3775
        %v3945 = vmax.f32 %v3944, %v3779
        %v3946 = vmax.f32 %v3945, %v3783
        %v3947 = vmax.f32 %v3946, %v3787
        %v3948 = vmax.f32 %v3947, %v3791
        %v3949 = vmax.f32 %v3948, %v3795
        %v3950 = vmax.f32 %v3949, %v3799
        %v3951 = vmax.f32 %v3950, %v3803
        %v3952 = vmax.f32 %v3951, %v3807
        %v3953 = vmax.f32 %v3952, %v3811
        %v3954 = vrot.slane %v3953, 4
        %v3955 = vmax.f32 %v3953, %v3954
        %v3956 = vrot.slane %v3955, 2
        %v3957 = vmax.f32 %v3955, %v3956
        %v3958 = vrot.slane %v3957, 1
        %v3959 = vmax.f32 %v3957, %v3958
        %v3960 = vld [vmem:[%s1862] ss:$4 sm:$0xf]
        %v3965 = vcombine.low %v3848, %v3885
        %v3966 = vcombine.low %v3922, %v3959
        %v3968 = vunpack.c.l.s4 1966171168
        %v3969 = vunpack.c.0.s8 %v3968
        %v3970 = vlaneseq
        %v3971 = vshrl.u32 %v3970, 7
        %v3972 = vsub.s32 %v3969, %v3971
        %v3973 = vrot.slane %v3965, %v3972
        %v3975 = vunpack.c.l.s4 1966171168
        %v3976 = vunpack.c.0.s8 %v3975
        %v3977 = vlaneseq
        %v3978 = vshrl.u32 %v3977, 7
        %v3979 = vsub.s32 %v3976, %v3978
        %v3980 = vrot.slane %v3966, %v3979
        %v3981 = vcombine.low %v3973, %v3980
        %v3983 = vunpack.c.l.s4 1966171168
        %v3984 = vunpack.c.0.s8 %v3983
        %v3985 = vlaneseq
        %v3986 = vshrl.u32 %v3985, 7
        %v3987 = vsub.s32 %v3984, %v3986
        %v3988 = vrot.slane %v3981, %v3987
        %v3990 = vmax.f32 %v3960, %v3988
        %3991 = vst.msk [vmem:[%s1862] ss:$4 sm:$0xf] %vm1019, %v3990
        %3992 = vset.pattern.permute.xlu0 3
        %3993 = vperm.xlu0 %3992, %v2620
        %v3994 = vpop.permute.xlu0 %3993
        %3996 = vset.pattern.permute.xlu0 3
        %3997 = vperm.xlu0 %3996, %v2621
        %v3998 = vpop.permute.xlu0 %3997
        %4000 = vset.pattern.permute.xlu0 3
        %4001 = vperm.xlu0 %4000, %v2622
        %v4002 = vpop.permute.xlu0 %4001
        %4004 = vset.pattern.permute.xlu0 3
        %4005 = vperm.xlu0 %4004, %v2623
        %v4006 = vpop.permute.xlu0 %4005
        %4008 = vset.pattern.permute.xlu0 3
        %4009 = vperm.xlu0 %4008, %v2624
        %v4010 = vpop.permute.xlu0 %4009
        %4012 = vset.pattern.permute.xlu0 3
        %4013 = vperm.xlu0 %4012, %v2625
        %v4014 = vpop.permute.xlu0 %4013
        %4016 = vset.pattern.permute.xlu0 3
        %4017 = vperm.xlu0 %4016, %v2626
        %v4018 = vpop.permute.xlu0 %4017
        %4020 = vset.pattern.permute.xlu0 3
        %4021 = vperm.xlu0 %4020, %v2627
        %v4022 = vpop.permute.xlu0 %4021
        %4024 = vset.pattern.permute.xlu0 3
        %4025 = vperm.xlu0 %4024, %v2628
        %v4026 = vpop.permute.xlu0 %4025
        %4028 = vset.pattern.permute.xlu0 3
        %4029 = vperm.xlu0 %4028, %v2629
        %v4030 = vpop.permute.xlu0 %4029
        %4032 = vset.pattern.permute.xlu0 3
        %4033 = vperm.xlu0 %4032, %v2630
        %v4034 = vpop.permute.xlu0 %4033
        %4036 = vset.pattern.permute.xlu0 3
        %4037 = vperm.xlu0 %4036, %v2631
        %v4038 = vpop.permute.xlu0 %4037
        %4040 = vset.pattern.permute.xlu0 3
        %4041 = vperm.xlu0 %4040, %v2632
        %v4042 = vpop.permute.xlu0 %4041
        %4044 = vset.pattern.permute.xlu0 3
        %4045 = vperm.xlu0 %4044, %v2633
        %v4046 = vpop.permute.xlu0 %4045
        %4048 = vset.pattern.permute.xlu0 3
        %4049 = vperm.xlu0 %4048, %v2634
        %v4050 = vpop.permute.xlu0 %4049
        %4052 = vset.pattern.permute.xlu0 3
        %4053 = vperm.xlu0 %4052, %v2635
        %v4054 = vpop.permute.xlu0 %4053
        %4056 = vset.pattern.permute.xlu0 3
        %4057 = vperm.xlu0 %4056, %v2636
        %v4058 = vpop.permute.xlu0 %4057
        %4060 = vset.pattern.permute.xlu0 3
        %4061 = vperm.xlu0 %4060, %v2637
        %v4062 = vpop.permute.xlu0 %4061
        %4064 = vset.pattern.permute.xlu0 3
        %4065 = vperm.xlu0 %4064, %v2638
        %v4066 = vpop.permute.xlu0 %4065
        %4068 = vset.pattern.permute.xlu0 3
        %4069 = vperm.xlu0 %4068, %v2639
        %v4070 = vpop.permute.xlu0 %4069
        %4072 = vset.pattern.permute.xlu0 3
        %4073 = vperm.xlu0 %4072, %v2640
        %v4074 = vpop.permute.xlu0 %4073
        %4076 = vset.pattern.permute.xlu0 3
        %4077 = vperm.xlu0 %4076, %v2641
        %v4078 = vpop.permute.xlu0 %4077
        %4080 = vset.pattern.permute.xlu0 3
        %4081 = vperm.xlu0 %4080, %v2642
        %v4082 = vpop.permute.xlu0 %4081
        %4084 = vset.pattern.permute.xlu0 3
        %4085 = vperm.xlu0 %4084, %v2643
        %v4086 = vpop.permute.xlu0 %4085
        %4088 = vset.pattern.permute.xlu0 3
        %4089 = vperm.xlu0 %4088, %v2644
        %v4090 = vpop.permute.xlu0 %4089
        %4092 = vset.pattern.permute.xlu0 3
        %4093 = vperm.xlu0 %4092, %v2645
        %v4094 = vpop.permute.xlu0 %4093
        %4096 = vset.pattern.permute.xlu0 3
        %4097 = vperm.xlu0 %4096, %v2646
        %v4098 = vpop.permute.xlu0 %4097
        %4100 = vset.pattern.permute.xlu0 3
        %4101 = vperm.xlu0 %4100, %v2647
        %v4102 = vpop.permute.xlu0 %4101
        %4104 = vset.pattern.permute.xlu0 3
        %4105 = vperm.xlu0 %4104, %v2648
        %v4106 = vpop.permute.xlu0 %4105
        %4108 = vset.pattern.permute.xlu0 3
        %4109 = vperm.xlu0 %4108, %v2649
        %v4110 = vpop.permute.xlu0 %4109
        %4112 = vset.pattern.permute.xlu0 3
        %4113 = vperm.xlu0 %4112, %v2650
        %v4114 = vpop.permute.xlu0 %4113
        %4116 = vset.pattern.permute.xlu0 3
        %4117 = vperm.xlu0 %4116, %v2651
        %v4118 = vpop.permute.xlu0 %4117
        %v4120 = vsel %vm2492, %v3994, 0.0
        %v4121 = vsel %vm2493, %v3994, 0.0
        %v4122 = vsel %vm2494, %v3994, 0.0
        %v4123 = vsel %vm2495, %v3994, 0.0
        %v4124 = vsel %vm2496, %v3998, 0.0
        %v4125 = vsel %vm2497, %v3998, 0.0
        %v4126 = vsel %vm2498, %v3998, 0.0
        %v4127 = vsel %vm2499, %v3998, 0.0
        %v4128 = vsel %vm2500, %v4002, 0.0
        %v4129 = vsel %vm2501, %v4002, 0.0
        %v4130 = vsel %vm2502, %v4002, 0.0
        %v4131 = vsel %vm2503, %v4002, 0.0
        %v4132 = vsel %vm2504, %v4006, 0.0
        %v4133 = vsel %vm2505, %v4006, 0.0
        %v4134 = vsel %vm2506, %v4006, 0.0
        %v4135 = vsel %vm2507, %v4006, 0.0
        %v4136 = vsel %vm2508, %v4010, 0.0
        %v4137 = vsel %vm2509, %v4010, 0.0
        %v4138 = vsel %vm2510, %v4010, 0.0
        %v4139 = vsel %vm2511, %v4010, 0.0
        %v4140 = vsel %vm2512, %v4014, 0.0
        %v4141 = vsel %vm2513, %v4014, 0.0
        %v4142 = vsel %vm2514, %v4014, 0.0
        %v4143 = vsel %vm2515, %v4014, 0.0
        %v4144 = vsel %vm2516, %v4018, 0.0
        %v4145 = vsel %vm2517, %v4018, 0.0
        %v4146 = vsel %vm2518, %v4018, 0.0
        %v4147 = vsel %vm2519, %v4018, 0.0
        %v4148 = vsel %vm2520, %v4022, 0.0
        %v4149 = vsel %vm2521, %v4022, 0.0
        %v4150 = vsel %vm2522, %v4022, 0.0
        %v4151 = vsel %vm2523, %v4022, 0.0
        %v4152 = vsel %vm2524, %v4026, 0.0
        %v4153 = vsel %vm2525, %v4026, 0.0
        %v4154 = vsel %vm2526, %v4026, 0.0
        %v4155 = vsel %vm2527, %v4026, 0.0
        %v4156 = vsel %vm2528, %v4030, 0.0
        %v4157 = vsel %vm2529, %v4030, 0.0
        %v4158 = vsel %vm2530, %v4030, 0.0
        %v4159 = vsel %vm2531, %v4030, 0.0
        %v4160 = vsel %vm2532, %v4034, 0.0
        %v4161 = vsel %vm2533, %v4034, 0.0
        %v4162 = vsel %vm2534, %v4034, 0.0
        %v4163 = vsel %vm2535, %v4034, 0.0
        %v4164 = vsel %vm2536, %v4038, 0.0
        %v4165 = vsel %vm2537, %v4038, 0.0
        %v4166 = vsel %vm2538, %v4038, 0.0
        %v4167 = vsel %vm2539, %v4038, 0.0
        %v4168 = vsel %vm2540, %v4042, 0.0
        %v4169 = vsel %vm2541, %v4042, 0.0
        %v4170 = vsel %vm2542, %v4042, 0.0
        %v4171 = vsel %vm2543, %v4042, 0.0
        %v4172 = vsel %vm2544, %v4046, 0.0
        %v4173 = vsel %vm2545, %v4046, 0.0
        %v4174 = vsel %vm2546, %v4046, 0.0
        %v4175 = vsel %vm2547, %v4046, 0.0
        %v4176 = vsel %vm2548, %v4050, 0.0
        %v4177 = vsel %vm2549, %v4050, 0.0
        %v4178 = vsel %vm2550, %v4050, 0.0
        %v4179 = vsel %vm2551, %v4050, 0.0
        %v4180 = vsel %vm2552, %v4054, 0.0
        %v4181 = vsel %vm2553, %v4054, 0.0
        %v4182 = vsel %vm2554, %v4054, 0.0
        %v4183 = vsel %vm2555, %v4054, 0.0
        %v4184 = vsel %vm2556, %v4058, 0.0
        %v4185 = vsel %vm2557, %v4058, 0.0
        %v4186 = vsel %vm2558, %v4058, 0.0
        %v4187 = vsel %vm2559, %v4058, 0.0
        %v4188 = vsel %vm2560, %v4062, 0.0
        %v4189 = vsel %vm2561, %v4062, 0.0
        %v4190 = vsel %vm2562, %v4062, 0.0
        %v4191 = vsel %vm2563, %v4062, 0.0
        %v4192 = vsel %vm2564, %v4066, 0.0
        %v4193 = vsel %vm2565, %v4066, 0.0
        %v4194 = vsel %vm2566, %v4066, 0.0
        %v4195 = vsel %vm2567, %v4066, 0.0
        %v4196 = vsel %vm2568, %v4070, 0.0
        %v4197 = vsel %vm2569, %v4070, 0.0
        %v4198 = vsel %vm2570, %v4070, 0.0
        %v4199 = vsel %vm2571, %v4070, 0.0
        %v4200 = vsel %vm2572, %v4074, 0.0
        %v4201 = vsel %vm2573, %v4074, 0.0
        %v4202 = vsel %vm2574, %v4074, 0.0
        %v4203 = vsel %vm2575, %v4074, 0.0
        %v4204 = vsel %vm2576, %v4078, 0.0
        %v4205 = vsel %vm2577, %v4078, 0.0
        %v4206 = vsel %vm2578, %v4078, 0.0
        %v4207 = vsel %vm2579, %v4078, 0.0
        %v4208 = vsel %vm2580, %v4082, 0.0
        %v4209 = vsel %vm2581, %v4082, 0.0
        %v4210 = vsel %vm2582, %v4082, 0.0
        %v4211 = vsel %vm2583, %v4082, 0.0
        %v4212 = vsel %vm2584, %v4086, 0.0
        %v4213 = vsel %vm2585, %v4086, 0.0
        %v4214 = vsel %vm2586, %v4086, 0.0
        %v4215 = vsel %vm2587, %v4086, 0.0
        %v4216 = vsel %vm2588, %v4090, 0.0
        %v4217 = vsel %vm2589, %v4090, 0.0
        %v4218 = vsel %vm2590, %v4090, 0.0
        %v4219 = vsel %vm2591, %v4090, 0.0
        %v4220 = vsel %vm2592, %v4094, 0.0
        %v4221 = vsel %vm2593, %v4094, 0.0
        %v4222 = vsel %vm2594, %v4094, 0.0
        %v4223 = vsel %vm2595, %v4094, 0.0
        %v4224 = vsel %vm2596, %v4098, 0.0
        %v4225 = vsel %vm2597, %v4098, 0.0
        %v4226 = vsel %vm2598, %v4098, 0.0
        %v4227 = vsel %vm2599, %v4098, 0.0
        %v4228 = vsel %vm2600, %v4102, 0.0
        %v4229 = vsel %vm2601, %v4102, 0.0
        %v4230 = vsel %vm2602, %v4102, 0.0
        %v4231 = vsel %vm2603, %v4102, 0.0
        %v4232 = vsel %vm2604, %v4106, 0.0
        %v4233 = vsel %vm2605, %v4106, 0.0
        %v4234 = vsel %vm2606, %v4106, 0.0
        %v4235 = vsel %vm2607, %v4106, 0.0
        %v4236 = vsel %vm2608, %v4110, 0.0
        %v4237 = vsel %vm2609, %v4110, 0.0
        %v4238 = vsel %vm2610, %v4110, 0.0
        %v4239 = vsel %vm2611, %v4110, 0.0
        %v4240 = vsel %vm2612, %v4114, 0.0
        %v4241 = vsel %vm2613, %v4114, 0.0
        %v4242 = vsel %vm2614, %v4114, 0.0
        %v4243 = vsel %vm2615, %v4114, 0.0
        %v4244 = vsel %vm2616, %v4118, 0.0
        %v4245 = vsel %vm2617, %v4118, 0.0
        %v4246 = vsel %vm2618, %v4118, 0.0
        %v4247 = vsel %vm2619, %v4118, 0.0
        %v4248 = vmax.f32 %v4120, %v4124
        %v4249 = vmax.f32 %v4248, %v4128
        %v4250 = vmax.f32 %v4249, %v4132
        %v4251 = vmax.f32 %v4250, %v4136
        %v4252 = vmax.f32 %v4251, %v4140
        %v4253 = vmax.f32 %v4252, %v4144
        %v4254 = vmax.f32 %v4253, %v4148
        %v4255 = vmax.f32 %v4254, %v4152
        %v4256 = vmax.f32 %v4255, %v4156
        %v4257 = vmax.f32 %v4256, %v4160
        %v4258 = vmax.f32 %v4257, %v4164
        %v4259 = vmax.f32 %v4258, %v4168
        %v4260 = vmax.f32 %v4259, %v4172
        %v4261 = vmax.f32 %v4260, %v4176
        %v4262 = vmax.f32 %v4261, %v4180
        %v4263 = vmax.f32 %v4262, %v4184
        %v4264 = vmax.f32 %v4263, %v4188
        %v4265 = vmax.f32 %v4264, %v4192
        %v4266 = vmax.f32 %v4265, %v4196
        %v4267 = vmax.f32 %v4266, %v4200
        %v4268 = vmax.f32 %v4267, %v4204
        %v4269 = vmax.f32 %v4268, %v4208
        %v4270 = vmax.f32 %v4269, %v4212
        %v4271 = vmax.f32 %v4270, %v4216
        %v4272 = vmax.f32 %v4271, %v4220
        %v4273 = vmax.f32 %v4272, %v4224
        %v4274 = vmax.f32 %v4273, %v4228
        %v4275 = vmax.f32 %v4274, %v4232
        %v4276 = vmax.f32 %v4275, %v4236
        %v4277 = vmax.f32 %v4276, %v4240
        %v4278 = vmax.f32 %v4277, %v4244
        %v4279 = vrot.slane %v4278, 4
        %v4280 = vmax.f32 %v4278, %v4279
        %v4281 = vrot.slane %v4280, 2
        %v4282 = vmax.f32 %v4280, %v4281
        %v4283 = vrot.slane %v4282, 1
        %v4284 = vmax.f32 %v4282, %v4283
        %v4285 = vmax.f32 %v4121, %v4125
        %v4286 = vmax.f32 %v4285, %v4129
        %v4287 = vmax.f32 %v4286, %v4133
        %v4288 = vmax.f32 %v4287, %v4137
        %v4289 = vmax.f32 %v4288, %v4141
        %v4290 = vmax.f32 %v4289, %v4145
        %v4291 = vmax.f32 %v4290, %v4149
        %v4292 = vmax.f32 %v4291, %v4153
        %v4293 = vmax.f32 %v4292, %v4157
        %v4294 = vmax.f32 %v4293, %v4161
        %v4295 = vmax.f32 %v4294, %v4165
        %v4296 = vmax.f32 %v4295, %v4169
        %v4297 = vmax.f32 %v4296, %v4173
        %v4298 = vmax.f32 %v4297, %v4177
        %v4299 = vmax.f32 %v4298, %v4181
        %v4300 = vmax.f32 %v4299, %v4185
        %v4301 = vmax.f32 %v4300, %v4189
        %v4302 = vmax.f32 %v4301, %v4193
        %v4303 = vmax.f32 %v4302, %v4197
        %v4304 = vmax.f32 %v4303, %v4201
        %v4305 = vmax.f32 %v4304, %v4205
        %v4306 = vmax.f32 %v4305, %v4209
        %v4307 = vmax.f32 %v4306, %v4213
        %v4308 = vmax.f32 %v4307, %v4217
        %v4309 = vmax.f32 %v4308, %v4221
        %v4310 = vmax.f32 %v4309, %v4225
        %v4311 = vmax.f32 %v4310, %v4229
        %v4312 = vmax.f32 %v4311, %v4233
        %v4313 = vmax.f32 %v4312, %v4237
        %v4314 = vmax.f32 %v4313, %v4241
        %v4315 = vmax.f32 %v4314, %v4245
        %v4316 = vrot.slane %v4315, 4
        %v4317 = vmax.f32 %v4315, %v4316
        %v4318 = vrot.slane %v4317, 2
        %v4319 = vmax.f32 %v4317, %v4318
        %v4320 = vrot.slane %v4319, 1
        %v4321 = vmax.f32 %v4319, %v4320
        %v4322 = vmax.f32 %v4122, %v4126
        %v4323 = vmax.f32 %v4322, %v4130
        %v4324 = vmax.f32 %v4323, %v4134
        %v4325 = vmax.f32 %v4324, %v4138
        %v4326 = vmax.f32 %v4325, %v4142
        %v4327 = vmax.f32 %v4326, %v4146
        %v4328 = vmax.f32 %v4327, %v4150
        %v4329 = vmax.f32 %v4328, %v4154
        %v4330 = vmax.f32 %v4329, %v4158
        %v4331 = vmax.f32 %v4330, %v4162
        %v4332 = vmax.f32 %v4331, %v4166
        %v4333 = vmax.f32 %v4332, %v4170
        %v4334 = vmax.f32 %v4333, %v4174
        %v4335 = vmax.f32 %v4334, %v4178
        %v4336 = vmax.f32 %v4335, %v4182
        %v4337 = vmax.f32 %v4336, %v4186
        %v4338 = vmax.f32 %v4337, %v4190
        %v4339 = vmax.f32 %v4338, %v4194
        %v4340 = vmax.f32 %v4339, %v4198
        %v4341 = vmax.f32 %v4340, %v4202
        %v4342 = vmax.f32 %v4341, %v4206
        %v4343 = vmax.f32 %v4342, %v4210
        %v4344 = vmax.f32 %v4343, %v4214
        %v4345 = vmax.f32 %v4344, %v4218
        %v4346 = vmax.f32 %v4345, %v4222
        %v4347 = vmax.f32 %v4346, %v4226
        %v4348 = vmax.f32 %v4347, %v4230
        %v4349 = vmax.f32 %v4348, %v4234
        %v4350 = vmax.f32 %v4349, %v4238
        %v4351 = vmax.f32 %v4350, %v4242
        %v4352 = vmax.f32 %v4351, %v4246
        %v4353 = vrot.slane %v4352, 4
        %v4354 = vmax.f32 %v4352, %v4353
        %v4355 = vrot.slane %v4354, 2
        %v4356 = vmax.f32 %v4354, %v4355
        %v4357 = vrot.slane %v4356, 1
        %v4358 = vmax.f32 %v4356, %v4357
        %v4359 = vmax.f32 %v4123, %v4127
        %v4360 = vmax.f32 %v4359, %v4131
        %v4361 = vmax.f32 %v4360, %v4135
        %v4362 = vmax.f32 %v4361, %v4139
        %v4363 = vmax.f32 %v4362, %v4143
        %v4364 = vmax.f32 %v4363, %v4147
        %v4365 = vmax.f32 %v4364, %v4151
        %v4366 = vmax.f32 %v4365, %v4155
        %v4367 = vmax.f32 %v4366, %v4159
        %v4368 = vmax.f32 %v4367, %v4163
        %v4369 = vmax.f32 %v4368, %v4167
        %v4370 = vmax.f32 %v4369, %v4171
        %v4371 = vmax.f32 %v4370, %v4175
        %v4372 = vmax.f32 %v4371, %v4179
        %v4373 = vmax.f32 %v4372, %v4183
        %v4374 = vmax.f32 %v4373, %v4187
        %v4375 = vmax.f32 %v4374, %v4191
        %v4376 = vmax.f32 %v4375, %v4195
        %v4377 = vmax.f32 %v4376, %v4199
        %v4378 = vmax.f32 %v4377, %v4203
        %v4379 = vmax.f32 %v4378, %v4207
        %v4380 = vmax.f32 %v4379, %v4211
        %v4381 = vmax.f32 %v4380, %v4215
        %v4382 = vmax.f32 %v4381, %v4219
        %v4383 = vmax.f32 %v4382, %v4223
        %v4384 = vmax.f32 %v4383, %v4227
        %v4385 = vmax.f32 %v4384, %v4231
        %v4386 = vmax.f32 %v4385, %v4235
        %v4387 = vmax.f32 %v4386, %v4239
        %v4388 = vmax.f32 %v4387, %v4243
        %v4389 = vmax.f32 %v4388, %v4247
        %v4390 = vrot.slane %v4389, 4
        %v4391 = vmax.f32 %v4389, %v4390
        %v4392 = vrot.slane %v4391, 2
        %v4393 = vmax.f32 %v4391, %v4392
        %v4394 = vrot.slane %v4393, 1
        %v4395 = vmax.f32 %v4393, %v4394
        %v4396 = vld [vmem:[%s2299] ss:$4 sm:$0xf]
        %v4401 = vcombine.low %v4284, %v4321
        %v4402 = vcombine.low %v4358, %v4395
        %v4404 = vunpack.c.l.s4 1966171168
        %v4405 = vunpack.c.0.s8 %v4404
        %v4406 = vlaneseq
        %v4407 = vshrl.u32 %v4406, 7
        %v4408 = vsub.s32 %v4405, %v4407
        %v4409 = vrot.slane %v4401, %v4408
        %v4411 = vunpack.c.l.s4 1966171168
        %v4412 = vunpack.c.0.s8 %v4411
        %v4413 = vlaneseq
        %v4414 = vshrl.u32 %v4413, 7
        %v4415 = vsub.s32 %v4412, %v4414
        %v4416 = vrot.slane %v4402, %v4415
        %v4417 = vcombine.low %v4409, %v4416
        %v4419 = vunpack.c.l.s4 1966171168
        %v4420 = vunpack.c.0.s8 %v4419
        %v4421 = vlaneseq
        %v4422 = vshrl.u32 %v4421, 7
        %v4423 = vsub.s32 %v4420, %v4422
        %v4424 = vrot.slane %v4417, %v4423
        %v4426 = vmax.f32 %v4396, %v4424
        %4427 = vst.msk [vmem:[%s2299] ss:$4 sm:$0xf] %vm1019, %v4426
        %s4428 = sand.u32 %s101, 1
        %s4429 = scalar_lea.sflag [#allocation3], %s4428
        %s4430 = sand.u32 %s101, 1
        %s4431 = smul.addr %s4430, 16
        %s4432 = scalar_lea.vmem [#allocation2], %s4431
        // Predicated region
        $region33: #{tpu_custom_call.1} parent=27 // pred_check
          %p4433 = pneg %p111
        $region34: #{tpu_custom_call.1} parent=27 // pred_check_branch
          %4435 = sbr.rel (%p4433) target = $region36
        $region35: #{tpu_custom_call.1} parent=27 // pred_region
          %s4436 = smul.u32 4, %s22
          %s4438 = ssub.s32 256, 256
          %4439 = vsyncadd %s4429, %s4438
          %s4440 = smul.addr %s21, 4
          %s4441 = sadd.s32 %s4436, %s4440
          %s4442 = smul.addr %s4441, 64
          %s4443 = scalar_lea.hbm %s2, %s4442
          %s4445 = sshll.u32 %s4432, 4
          %s4446 = int_to_ptr.vmem [resolvable:$true] %s4445
          %4448 = dma.vmem_to_hbm [thread:$0]  %s4446, 256, %s4443, %s4429
        $region36: #{tpu_custom_call.1} parent=27 // pred_fallthru
          _
      $region28: #{tpu_custom_call.1} parent=5 // pred_fallthru
        _
      %p4449 = scmp.le.s32.totalorder 2, %s11
      // Predicated region
      $region37: #{tpu_custom_call.1} parent=5 // pred_check
        %p4450 = pneg %p4449
      $region38: #{tpu_custom_call.1} parent=5 // pred_check_branch
        %4452 = sbr.rel (%p4450) target = $region40
      $region39: #{tpu_custom_call.1} parent=5 // pred_region
        %s4453 = ssub.s32 %s11, 2
        // Predicated region
        $region41: #{tpu_custom_call.1} parent=39 // pred_check
          %p4454 = pneg %p117
        $region42: #{tpu_custom_call.1} parent=39 // pred_check_branch
          %4456 = sbr.rel (%p4454) target = $region44
        $region43: #{tpu_custom_call.1} parent=39 // pred_region
          %s4457 = sand.u32 %s102, 1
          %s4458 = scalar_lea.sflag [#allocation3], %s4457
          %s4459 = sand.u32 %s102, 1
          %s4460 = smul.addr %s4459, 16
          %s4461 = scalar_lea.vmem [#allocation2], %s4460
          %4462 = dma.done %s4458, 256
        $region44: #{tpu_custom_call.1} parent=39 // pred_fallthru
          _
      $region40: #{tpu_custom_call.1} parent=5 // pred_fallthru
        _
    $region6: #{tpu_custom_call.1} parent=1 // loop_footer
      %s15 = sadd.s32 1, %s11
    $region7: #{tpu_custom_call.1} parent=1 // loop_footer_branch
      %10 = sbr.rel target = $region3
    $region8: #{tpu_custom_call.1} parent=1 // loop_exit
      _
    %4463 = vsyncpa [#allocation3], 1
    %s4464 = scalar_lea.sflag [#allocation3], 1
    %4465 = vsyncpa %s4464, 1

</llo_original>
